<compile_context>
chip_gen: v5e
topology: v5e:2x2
jax: 0.10.0
libtpu: 0.0.40
codegen_flags: <defaults>
</compile_context>

<pallas_src>
import functools

import numpy as np
import jax
import jax.numpy as jnp
from jax.experimental import pallas as pl
from jax.experimental.pallas import tpu as pltpu


# ---------------------------------------------------------------------------
# Host-side parameter preprocessing (run once, outside jit)
# ---------------------------------------------------------------------------
def _deconv4x4s2p1_nhwc(x, w):
    """Reference ConvTranspose2d(k=4, s=2, p=1), NHWC, no bias (numpy, f64)."""
    S = x.shape[0]
    Co = w.shape[1]
    out = np.zeros((2 * S, 2 * S, Co))
    for ky in range(4):
        for kx in range(4):
            contrib = np.tensordot(x, w[:, :, ky, kx], axes=([2], [0]))  # [S,S,Co]
            for yi in range(S):
                yo = 2 * yi + ky - 1
                if not (0 <= yo < 2 * S):
                    continue
                for xi in range(S):
                    xo = 2 * xi + kx - 1
                    if 0 <= xo < 2 * S:
                        out[yo, xo] += contrib[yi, xi]
    return out


def _fc_to_rows(fc_w, fc_b, C, S, p):
    """Rearrange torch Linear(out=C*S*S) params into the row-grouped layout.

    Stored row m (of R = S//p) packs true image rows p*m+j, with lane index
    (j*S + x)*C + c.  Weight rows are ordered (m, k) so they matmul against
    the block-diagonal latent expansion built in the wrapper.
    """
    d = fc_w.shape[1]
    R = S // p
    w = fc_w.reshape(C, R, p, S, d).transpose(1, 4, 2, 3, 0).reshape(R * d, p * S * C)
    b = fc_b.reshape(C, R, p, S).transpose(1, 2, 3, 0).reshape(R, p * S * C)
    return w, b


def _deconv_row_mat(w, S, Ci, Co, p_i, t_stored):
    """Dense matrix mapping one input stored row (at offset `t_stored` from the
    output stored row m') to the full output stored row of the next stage.

    Input lane layout : (j_in * S + x) * Ci + ci,    j_in in [0, p_i)
    Output lane layout: (j_out * 2S + xo) * Co + co, j_out in [0, 2*p_i)
    ConvTranspose2d(k=4, s=2, p=1):  y_out = 2*y_in + ky - 1.
    """
    p_o = 2 * p_i
    So = 2 * S
    W = np.zeros((p_i * S * Ci, p_o * So * Co))
    for j_in in range(p_i):
        for j_out in range(p_o):
            t = p_i * t_stored + j_in          # true input row = p_i*m' + t
            ky = j_out + 1 - 2 * t
            if not (0 <= ky < 4):
                continue
            for x in range(S):
                for xo in range(So):
                    kx = xo + 1 - 2 * x
                    if not (0 <= kx < 4):
                        continue
                    W[j_in * S * Ci + x * Ci:j_in * S * Ci + (x + 1) * Ci,
                      j_out * So * Co + xo * Co:j_out * So * Co + (xo + 1) * Co] \
                        = w[:, :, ky, kx]
    return W


def prepare_decoder_params(P, channels, out_channels):
    """Fold the PyTorch parameters into matmul-ready matrices (host, once)."""
    C0, C1, C2, C3 = channels
    g = lambda a: np.asarray(a, dtype=np.float64)

    fc1_w, fc1_b = g(P["fc1_w"]), g(P["fc1_b"])
    fc2_w, fc2_b = g(P["fc2_w"]), g(P["fc2_b"])
    fc3_w, fc3_b = g(P["fc3_w"]), g(P["fc3_b"])
    dc1_w, dc1_b = g(P["dc1_w"]), g(P["dc1_b"])
    dc2_w, dc2_b = g(P["dc2_w"]), g(P["dc2_b"])
    dc3_w, dc3_b = g(P["dc3_w"]), g(P["dc3_b"])
    out_w = g(P["out_w"]).reshape(out_channels, C0)
    out_b = g(P["out_b"])

    d1 = fc1_w.shape[1]

    # ---- fc1 . deconv1 folded into one linear map z1 -> pre-ReLU x1 (8x8xC2)
    A = np.zeros((d1, 8, 8, C2))
    for k in range(d1):
        x0 = fc1_w[:, k].reshape(C3, 4, 4).transpose(1, 2, 0)
        A[k] = _deconv4x4s2p1_nhwc(x0, dc1_w)
    beta = (_deconv4x4s2p1_nhwc(fc1_b.reshape(C3, 4, 4).transpose(1, 2, 0), dc1_w)
            + dc1_b[None, None, :])
    wl1 = A.transpose(1, 0, 2, 3).reshape(8 * d1, 8 * C2)
    bl1 = np.zeros((12, 8 * C2))
    bl1[2:10] = beta.reshape(8, 8 * C2)          # rows 0,1,10,11 stay zero pad

    # ---- fc2 residual in the 8x8xC2 row layout (padded to 12 rows) ---------
    w, b = _fc_to_rows(fc2_w, fc2_b, C2, 8, 1)
    wl2 = w
    bl2 = np.zeros((12, 8 * C2))
    bl2[2:10] = b

    # ---- fc3 residual in the 16x16xC1 row-pair layout (padded to 10 rows) --
    w, b = _fc_to_rows(fc3_w, fc3_b, C1, 16, 2)
    wl3 = w
    bl3 = np.zeros((10, 2 * 16 * C1))
    bl3[1:9] = b

    # ---- deconv2: three stored-row-offset matrices -------------------------
    w2 = [_deconv_row_mat(dc2_w, 8, C2, C1, 1, t) for t in (-1, 0, 1)]
    b2 = np.tile(dc2_b, 2 * 16)[None, :]

    # ---- deconv3 . out_conv folded, same three-matrix decomposition --------
    w3f = np.einsum("icyx,oc->ioyx", dc3_w, out_w)
    b3f = out_w @ dc3_b + out_b
    w3 = [_deconv_row_mat(w3f, 16, C1, out_channels, 2, t) for t in (-1, 0, 1)]
    b3 = np.tile(b3f, 4 * 32)[None, :]

    bf = lambda a: jnp.asarray(a, dtype=jnp.bfloat16)
    f32 = lambda a: jnp.asarray(a, dtype=jnp.float32)
    return {
        "wl1": bf(wl1), "bl1": f32(bl1),
        "wl2": bf(wl2), "bl2": f32(bl2),
        "wl3": bf(wl3), "bl3": f32(bl3),
        "w2_lo": bf(w2[0]), "w2_mid": bf(w2[1]), "w2_hi": bf(w2[2]), "b2": f32(b2),
        "w3_lo": bf(w3[0]), "w3_mid": bf(w3[1]), "w3_hi": bf(w3[2]), "b3": f32(b3),
    }


# ---------------------------------------------------------------------------
# The fused Pallas kernel (one grid step == one batch element)
# ---------------------------------------------------------------------------
def _hvae_decoder_kernel(zz1_ref, zz2_ref, zz3_ref,
                         wl1_ref, bl1_ref, wl2_ref, bl2_ref, wl3_ref, bl3_ref,
                         w2l_ref, w2m_ref, w2h_ref, b2_ref,
                         w3l_ref, w3m_ref, w3h_ref, b3_ref,
                         out_ref):
    bf16 = jnp.bfloat16

    def mm(x, w_ref):
        return jnp.dot(x.astype(bf16), w_ref[...],
                       preferred_element_type=jnp.float32)

    zz1 = zz1_ref[0]          # [12, 8*d1] bf16 (block-diag latents, zero borders)
    zz2 = zz2_ref[0]          # [12, 8*d2]
    zz3 = zz3_ref[0]          # [10, 8*d3]

    # ---- stage 1: x1 = relu(deconv1(fc1(z1))) + fc2(z2) --------------------
    # g1p row i holds true image row (i - 2); rows 0,1,10,11 are zero padding.
    pre1 = mm(zz1, wl1_ref) + bl1_ref[...]            # [12, 8*C2] f32
    res1 = mm(zz2, wl2_ref) + bl2_ref[...]
    g1p = jnp.maximum(pre1, 0.0) + res1

    # ---- stage 2: x2 = relu(deconv2(x1)) + fc3(z3) --------------------------
    # pre2 row i holds true rows (2(i-1), 2(i-1)+1); rows 0,9 are padding.
    pre2 = (mm(g1p[0:10], w2l_ref) + mm(g1p[1:11], w2m_ref)
            + mm(g1p[2:12], w2h_ref) + b2_ref[...])   # [10, 2*16*C1] f32
    res2 = mm(zz3, wl3_ref) + bl3_ref[...]
    row = jax.lax.broadcasted_iota(jnp.int32, pre2.shape, 0)
    interior = jnp.logical_and(row >= 1, row <= 8)
    g2p = jnp.where(interior, jnp.maximum(pre2, 0.0) + res2, 0.0)

    # ---- stage 3: tanh(out_conv(deconv3(x2)))  (deconv3 + 1x1 conv folded) --
    pre3 = (mm(g2p[0:8], w3l_ref) + mm(g2p[1:9], w3m_ref)
            + mm(g2p[2:10], w3h_ref) + b3_ref[...])   # [8, 4*32*oc] f32
    out_ref[0] = jnp.tanh(pre3).astype(out_ref.dtype)


def hvae_decoder_forward(z1, z2, z3, W, *, out_channels):
    B = z1.shape[0]

    def expand(z, rows, lo):
        # block-diagonal latent expansion: row (lo+m) carries z at lanes
        # [m*d, (m+1)*d); other rows are zero (the vertical zero padding).
        d = z.shape[1]
        E = np.zeros((rows, 8), np.float32)
        E[lo:lo + 8] = np.eye(8, dtype=np.float32)
        zz = jnp.asarray(E)[None, :, :, None] * z[:, None, None, :]
        return zz.reshape(B, rows, 8 * d).astype(jnp.bfloat16)

    zz1 = expand(z1, 12, 2)
    zz2 = expand(z2, 12, 2)
    zz3 = expand(z3, 10, 1)

    weights = [W["wl1"], W["bl1"], W["wl2"], W["bl2"], W["wl3"], W["bl3"],
               W["w2_lo"], W["w2_mid"], W["w2_hi"], W["b2"],
               W["w3_lo"], W["w3_mid"], W["w3_hi"], W["b3"]]

    n_out = W["b3"].shape[1]                  # 4 * 32 * out_channels
    batched = lambda a: pl.BlockSpec((1,) + a.shape[1:], lambda b: (b, 0, 0))
    resident = lambda a: pl.BlockSpec(a.shape, lambda b: (0, 0))

    flops = 2 * B * (
        zz1.shape[1] * W["wl1"].shape[0] * W["wl1"].shape[1]
        + zz2.shape[1] * W["wl2"].shape[0] * W["wl2"].shape[1]
        + zz3.shape[1] * W["wl3"].shape[0] * W["wl3"].shape[1]
        + 3 * 10 * W["w2_mid"].shape[0] * W["w2_mid"].shape[1]
        + 3 * 8 * W["w3_mid"].shape[0] * W["w3_mid"].shape[1])
    bytes_accessed = (sum(a.size * a.dtype.itemsize for a in weights)
                      + sum(a.size * a.dtype.itemsize for a in (zz1, zz2, zz3))
                      + B * 8 * n_out * 4)

    g3 = pl.pallas_call(
        _hvae_decoder_kernel,
        grid=(B,),
        in_specs=[batched(zz1), batched(zz2), batched(zz3)]
                 + [resident(w) for w in weights],
        out_specs=pl.BlockSpec((1, 8, n_out), lambda b: (b, 0, 0)),
        out_shape=jax.ShapeDtypeStruct((B, 8, n_out), jnp.float32),
        compiler_params=pltpu.CompilerParams(
            dimension_semantics=("parallel",)),
        cost_estimate=pl.CostEstimate(
            flops=int(flops),
            transcendentals=int(B * 8 * n_out),
            bytes_accessed=int(bytes_accessed)),
    )(zz1, zz2, zz3, *weights)

    # de-group [B, 8, (4 rows x 32 cols x C)] -> NCHW [B, C, 32, 32]
    out = g3.reshape(B, 8, 4, 32, out_channels)
    out = out.transpose(0, 4, 1, 2, 3).reshape(B, out_channels, 32, 32)
    return out


# ---------------------------------------------------------------------------
# Pure-JAX NCHW reference (definition-based), for the correctness check
# ---------------------------------------------------------------------------
def _ref_linear(x, w, b):
    return x @ w.T + b


def _ref_deconv(x, w, b, s=2, p=1):
    B, Cin, H, Wd = x.shape
    Cout, k = w.shape[1], w.shape[2]
    full = jnp.zeros((B, Cout, (H - 1) * s + k, (Wd - 1) * s + k), x.dtype)
    for ky in range(k):
        for kx in range(k):
            contrib = jnp.einsum("bihw,io->bohw", x, w[:, :, ky, kx])
            full = full.at[:, :, ky:ky + (H - 1) * s + 1:s,
                                 kx:kx + (Wd - 1) * s + 1:s].add(contrib)
    return full[:, :, p:p + H * s, p:p + Wd * s] + b[None, :, None, None]


def ref_decoder(z1, z2, z3, P, channels, out_channels):
    B = z1.shape[0]
    C0, C1, C2, C3 = channels
    x0 = _ref_linear(z1, P["fc1_w"], P["fc1_b"]).reshape(B, C3, 4, 4)
    r2 = _ref_linear(z2, P["fc2_w"], P["fc2_b"]).reshape(B, C2, 8, 8)
    r3 = _ref_linear(z3, P["fc3_w"], P["fc3_b"]).reshape(B, C1, 16, 16)
    x1 = jnp.maximum(_ref_deconv(x0, P["dc1_w"], P["dc1_b"]), 0.0) + r2
    x2 = jnp.maximum(_ref_deconv(x1, P["dc2_w"], P["dc2_b"]), 0.0) + r3
    x3 = _ref_deconv(x2, P["dc3_w"], P["dc3_b"])
    out = jnp.einsum("bihw,oi->bohw", x3, P["out_w"].reshape(out_channels, C0))
    out = out + P["out_b"][None, :, None, None]
    return jnp.tanh(out)


# ---------------------------------------------------------------------------
if __name__ == "__main__":
    out_channels = 3
    channels = [8, 16, 32, 64]     # [C0, C1, C2, C3]
    latent_dims = [16, 8, 4]
    B = 2
    C0, C1, C2, C3 = channels

    key = jax.random.PRNGKey(0)
    keys = jax.random.split(key, 17)

    def init(k, shape, fan_in):
        return (jax.random.normal(k, shape, jnp.float32) /
                jnp.sqrt(jnp.float32(fan_in))).astype(jnp.float32)

    P = {
        "fc1_w": init(keys[0], (C3 * 16, latent_dims[0]), latent_dims[0]),
        "fc1_b": init(keys[1], (C3 * 16,), latent_dims[0]),
        "fc2_w": init(keys[2], (C2 * 64, latent_dims[1]), latent_dims[1]),
        "fc2_b": init(keys[3], (C2 * 64,), latent_dims[1]),
        "fc3_w": init(keys[4], (C1 * 256, latent_dims[2]), latent_dims[2]),
        "fc3_b": init(keys[5], (C1 * 256,), latent_dims[2]),
        "dc1_w": init(keys[6], (C3, C2, 4, 4), C3 * 16),
        "dc1_b": init(keys[7], (C2,), C3 * 16),
        "dc2_w": init(keys[8], (C2, C1, 4, 4), C2 * 16),
        "dc2_b": init(keys[9], (C1,), C2 * 16),
        "dc3_w": init(keys[10], (C1, C0, 4, 4), C1 * 16),
        "dc3_b": init(keys[11], (C0,), C1 * 16),
        "out_w": init(keys[12], (out_channels, C0, 1, 1), C0),
        "out_b": init(keys[13], (out_channels,), C0),
    }

    z1 = jax.random.normal(keys[14], (B, latent_dims[0]), jnp.float32)
    z2 = jax.random.normal(keys[15], (B, latent_dims[1]), jnp.float32)
    z3 = jax.random.normal(keys[16], (B, latent_dims[2]), jnp.float32)

    # One-time host-side weight folding (kept out of the jitted forward).
    W = prepare_decoder_params(P, channels, out_channels)

    fwd = jax.jit(functools.partial(hvae_decoder_forward,
                                    out_channels=out_channels))
    out = fwd(z1, z2, z3, W)
    jax.block_until_ready(out)

    ref = ref_decoder(z1, z2, z3, P, channels, out_channels)
    assert out.shape == (B, out_channels, 32, 32), out.shape
    # bf16 weights + MXU accumulation vs. f32 reference -> loose tolerance.
    err = float(jnp.max(jnp.abs(out - ref)))
    assert err < 6e-2, f"mismatch vs reference: max abs err = {err}"

    print("KERNEL_OK")
</pallas_src>

<mosaic_0001>
module attributes {stable_mosaic.version = 11 : i64} {
  func.func @_hvae_decoder_kernel(%arg0: i32, %arg1: memref<1x12x128xbf16, #tpu.memory_space<vmem>>, %arg2: memref<1x12x64xbf16, #tpu.memory_space<vmem>>, %arg3: memref<1x10x32xbf16, #tpu.memory_space<vmem>>, %arg4: memref<128x256xbf16, #tpu.memory_space<vmem>>, %arg5: memref<12x256xf32, #tpu.memory_space<vmem>>, %arg6: memref<64x256xbf16, #tpu.memory_space<vmem>>, %arg7: memref<12x256xf32, #tpu.memory_space<vmem>>, %arg8: memref<32x512xbf16, #tpu.memory_space<vmem>>, %arg9: memref<10x512xf32, #tpu.memory_space<vmem>>, %arg10: memref<256x512xbf16, #tpu.memory_space<vmem>>, %arg11: memref<256x512xbf16, #tpu.memory_space<vmem>>, %arg12: memref<256x512xbf16, #tpu.memory_space<vmem>>, %arg13: memref<1x512xf32, #tpu.memory_space<vmem>>, %arg14: memref<512x384xbf16, #tpu.memory_space<vmem>>, %arg15: memref<512x384xbf16, #tpu.memory_space<vmem>>, %arg16: memref<512x384xbf16, #tpu.memory_space<vmem>>, %arg17: memref<1x384xf32, #tpu.memory_space<vmem>>, %arg18: memref<1x8x384xf32, #tpu.memory_space<vmem>>) attributes {dimension_semantics = [#tpu.dimension_semantics<parallel>], iteration_bounds = array<i64: 2>, scalar_prefetch = 0 : i64, scratch_operands = 0 : i64, tpu.core_type = #tpu.core_type<tc>, window_params = [{transform_indices = @transform_0, window_bounds = array<i64: 1, 12, 128>}, {transform_indices = @transform_1, window_bounds = array<i64: 1, 12, 64>}, {transform_indices = @transform_2, window_bounds = array<i64: 1, 10, 32>}, {pipeline_mode = #tpu.pipeline_mode<synchronous>, transform_indices = @transform_3, window_bounds = array<i64: 128, 256>}, {pipeline_mode = #tpu.pipeline_mode<synchronous>, transform_indices = @transform_4, window_bounds = array<i64: 12, 256>}, {pipeline_mode = #tpu.pipeline_mode<synchronous>, transform_indices = @transform_5, window_bounds = array<i64: 64, 256>}, {pipeline_mode = #tpu.pipeline_mode<synchronous>, transform_indices = @transform_6, window_bounds = array<i64: 12, 256>}, {pipeline_mode = #tpu.pipeline_mode<synchronous>, transform_indices = @transform_7, window_bounds = array<i64: 32, 512>}, {pipeline_mode = #tpu.pipeline_mode<synchronous>, transform_indices = @transform_8, window_bounds = array<i64: 10, 512>}, {pipeline_mode = #tpu.pipeline_mode<synchronous>, transform_indices = @transform_9, window_bounds = array<i64: 256, 512>}, {pipeline_mode = #tpu.pipeline_mode<synchronous>, transform_indices = @transform_10, window_bounds = array<i64: 256, 512>}, {pipeline_mode = #tpu.pipeline_mode<synchronous>, transform_indices = @transform_11, window_bounds = array<i64: 256, 512>}, {pipeline_mode = #tpu.pipeline_mode<synchronous>, transform_indices = @transform_12, window_bounds = array<i64: 1, 512>}, {pipeline_mode = #tpu.pipeline_mode<synchronous>, transform_indices = @transform_13, window_bounds = array<i64: 512, 384>}, {pipeline_mode = #tpu.pipeline_mode<synchronous>, transform_indices = @transform_14, window_bounds = array<i64: 512, 384>}, {pipeline_mode = #tpu.pipeline_mode<synchronous>, transform_indices = @transform_15, window_bounds = array<i64: 512, 384>}, {pipeline_mode = #tpu.pipeline_mode<synchronous>, transform_indices = @transform_16, window_bounds = array<i64: 1, 384>}, {transform_indices = @transform_17, window_bounds = array<i64: 1, 8, 384>}]} {
    %c0 = arith.constant 0 : index
    %c0_0 = arith.constant 0 : index
    %c0_1 = arith.constant 0 : index
    %0 = vector.load %arg1[%c0, %c0_0, %c0_1] : memref<1x12x128xbf16, #tpu.memory_space<vmem>>, vector<1x12x128xbf16>
    %1 = vector.shape_cast %0 : vector<1x12x128xbf16> to vector<12x128xbf16>
    %c0_2 = arith.constant 0 : index
    %c0_3 = arith.constant 0 : index
    %c0_4 = arith.constant 0 : index
    %2 = vector.load %arg2[%c0_2, %c0_3, %c0_4] : memref<1x12x64xbf16, #tpu.memory_space<vmem>>, vector<1x12x64xbf16>
    %3 = vector.shape_cast %2 : vector<1x12x64xbf16> to vector<12x64xbf16>
    %c0_5 = arith.constant 0 : index
    %c0_6 = arith.constant 0 : index
    %c0_7 = arith.constant 0 : index
    %4 = vector.load %arg3[%c0_5, %c0_6, %c0_7] : memref<1x10x32xbf16, #tpu.memory_space<vmem>>, vector<1x10x32xbf16>
    %5 = vector.shape_cast %4 : vector<1x10x32xbf16> to vector<10x32xbf16>
    %c0_8 = arith.constant 0 : index
    %c0_9 = arith.constant 0 : index
    %6 = vector.load %arg4[%c0_8, %c0_9] : memref<128x256xbf16, #tpu.memory_space<vmem>>, vector<128x256xbf16>
    %cst = arith.constant dense<0.000000e+00> : vector<12x256xf32>
    %7 = tpu.matmul %1, %6, %cst {dimension_numbers = #tpu.dot_dimension_numbers<[1], [0], [0], [1], [0, 0, 1, 1], [], []>} : vector<12x128xbf16>, vector<128x256xbf16>, vector<12x256xf32> -> vector<12x256xf32>
    %c0_10 = arith.constant 0 : index
    %c0_11 = arith.constant 0 : index
    %8 = vector.load %arg5[%c0_10, %c0_11] : memref<12x256xf32, #tpu.memory_space<vmem>>, vector<12x256xf32>
    %9 = arith.addf %7, %8 : vector<12x256xf32>
    %c0_12 = arith.constant 0 : index
    %c0_13 = arith.constant 0 : index
    %10 = vector.load %arg6[%c0_12, %c0_13] : memref<64x256xbf16, #tpu.memory_space<vmem>>, vector<64x256xbf16>
    %cst_14 = arith.constant dense<0.000000e+00> : vector<12x256xf32>
    %11 = tpu.matmul %3, %10, %cst_14 {dimension_numbers = #tpu.dot_dimension_numbers<[1], [0], [0], [1], [0, 0, 1, 1], [], []>} : vector<12x64xbf16>, vector<64x256xbf16>, vector<12x256xf32> -> vector<12x256xf32>
    %c0_15 = arith.constant 0 : index
    %c0_16 = arith.constant 0 : index
    %12 = vector.load %arg7[%c0_15, %c0_16] : memref<12x256xf32, #tpu.memory_space<vmem>>, vector<12x256xf32>
    %13 = arith.addf %11, %12 : vector<12x256xf32>
    %cst_17 = arith.constant 0.000000e+00 : f32
    %14 = vector.broadcast %cst_17 : f32 to vector<12x256xf32>
    %15 = arith.maximumf %9, %14 : vector<12x256xf32>
    %16 = arith.addf %15, %13 : vector<12x256xf32>
    %17 = vector.extract_strided_slice %16 {offsets = [0, 0], sizes = [10, 256], strides = [1, 1]} : vector<12x256xf32> to vector<10x256xf32>
    %18 = arith.truncf %17 : vector<10x256xf32> to vector<10x256xbf16>
    %c0_18 = arith.constant 0 : index
    %c0_19 = arith.constant 0 : index
    %19 = vector.load %arg10[%c0_18, %c0_19] : memref<256x512xbf16, #tpu.memory_space<vmem>>, vector<256x512xbf16>
    %cst_20 = arith.constant dense<0.000000e+00> : vector<10x512xf32>
    %20 = tpu.matmul %18, %19, %cst_20 {dimension_numbers = #tpu.dot_dimension_numbers<[1], [0], [0], [1], [0, 0, 1, 1], [], []>} : vector<10x256xbf16>, vector<256x512xbf16>, vector<10x512xf32> -> vector<10x512xf32>
    %21 = vector.extract_strided_slice %16 {offsets = [1, 0], sizes = [10, 256], strides = [1, 1]} : vector<12x256xf32> to vector<10x256xf32>
    %22 = arith.truncf %21 : vector<10x256xf32> to vector<10x256xbf16>
    %c0_21 = arith.constant 0 : index
    %c0_22 = arith.constant 0 : index
    %23 = vector.load %arg11[%c0_21, %c0_22] : memref<256x512xbf16, #tpu.memory_space<vmem>>, vector<256x512xbf16>
    %cst_23 = arith.constant dense<0.000000e+00> : vector<10x512xf32>
    %24 = tpu.matmul %22, %23, %cst_23 {dimension_numbers = #tpu.dot_dimension_numbers<[1], [0], [0], [1], [0, 0, 1, 1], [], []>} : vector<10x256xbf16>, vector<256x512xbf16>, vector<10x512xf32> -> vector<10x512xf32>
    %25 = arith.addf %20, %24 : vector<10x512xf32>
    %26 = vector.extract_strided_slice %16 {offsets = [2, 0], sizes = [10, 256], strides = [1, 1]} : vector<12x256xf32> to vector<10x256xf32>
    %27 = arith.truncf %26 : vector<10x256xf32> to vector<10x256xbf16>
    %c0_24 = arith.constant 0 : index
    %c0_25 = arith.constant 0 : index
    %28 = vector.load %arg12[%c0_24, %c0_25] : memref<256x512xbf16, #tpu.memory_space<vmem>>, vector<256x512xbf16>
    %cst_26 = arith.constant dense<0.000000e+00> : vector<10x512xf32>
    %29 = tpu.matmul %27, %28, %cst_26 {dimension_numbers = #tpu.dot_dimension_numbers<[1], [0], [0], [1], [0, 0, 1, 1], [], []>} : vector<10x256xbf16>, vector<256x512xbf16>, vector<10x512xf32> -> vector<10x512xf32>
    %30 = arith.addf %25, %29 : vector<10x512xf32>
    %c0_27 = arith.constant 0 : index
    %c0_28 = arith.constant 0 : index
    %31 = vector.load %arg13[%c0_27, %c0_28] : memref<1x512xf32, #tpu.memory_space<vmem>>, vector<1x512xf32>
    %32 = vector.broadcast %31 : vector<1x512xf32> to vector<10x512xf32>
    %33 = arith.addf %30, %32 : vector<10x512xf32>
    %c0_29 = arith.constant 0 : index
    %c0_30 = arith.constant 0 : index
    %34 = vector.load %arg8[%c0_29, %c0_30] : memref<32x512xbf16, #tpu.memory_space<vmem>>, vector<32x512xbf16>
    %cst_31 = arith.constant dense<0.000000e+00> : vector<10x512xf32>
    %35 = tpu.matmul %5, %34, %cst_31 {dimension_numbers = #tpu.dot_dimension_numbers<[1], [0], [0], [1], [0, 0, 1, 1], [], []>} : vector<10x32xbf16>, vector<32x512xbf16>, vector<10x512xf32> -> vector<10x512xf32>
    %c0_32 = arith.constant 0 : index
    %c0_33 = arith.constant 0 : index
    %36 = vector.load %arg9[%c0_32, %c0_33] : memref<10x512xf32, #tpu.memory_space<vmem>>, vector<10x512xf32>
    %37 = arith.addf %35, %36 : vector<10x512xf32>
    %38 = tpu.iota {dimensions = array<i32: 0>} : vector<10x512xi32>
    %c1_i32 = arith.constant 1 : i32
    %39 = vector.broadcast %c1_i32 : i32 to vector<10x512xi32>
    %40 = arith.cmpi sge, %38, %39 : vector<10x512xi32>
    %c8_i32 = arith.constant 8 : i32
    %41 = vector.broadcast %c8_i32 : i32 to vector<10x512xi32>
    %42 = arith.cmpi sle, %38, %41 : vector<10x512xi32>
    %43 = arith.andi %40, %42 : vector<10x512xi1>
    %cst_34 = arith.constant 0.000000e+00 : f32
    %44 = vector.broadcast %cst_34 : f32 to vector<10x512xf32>
    %45 = arith.maximumf %33, %44 : vector<10x512xf32>
    %46 = arith.addf %45, %37 : vector<10x512xf32>
    %cst_35 = arith.constant 0.000000e+00 : f32
    %47 = vector.broadcast %cst_35 : f32 to vector<10x512xf32>
    %48 = arith.select %43, %46, %47 : vector<10x512xi1>, vector<10x512xf32>
    %49 = vector.extract_strided_slice %48 {offsets = [0, 0], sizes = [8, 512], strides = [1, 1]} : vector<10x512xf32> to vector<8x512xf32>
    %50 = arith.truncf %49 : vector<8x512xf32> to vector<8x512xbf16>
    %c0_36 = arith.constant 0 : index
    %c0_37 = arith.constant 0 : index
    %51 = vector.load %arg14[%c0_36, %c0_37] : memref<512x384xbf16, #tpu.memory_space<vmem>>, vector<512x384xbf16>
    %cst_38 = arith.constant dense<0.000000e+00> : vector<8x384xf32>
    %52 = tpu.matmul %50, %51, %cst_38 {dimension_numbers = #tpu.dot_dimension_numbers<[1], [0], [0], [1], [0, 0, 1, 1], [], []>} : vector<8x512xbf16>, vector<512x384xbf16>, vector<8x384xf32> -> vector<8x384xf32>
    %53 = vector.extract_strided_slice %48 {offsets = [1, 0], sizes = [8, 512], strides = [1, 1]} : vector<10x512xf32> to vector<8x512xf32>
    %54 = arith.truncf %53 : vector<8x512xf32> to vector<8x512xbf16>
    %c0_39 = arith.constant 0 : index
    %c0_40 = arith.constant 0 : index
    %55 = vector.load %arg15[%c0_39, %c0_40] : memref<512x384xbf16, #tpu.memory_space<vmem>>, vector<512x384xbf16>
    %cst_41 = arith.constant dense<0.000000e+00> : vector<8x384xf32>
    %56 = tpu.matmul %54, %55, %cst_41 {dimension_numbers = #tpu.dot_dimension_numbers<[1], [0], [0], [1], [0, 0, 1, 1], [], []>} : vector<8x512xbf16>, vector<512x384xbf16>, vector<8x384xf32> -> vector<8x384xf32>
    %57 = arith.addf %52, %56 : vector<8x384xf32>
    %58 = vector.extract_strided_slice %48 {offsets = [2, 0], sizes = [8, 512], strides = [1, 1]} : vector<10x512xf32> to vector<8x512xf32>
    %59 = arith.truncf %58 : vector<8x512xf32> to vector<8x512xbf16>
    %c0_42 = arith.constant 0 : index
    %c0_43 = arith.constant 0 : index
    %60 = vector.load %arg16[%c0_42, %c0_43] : memref<512x384xbf16, #tpu.memory_space<vmem>>, vector<512x384xbf16>
    %cst_44 = arith.constant dense<0.000000e+00> : vector<8x384xf32>
    %61 = tpu.matmul %59, %60, %cst_44 {dimension_numbers = #tpu.dot_dimension_numbers<[1], [0], [0], [1], [0, 0, 1, 1], [], []>} : vector<8x512xbf16>, vector<512x384xbf16>, vector<8x384xf32> -> vector<8x384xf32>
    %62 = arith.addf %57, %61 : vector<8x384xf32>
    %c0_45 = arith.constant 0 : index
    %c0_46 = arith.constant 0 : index
    %63 = vector.load %arg17[%c0_45, %c0_46] : memref<1x384xf32, #tpu.memory_space<vmem>>, vector<1x384xf32>
    %64 = vector.broadcast %63 : vector<1x384xf32> to vector<8x384xf32>
    %65 = arith.addf %62, %64 : vector<8x384xf32>
    %66 = math.tanh %65 : vector<8x384xf32>
    %c0_47 = arith.constant 0 : index
    %c0_48 = arith.constant 0 : index
    %c0_49 = arith.constant 0 : index
    %67 = vector.load %arg18[%c0_47, %c0_48, %c0_49] : memref<1x8x384xf32, #tpu.memory_space<vmem>>, vector<1x8x384xf32>
    %68 = vector.shape_cast %67 : vector<1x8x384xf32> to vector<8x384xf32>
    %69 = vector.shape_cast %66 : vector<8x384xf32> to vector<1x8x384xf32>
    tpu.vector_store %arg18[%c0_47, %c0_48, %c0_49], %69 {strides = array<i32>} : memref<1x8x384xf32, #tpu.memory_space<vmem>>, vector<1x8x384xf32>,
    return
  }
  func.func @transform_0(%arg0: i32) -> (i32, i32, i32) {
    %c0_i32 = arith.constant 0 : i32
    %c0_i32_0 = arith.constant 0 : i32
    %c0_i32_1 = arith.constant 0 : i32
    return %arg0, %c0_i32, %c0_i32_0 : i32, i32, i32
  }
  func.func @transform_1(%arg0: i32) -> (i32, i32, i32) {
    %c0_i32 = arith.constant 0 : i32
    %c0_i32_0 = arith.constant 0 : i32
    %c0_i32_1 = arith.constant 0 : i32
    return %arg0, %c0_i32, %c0_i32_0 : i32, i32, i32
  }
  func.func @transform_2(%arg0: i32) -> (i32, i32, i32) {
    %c0_i32 = arith.constant 0 : i32
    %c0_i32_0 = arith.constant 0 : i32
    %c0_i32_1 = arith.constant 0 : i32
    return %arg0, %c0_i32, %c0_i32_0 : i32, i32, i32
  }
  func.func @transform_3(%arg0: i32) -> (i32, i32) {
    %c0_i32 = arith.constant 0 : i32
    %c0_i32_0 = arith.constant 0 : i32
    %c0_i32_1 = arith.constant 0 : i32
    return %c0_i32, %c0_i32_0 : i32, i32
  }
  func.func @transform_4(%arg0: i32) -> (i32, i32) {
    %c0_i32 = arith.constant 0 : i32
    %c0_i32_0 = arith.constant 0 : i32
    %c0_i32_1 = arith.constant 0 : i32
    return %c0_i32, %c0_i32_0 : i32, i32
  }
  func.func @transform_5(%arg0: i32) -> (i32, i32) {
    %c0_i32 = arith.constant 0 : i32
    %c0_i32_0 = arith.constant 0 : i32
    %c0_i32_1 = arith.constant 0 : i32
    return %c0_i32, %c0_i32_0 : i32, i32
  }
  func.func @transform_6(%arg0: i32) -> (i32, i32) {
    %c0_i32 = arith.constant 0 : i32
    %c0_i32_0 = arith.constant 0 : i32
    %c0_i32_1 = arith.constant 0 : i32
    return %c0_i32, %c0_i32_0 : i32, i32
  }
  func.func @transform_7(%arg0: i32) -> (i32, i32) {
    %c0_i32 = arith.constant 0 : i32
    %c0_i32_0 = arith.constant 0 : i32
    %c0_i32_1 = arith.constant 0 : i32
    return %c0_i32, %c0_i32_0 : i32, i32
  }
  func.func @transform_8(%arg0: i32) -> (i32, i32) {
    %c0_i32 = arith.constant 0 : i32
    %c0_i32_0 = arith.constant 0 : i32
    %c0_i32_1 = arith.constant 0 : i32
    return %c0_i32, %c0_i32_0 : i32, i32
  }
  func.func @transform_9(%arg0: i32) -> (i32, i32) {
    %c0_i32 = arith.constant 0 : i32
    %c0_i32_0 = arith.constant 0 : i32
    %c0_i32_1 = arith.constant 0 : i32
    return %c0_i32, %c0_i32_0 : i32, i32
  }
  func.func @transform_10(%arg0: i32) -> (i32, i32) {
    %c0_i32 = arith.constant 0 : i32
    %c0_i32_0 = arith.constant 0 : i32
    %c0_i32_1 = arith.constant 0 : i32
    return %c0_i32, %c0_i32_0 : i32, i32
  }
  func.func @transform_11(%arg0: i32) -> (i32, i32) {
    %c0_i32 = arith.constant 0 : i32
    %c0_i32_0 = arith.constant 0 : i32
    %c0_i32_1 = arith.constant 0 : i32
    return %c0_i32, %c0_i32_0 : i32, i32
  }
  func.func @transform_12(%arg0: i32) -> (i32, i32) {
    %c0_i32 = arith.constant 0 : i32
    %c0_i32_0 = arith.constant 0 : i32
    %c0_i32_1 = arith.constant 0 : i32
    return %c0_i32, %c0_i32_0 : i32, i32
  }
  func.func @transform_13(%arg0: i32) -> (i32, i32) {
    %c0_i32 = arith.constant 0 : i32
    %c0_i32_0 = arith.constant 0 : i32
    %c0_i32_1 = arith.constant 0 : i32
    return %c0_i32, %c0_i32_0 : i32, i32
  }
  func.func @transform_14(%arg0: i32) -> (i32, i32) {
    %c0_i32 = arith.constant 0 : i32
    %c0_i32_0 = arith.constant 0 : i32
    %c0_i32_1 = arith.constant 0 : i32
    return %c0_i32, %c0_i32_0 : i32, i32
  }
  func.func @transform_15(%arg0: i32) -> (i32, i32) {
    %c0_i32 = arith.constant 0 : i32
    %c0_i32_0 = arith.constant 0 : i32
    %c0_i32_1 = arith.constant 0 : i32
    return %c0_i32, %c0_i32_0 : i32, i32
  }
  func.func @transform_16(%arg0: i32) -> (i32, i32) {
    %c0_i32 = arith.constant 0 : i32
    %c0_i32_0 = arith.constant 0 : i32
    %c0_i32_1 = arith.constant 0 : i32
    return %c0_i32, %c0_i32_0 : i32, i32
  }
  func.func @transform_17(%arg0: i32) -> (i32, i32, i32) {
    %c0_i32 = arith.constant 0 : i32
    %c0_i32_0 = arith.constant 0 : i32
    %c0_i32_1 = arith.constant 0 : i32
    return %arg0, %c0_i32, %c0_i32_0 : i32, i32, i32
  }
}

</mosaic_0001>

<llo_original>
// kernel: hvae_decoder_forward.1
$region0: #{hvae_decoder_forward.1}
  #allocation0 [shape = 'u32[]', space=smem, size = 0x4, offset = 0x4, fixed_abs, tag = 'smem constant byte address 0x4 - core index']
  #allocation1 [shape = 'u32[72,128]{1,0:T(1,128)}', space=vmem, size = 0x9000, scoped, tag = 'internal scratch']
  %s0 = inlined_call_operand.vmem [shape: bf16[2,12,128], index: 0, kind: input, shape index: {}]
  %s1 = inlined_call_operand.vmem [shape: bf16[2,12,64], index: 1, kind: input, shape index: {}]
  %s2 = inlined_call_operand.vmem [shape: bf16[2,10,32], index: 2, kind: input, shape index: {}]
  %s3 = inlined_call_operand.vmem [shape: bf16[128,256], index: 3, kind: input, shape index: {}]
  %s4 = inlined_call_operand.vmem [shape: f32[12,256], index: 4, kind: input, shape index: {}]
  %s5 = inlined_call_operand.vmem [shape: bf16[64,256], index: 5, kind: input, shape index: {}]
  %s6 = inlined_call_operand.hbm [shape: f32[12,256], index: 6, kind: input, shape index: {}]
  %s7 = inlined_call_operand.hbm [shape: bf16[32,512], index: 7, kind: input, shape index: {}]
  %s8 = inlined_call_operand.hbm [shape: f32[10,512], index: 8, kind: input, shape index: {}]
  %s9 = inlined_call_operand.vmem [shape: bf16[256,512], index: 9, kind: input, shape index: {}]
  %s10 = inlined_call_operand.hbm [shape: bf16[256,512], index: 10, kind: input, shape index: {}]
  %s11 = inlined_call_operand.hbm [shape: bf16[256,512], index: 11, kind: input, shape index: {}]
  %s12 = inlined_call_operand.hbm [shape: f32[1,512], index: 12, kind: input, shape index: {}]
  %s13 = inlined_call_operand.hbm [shape: bf16[512,384], index: 13, kind: input, shape index: {}]
  %s14 = inlined_call_operand.hbm [shape: bf16[512,384], index: 14, kind: input, shape index: {}]
  %s15 = inlined_call_operand.hbm [shape: bf16[512,384], index: 15, kind: input, shape index: {}]
  %s16 = inlined_call_operand.hbm [shape: f32[1,384], index: 16, kind: input, shape index: {}]
  %s17 = inlined_call_operand.vmem [shape: f32[2,8,384], index: 17, kind: output, shape index: {}]
  %s18 = sld [smem:[#allocation0]]
  $region141: #{hvae_decoder_forward.1} parent=0
    _
  %s20 = ssub.s32 1, %s18
  %s21 = scalar_select 0, %s20, %s18
  $region1: #{hvae_decoder_forward.1} parent=0
    #allocation2 [shape = 'u8[16384]{0}', space=vmem, size = 0x4000, scoped, tag = 'input window, operand 6, single buffered']
    #allocation3 [shape = 's32[2]{0}', space=sflag, size = 0x8, scoped, tag = 'scoped memory for hvae_decoder_forward.1']
    #allocation4 [shape = 'u8[32768]{0}', space=vmem, size = 0x8000, scoped, tag = 'input window, operand 7, single buffered']
    #allocation5 [shape = 's32[1]{0}', space=sflag, size = 0x4, scoped, tag = 'scoped memory for hvae_decoder_forward.1']
    #allocation6 [shape = 'u8[32768]{0}', space=vmem, size = 0x8000, scoped, tag = 'input window, operand 8, single buffered']
    #allocation7 [shape = 'u8[262144]{0}', space=vmem, size = 0x40000, scoped, tag = 'input window, operand 10, single buffered']
    #allocation8 [shape = 's32[1]{0}', space=sflag, size = 0x4, scoped, tag = 'scoped memory for hvae_decoder_forward.1']
    #allocation9 [shape = 'u8[262144]{0}', space=vmem, size = 0x40000, scoped, tag = 'input window, operand 11, single buffered']
    #allocation10 [shape = 'u8[2048]{0}', space=vmem, size = 0x800, scoped, tag = 'input window, operand 12, single buffered']
    #allocation11 [shape = 's32[1]{0}', space=sflag, size = 0x4, scoped, tag = 'scoped memory for hvae_decoder_forward.1']
    #allocation12 [shape = 'u8[393216]{0}', space=vmem, size = 0x60000, scoped, tag = 'input window, operand 13, single buffered']
    #allocation13 [shape = 'u8[393216]{0}', space=vmem, size = 0x60000, scoped, tag = 'input window, operand 14, single buffered']
    #allocation14 [shape = 's32[1]{0}', space=sflag, size = 0x4, scoped, tag = 'scoped memory for hvae_decoder_forward.1']
    #allocation15 [shape = 'u8[393216]{0}', space=vmem, size = 0x60000, scoped, tag = 'input window, operand 15, single buffered']
    #allocation16 [shape = 'u8[1536]{0}', space=vmem, size = 0x800, scoped, tag = 'input window, operand 16, single buffered']
    #allocation17 [shape = 's32[1]{0}', space=sflag, size = 0x4, scoped, tag = 'scoped memory for hvae_decoder_forward.1']
    %22 = vsyncpa [#allocation3], 0
    %23 = vsyncpa [#allocation5], 0
    %24 = vsyncpa [#allocation8], 0
    %25 = vsyncpa [#allocation11], 0
    %26 = vsyncpa [#allocation14], 0
    %27 = vsyncpa [#allocation17], 0
    loop: start=0, step=1, limit=4
    $region2: #{hvae_decoder_forward.1} parent=1 // loop_pre_header
      _
    $region3: #{hvae_decoder_forward.1} parent=1 // loop_header
      %s29 = sphi 0, %s33
      %p30 = scmp.ge.s32.totalorder %s29, 4
      %s39 = sphi 0, %s41
      %s42 = sphi 0, %s39
      %s43 = sphi 0, %s42
      %s59 = sphi 0, %s43
      %s65 = sphi 0, %s67
      %s68 = sphi 0, %s65
      %s69 = sphi 0, %s68
      %s85 = sphi 0, %s69
      %s91 = sphi 0, %s93
      %s94 = sphi 0, %s91
      %s95 = sphi 0, %s94
      %s111 = sphi 0, %s95
      %s115 = sphi 0, %s115
      %s117 = sphi 0, %s115
      %s118 = sphi 0, %s117
      %s132 = sphi 0, %s118
      %s136 = sphi 0, %s136
      %s138 = sphi 0, %s136
      %s139 = sphi 0, %s138
      %s153 = sphi 0, %s139
      %s157 = sphi 0, %s157
      %s159 = sphi 0, %s157
      %s160 = sphi 0, %s159
      %s174 = sphi 0, %s160
      %s178 = sphi 0, %s178
      %s180 = sphi 0, %s178
      %s181 = sphi 0, %s180
      %s195 = sphi 0, %s181
      %s199 = sphi 0, %s199
      %s201 = sphi 0, %s199
      %s202 = sphi 0, %s201
      %s216 = sphi 0, %s202
      %s220 = sphi 0, %s220
      %s222 = sphi 0, %s220
      %s223 = sphi 0, %s222
      %s237 = sphi 0, %s223
      %s241 = sphi 0, %s241
      %s243 = sphi 0, %s241
      %s244 = sphi 0, %s243
      %s258 = sphi 0, %s244
      %s262 = sphi 0, %s262
      %s264 = sphi 0, %s262
      %s265 = sphi 0, %s264
      %s279 = sphi 0, %s265
      %s283 = sphi 0, %s283
      %s285 = sphi 0, %s283
      %s286 = sphi 0, %s285
      %s300 = sphi 0, %s286
      %s304 = sphi 0, %s304
      %s306 = sphi 0, %s304
      %s307 = sphi 0, %s306
      %s321 = sphi 0, %s307
      %s325 = sphi 0, %s325
      %s327 = sphi 0, %s325
      %s328 = sphi 0, %s327
      %s342 = sphi 0, %s328
      %s346 = sphi 0, %s346
      %s348 = sphi 0, %s346
      %s349 = sphi 0, %s348
      %s363 = sphi 0, %s349
      %s367 = sphi 0, %s367
      %s369 = sphi 0, %s367
      %s370 = sphi 0, %s369
      %s384 = sphi 0, %s370
      %s388 = sphi 0, %s388
      %s390 = sphi 0, %s388
      %s391 = sphi 0, %s390
      %s405 = sphi 0, %s391
      %s411 = sphi 0, %s413
      %s414 = sphi 0, %s411
      %s415 = sphi 0, %s414
      %s431 = sphi 0, %s415
    $region4: #{hvae_decoder_forward.1} parent=1 // loop_header_branch
      %32 = sbr.rel (%p30) target = $region8
    $region5: #{hvae_decoder_forward.1} parent=1 // loop_body
      %s34 = ssub.s32 %s29, 1
      %s35 = ssub.s32 %s29, 2
      %s36 = sadd.s32 %s29, 1
      %s37 = ssub.s32 %s29, %s36
      %p38 = scmp.eq.s32.totalorder %s37, 0
      %s40 = sadd.s32 %s39, 1
      %s41 = scalar_select %p38, %s39, %s40
      %p44 = pneg %p38
      %p45 = scmp.eq.s32.totalorder %s29, 1
      %p46 = por %p44, %p45
      %p47 = scmp.ne.s32.totalorder %s39, %s42
      %p48 = scmp.eq.s32.totalorder %s29, 0
      %p49 = por %p47, %p48
      %p50 = scmp.ne.s32.totalorder %s39, %s42
      %p51 = scmp.eq.s32.totalorder %s34, 1
      %p52 = por %p50, %p51
      %p53 = scmp.ne.s32.totalorder %s42, %s43
      %p54 = scmp.eq.s32.totalorder %s34, 0
      %p55 = por %p53, %p54
      %p56 = scmp.ne.s32.totalorder %s42, %s43
      %p57 = scmp.eq.s32.totalorder %s35, 1
      %p58 = por %p56, %p57
      %p60 = scmp.ne.s32.totalorder %s43, %s59
      %p61 = scmp.eq.s32.totalorder %s35, 0
      %p62 = por %p60, %p61
      %s63 = ssub.s32 %s29, %s36
      %p64 = scmp.eq.s32.totalorder %s63, 0
      %s66 = sadd.s32 %s65, 1
      %s67 = scalar_select %p64, %s65, %s66
      %p70 = pneg %p64
      %p71 = scmp.eq.s32.totalorder %s29, 1
      %p72 = por %p70, %p71
      %p73 = scmp.ne.s32.totalorder %s65, %s68
      %p74 = scmp.eq.s32.totalorder %s29, 0
      %p75 = por %p73, %p74
      %p76 = scmp.ne.s32.totalorder %s65, %s68
      %p77 = scmp.eq.s32.totalorder %s34, 1
      %p78 = por %p76, %p77
      %p79 = scmp.ne.s32.totalorder %s68, %s69
      %p80 = scmp.eq.s32.totalorder %s34, 0
      %p81 = por %p79, %p80
      %p82 = scmp.ne.s32.totalorder %s68, %s69
      %p83 = scmp.eq.s32.totalorder %s35, 1
      %p84 = por %p82, %p83
      %p86 = scmp.ne.s32.totalorder %s69, %s85
      %p87 = scmp.eq.s32.totalorder %s35, 0
      %p88 = por %p86, %p87
      %s89 = ssub.s32 %s29, %s36
      %p90 = scmp.eq.s32.totalorder %s89, 0
      %s92 = sadd.s32 %s91, 1
      %s93 = scalar_select %p90, %s91, %s92
      %p96 = pneg %p90
      %p97 = scmp.eq.s32.totalorder %s29, 1
      %p98 = por %p96, %p97
      %p99 = scmp.ne.s32.totalorder %s91, %s94
      %p100 = scmp.eq.s32.totalorder %s29, 0
      %p101 = por %p99, %p100
      %p102 = scmp.ne.s32.totalorder %s91, %s94
      %p103 = scmp.eq.s32.totalorder %s34, 1
      %p104 = por %p102, %p103
      %p105 = scmp.ne.s32.totalorder %s94, %s95
      %p106 = scmp.eq.s32.totalorder %s34, 0
      %p107 = por %p105, %p106
      %p108 = scmp.ne.s32.totalorder %s94, %s95
      %p109 = scmp.eq.s32.totalorder %s35, 1
      %p110 = por %p108, %p109
      %p112 = scmp.ne.s32.totalorder %s95, %s111
      %p113 = scmp.eq.s32.totalorder %s35, 0
      %p114 = por %p112, %p113
      %s116 = sadd.s32 %s115, 1
      %p119 = scmp.eq.s32.totalorder %s29, 1
      %p120 = scmp.ne.s32.totalorder %s115, %s117
      %p121 = scmp.eq.s32.totalorder %s29, 0
      %p122 = por %p120, %p121
      %p123 = scmp.ne.s32.totalorder %s115, %s117
      %p124 = scmp.eq.s32.totalorder %s34, 1
      %p125 = por %p123, %p124
      %p126 = scmp.ne.s32.totalorder %s117, %s118
      %p127 = scmp.eq.s32.totalorder %s34, 0
      %p128 = por %p126, %p127
      %p129 = scmp.ne.s32.totalorder %s117, %s118
      %p130 = scmp.eq.s32.totalorder %s35, 1
      %p131 = por %p129, %p130
      %p133 = scmp.ne.s32.totalorder %s118, %s132
      %p134 = scmp.eq.s32.totalorder %s35, 0
      %p135 = por %p133, %p134
      %s137 = sadd.s32 %s136, 1
      %p140 = scmp.eq.s32.totalorder %s29, 1
      %p141 = scmp.ne.s32.totalorder %s136, %s138
      %p142 = scmp.eq.s32.totalorder %s29, 0
      %p143 = por %p141, %p142
      %p144 = scmp.ne.s32.totalorder %s136, %s138
      %p145 = scmp.eq.s32.totalorder %s34, 1
      %p146 = por %p144, %p145
      %p147 = scmp.ne.s32.totalorder %s138, %s139
      %p148 = scmp.eq.s32.totalorder %s34, 0
      %p149 = por %p147, %p148
      %p150 = scmp.ne.s32.totalorder %s138, %s139
      %p151 = scmp.eq.s32.totalorder %s35, 1
      %p152 = por %p150, %p151
      %p154 = scmp.ne.s32.totalorder %s139, %s153
      %p155 = scmp.eq.s32.totalorder %s35, 0
      %p156 = por %p154, %p155
      %s158 = sadd.s32 %s157, 1
      %p161 = scmp.eq.s32.totalorder %s29, 1
      %p162 = scmp.ne.s32.totalorder %s157, %s159
      %p163 = scmp.eq.s32.totalorder %s29, 0
      %p164 = por %p162, %p163
      %p165 = scmp.ne.s32.totalorder %s157, %s159
      %p166 = scmp.eq.s32.totalorder %s34, 1
      %p167 = por %p165, %p166
      %p168 = scmp.ne.s32.totalorder %s159, %s160
      %p169 = scmp.eq.s32.totalorder %s34, 0
      %p170 = por %p168, %p169
      %p171 = scmp.ne.s32.totalorder %s159, %s160
      %p172 = scmp.eq.s32.totalorder %s35, 1
      %p173 = por %p171, %p172
      %p175 = scmp.ne.s32.totalorder %s160, %s174
      %p176 = scmp.eq.s32.totalorder %s35, 0
      %p177 = por %p175, %p176
      %s179 = sadd.s32 %s178, 1
      %p182 = scmp.eq.s32.totalorder %s29, 1
      %p183 = scmp.ne.s32.totalorder %s178, %s180
      %p184 = scmp.eq.s32.totalorder %s29, 0
      %p185 = por %p183, %p184
      %p186 = scmp.ne.s32.totalorder %s178, %s180
      %p187 = scmp.eq.s32.totalorder %s34, 1
      %p188 = por %p186, %p187
      %p189 = scmp.ne.s32.totalorder %s180, %s181
      %p190 = scmp.eq.s32.totalorder %s34, 0
      %p191 = por %p189, %p190
      %p192 = scmp.ne.s32.totalorder %s180, %s181
      %p193 = scmp.eq.s32.totalorder %s35, 1
      %p194 = por %p192, %p193
      %p196 = scmp.ne.s32.totalorder %s181, %s195
      %p197 = scmp.eq.s32.totalorder %s35, 0
      %p198 = por %p196, %p197
      %s200 = sadd.s32 %s199, 1
      %p203 = scmp.eq.s32.totalorder %s29, 1
      %p204 = scmp.ne.s32.totalorder %s199, %s201
      %p205 = scmp.eq.s32.totalorder %s29, 0
      %p206 = por %p204, %p205
      %p207 = scmp.ne.s32.totalorder %s199, %s201
      %p208 = scmp.eq.s32.totalorder %s34, 1
      %p209 = por %p207, %p208
      %p210 = scmp.ne.s32.totalorder %s201, %s202
      %p211 = scmp.eq.s32.totalorder %s34, 0
      %p212 = por %p210, %p211
      %p213 = scmp.ne.s32.totalorder %s201, %s202
      %p214 = scmp.eq.s32.totalorder %s35, 1
      %p215 = por %p213, %p214
      %p217 = scmp.ne.s32.totalorder %s202, %s216
      %p218 = scmp.eq.s32.totalorder %s35, 0
      %p219 = por %p217, %p218
      %s221 = sadd.s32 %s220, 1
      %p224 = scmp.eq.s32.totalorder %s29, 1
      %p225 = scmp.ne.s32.totalorder %s220, %s222
      %p226 = scmp.eq.s32.totalorder %s29, 0
      %p227 = por %p225, %p226
      %p228 = scmp.ne.s32.totalorder %s220, %s222
      %p229 = scmp.eq.s32.totalorder %s34, 1
      %p230 = por %p228, %p229
      %p231 = scmp.ne.s32.totalorder %s222, %s223
      %p232 = scmp.eq.s32.totalorder %s34, 0
      %p233 = por %p231, %p232
      %p234 = scmp.ne.s32.totalorder %s222, %s223
      %p235 = scmp.eq.s32.totalorder %s35, 1
      %p236 = por %p234, %p235
      %p238 = scmp.ne.s32.totalorder %s223, %s237
      %p239 = scmp.eq.s32.totalorder %s35, 0
      %p240 = por %p238, %p239
      %s242 = sadd.s32 %s241, 1
      %p245 = scmp.eq.s32.totalorder %s29, 1
      %p246 = scmp.ne.s32.totalorder %s241, %s243
      %p247 = scmp.eq.s32.totalorder %s29, 0
      %p248 = por %p246, %p247
      %p249 = scmp.ne.s32.totalorder %s241, %s243
      %p250 = scmp.eq.s32.totalorder %s34, 1
      %p251 = por %p249, %p250
      %p252 = scmp.ne.s32.totalorder %s243, %s244
      %p253 = scmp.eq.s32.totalorder %s34, 0
      %p254 = por %p252, %p253
      %p255 = scmp.ne.s32.totalorder %s243, %s244
      %p256 = scmp.eq.s32.totalorder %s35, 1
      %p257 = por %p255, %p256
      %p259 = scmp.ne.s32.totalorder %s244, %s258
      %p260 = scmp.eq.s32.totalorder %s35, 0
      %p261 = por %p259, %p260
      %s263 = sadd.s32 %s262, 1
      %p266 = scmp.eq.s32.totalorder %s29, 1
      %p267 = scmp.ne.s32.totalorder %s262, %s264
      %p268 = scmp.eq.s32.totalorder %s29, 0
      %p269 = por %p267, %p268
      %p270 = scmp.ne.s32.totalorder %s262, %s264
      %p271 = scmp.eq.s32.totalorder %s34, 1
      %p272 = por %p270, %p271
      %p273 = scmp.ne.s32.totalorder %s264, %s265
      %p274 = scmp.eq.s32.totalorder %s34, 0
      %p275 = por %p273, %p274
      %p276 = scmp.ne.s32.totalorder %s264, %s265
      %p277 = scmp.eq.s32.totalorder %s35, 1
      %p278 = por %p276, %p277
      %p280 = scmp.ne.s32.totalorder %s265, %s279
      %p281 = scmp.eq.s32.totalorder %s35, 0
      %p282 = por %p280, %p281
      %s284 = sadd.s32 %s283, 1
      %p287 = scmp.eq.s32.totalorder %s29, 1
      %p288 = scmp.ne.s32.totalorder %s283, %s285
      %p289 = scmp.eq.s32.totalorder %s29, 0
      %p290 = por %p288, %p289
      %p291 = scmp.ne.s32.totalorder %s283, %s285
      %p292 = scmp.eq.s32.totalorder %s34, 1
      %p293 = por %p291, %p292
      %p294 = scmp.ne.s32.totalorder %s285, %s286
      %p295 = scmp.eq.s32.totalorder %s34, 0
      %p296 = por %p294, %p295
      %p297 = scmp.ne.s32.totalorder %s285, %s286
      %p298 = scmp.eq.s32.totalorder %s35, 1
      %p299 = por %p297, %p298
      %p301 = scmp.ne.s32.totalorder %s286, %s300
      %p302 = scmp.eq.s32.totalorder %s35, 0
      %p303 = por %p301, %p302
      %s305 = sadd.s32 %s304, 1
      %p308 = scmp.eq.s32.totalorder %s29, 1
      %p309 = scmp.ne.s32.totalorder %s304, %s306
      %p310 = scmp.eq.s32.totalorder %s29, 0
      %p311 = por %p309, %p310
      %p312 = scmp.ne.s32.totalorder %s304, %s306
      %p313 = scmp.eq.s32.totalorder %s34, 1
      %p314 = por %p312, %p313
      %p315 = scmp.ne.s32.totalorder %s306, %s307
      %p316 = scmp.eq.s32.totalorder %s34, 0
      %p317 = por %p315, %p316
      %p318 = scmp.ne.s32.totalorder %s306, %s307
      %p319 = scmp.eq.s32.totalorder %s35, 1
      %p320 = por %p318, %p319
      %p322 = scmp.ne.s32.totalorder %s307, %s321
      %p323 = scmp.eq.s32.totalorder %s35, 0
      %p324 = por %p322, %p323
      %s326 = sadd.s32 %s325, 1
      %p329 = scmp.eq.s32.totalorder %s29, 1
      %p330 = scmp.ne.s32.totalorder %s325, %s327
      %p331 = scmp.eq.s32.totalorder %s29, 0
      %p332 = por %p330, %p331
      %p333 = scmp.ne.s32.totalorder %s325, %s327
      %p334 = scmp.eq.s32.totalorder %s34, 1
      %p335 = por %p333, %p334
      %p336 = scmp.ne.s32.totalorder %s327, %s328
      %p337 = scmp.eq.s32.totalorder %s34, 0
      %p338 = por %p336, %p337
      %p339 = scmp.ne.s32.totalorder %s327, %s328
      %p340 = scmp.eq.s32.totalorder %s35, 1
      %p341 = por %p339, %p340
      %p343 = scmp.ne.s32.totalorder %s328, %s342
      %p344 = scmp.eq.s32.totalorder %s35, 0
      %p345 = por %p343, %p344
      %s347 = sadd.s32 %s346, 1
      %p350 = scmp.eq.s32.totalorder %s29, 1
      %p351 = scmp.ne.s32.totalorder %s346, %s348
      %p352 = scmp.eq.s32.totalorder %s29, 0
      %p353 = por %p351, %p352
      %p354 = scmp.ne.s32.totalorder %s346, %s348
      %p355 = scmp.eq.s32.totalorder %s34, 1
      %p356 = por %p354, %p355
      %p357 = scmp.ne.s32.totalorder %s348, %s349
      %p358 = scmp.eq.s32.totalorder %s34, 0
      %p359 = por %p357, %p358
      %p360 = scmp.ne.s32.totalorder %s348, %s349
      %p361 = scmp.eq.s32.totalorder %s35, 1
      %p362 = por %p360, %p361
      %p364 = scmp.ne.s32.totalorder %s349, %s363
      %p365 = scmp.eq.s32.totalorder %s35, 0
      %p366 = por %p364, %p365
      %s368 = sadd.s32 %s367, 1
      %p371 = scmp.eq.s32.totalorder %s29, 1
      %p372 = scmp.ne.s32.totalorder %s367, %s369
      %p373 = scmp.eq.s32.totalorder %s29, 0
      %p374 = por %p372, %p373
      %p375 = scmp.ne.s32.totalorder %s367, %s369
      %p376 = scmp.eq.s32.totalorder %s34, 1
      %p377 = por %p375, %p376
      %p378 = scmp.ne.s32.totalorder %s369, %s370
      %p379 = scmp.eq.s32.totalorder %s34, 0
      %p380 = por %p378, %p379
      %p381 = scmp.ne.s32.totalorder %s369, %s370
      %p382 = scmp.eq.s32.totalorder %s35, 1
      %p383 = por %p381, %p382
      %p385 = scmp.ne.s32.totalorder %s370, %s384
      %p386 = scmp.eq.s32.totalorder %s35, 0
      %p387 = por %p385, %p386
      %s389 = sadd.s32 %s388, 1
      %p392 = scmp.eq.s32.totalorder %s29, 1
      %p393 = scmp.ne.s32.totalorder %s388, %s390
      %p394 = scmp.eq.s32.totalorder %s29, 0
      %p395 = por %p393, %p394
      %p396 = scmp.ne.s32.totalorder %s388, %s390
      %p397 = scmp.eq.s32.totalorder %s34, 1
      %p398 = por %p396, %p397
      %p399 = scmp.ne.s32.totalorder %s390, %s391
      %p400 = scmp.eq.s32.totalorder %s34, 0
      %p401 = por %p399, %p400
      %p402 = scmp.ne.s32.totalorder %s390, %s391
      %p403 = scmp.eq.s32.totalorder %s35, 1
      %p404 = por %p402, %p403
      %p406 = scmp.ne.s32.totalorder %s391, %s405
      %p407 = scmp.eq.s32.totalorder %s35, 0
      %p408 = por %p406, %p407
      %s409 = ssub.s32 %s29, %s36
      %p410 = scmp.eq.s32.totalorder %s409, 0
      %s412 = sadd.s32 %s411, 1
      %s413 = scalar_select %p410, %s411, %s412
      %p416 = pneg %p410
      %p417 = scmp.eq.s32.totalorder %s29, 1
      %p418 = por %p416, %p417
      %p419 = scmp.ne.s32.totalorder %s411, %s414
      %p420 = scmp.eq.s32.totalorder %s29, 0
      %p421 = por %p419, %p420
      %p422 = scmp.ne.s32.totalorder %s411, %s414
      %p423 = scmp.eq.s32.totalorder %s34, 1
      %p424 = por %p422, %p423
      %p425 = scmp.ne.s32.totalorder %s414, %s415
      %p426 = scmp.eq.s32.totalorder %s34, 0
      %p427 = por %p425, %p426
      %p428 = scmp.ne.s32.totalorder %s414, %s415
      %p429 = scmp.eq.s32.totalorder %s35, 1
      %p430 = por %p428, %p429
      %p432 = scmp.ne.s32.totalorder %s415, %s431
      %p433 = scmp.eq.s32.totalorder %s35, 0
      %p434 = por %p432, %p433
      %p435 = scmp.le.s32.totalorder 1, %s29
      %p436 = scmp.lt.s32.totalorder %s29, 3
      %p437 = pnand %p435, %p436
      %p438 = pneg %p437
      // Predicated region
      $region9: #{hvae_decoder_forward.1} parent=5 // pred_check
        _
      $region10: #{hvae_decoder_forward.1} parent=5 // pred_check_branch
        %440 = sbr.rel (%p437) target = $region12
      $region11: #{hvae_decoder_forward.1} parent=5 // pred_region
        %s441 = ssub.s32 %s29, 1
        // Predicated region
        $region13: #{hvae_decoder_forward.1} parent=11 // pred_check
          %p442 = pneg %p128
        $region14: #{hvae_decoder_forward.1} parent=11 // pred_check_branch
          %444 = sbr.rel (%p442) target = $region16
        $region15: #{hvae_decoder_forward.1} parent=11 // pred_region
          _
        $region16: #{hvae_decoder_forward.1} parent=11 // pred_fallthru
          _
        // Predicated region
        $region17: #{hvae_decoder_forward.1} parent=11 // pred_check
          %p445 = pneg %p149
        $region18: #{hvae_decoder_forward.1} parent=11 // pred_check_branch
          %447 = sbr.rel (%p445) target = $region20
        $region19: #{hvae_decoder_forward.1} parent=11 // pred_region
          _
        $region20: #{hvae_decoder_forward.1} parent=11 // pred_fallthru
          _
        // Predicated region
        $region21: #{hvae_decoder_forward.1} parent=11 // pred_check
          %p448 = pneg %p170
        $region22: #{hvae_decoder_forward.1} parent=11 // pred_check_branch
          %450 = sbr.rel (%p448) target = $region24
        $region23: #{hvae_decoder_forward.1} parent=11 // pred_region
          _
        $region24: #{hvae_decoder_forward.1} parent=11 // pred_fallthru
          _
        // Predicated region
        $region25: #{hvae_decoder_forward.1} parent=11 // pred_check
          %p451 = pneg %p191
        $region26: #{hvae_decoder_forward.1} parent=11 // pred_check_branch
          %453 = sbr.rel (%p451) target = $region28
        $region27: #{hvae_decoder_forward.1} parent=11 // pred_region
          %455 = vsyncadd [#allocation3], 0
          %s456 = sshll.u32 %s6, 4
          %s457 = int_to_ptr.hbm [resolvable:$true] %s456
          %s458 = sshll.u32 [#allocation2], 4
          %s459 = int_to_ptr.vmem [resolvable:$true] %s458
          %464 = dma.hbm_to_vmem [thread:$0]  %s457, 512, %s459, [#allocation3], 256, 256, 16
        $region28: #{hvae_decoder_forward.1} parent=11 // pred_fallthru
          _
        // Predicated region
        $region29: #{hvae_decoder_forward.1} parent=11 // pred_check
          %p465 = pneg %p212
        $region30: #{hvae_decoder_forward.1} parent=11 // pred_check_branch
          %467 = sbr.rel (%p465) target = $region32
        $region31: #{hvae_decoder_forward.1} parent=11 // pred_region
          %469 = vsyncadd [#allocation5], 0
          %s470 = sshll.u32 %s7, 4
          %s471 = int_to_ptr.hbm [resolvable:$true] %s470
          %s472 = sshll.u32 [#allocation4], 4
          %s473 = int_to_ptr.vmem [resolvable:$true] %s472
          %478 = dma.hbm_to_vmem [thread:$0]  %s471, 1024, %s473, [#allocation5], 256, 256, 16
        $region32: #{hvae_decoder_forward.1} parent=11 // pred_fallthru
          _
        // Predicated region
        $region33: #{hvae_decoder_forward.1} parent=11 // pred_check
          %p479 = pneg %p233
        $region34: #{hvae_decoder_forward.1} parent=11 // pred_check_branch
          %481 = sbr.rel (%p479) target = $region36
        $region35: #{hvae_decoder_forward.1} parent=11 // pred_region
          %483 = vsyncadd [#allocation5], 0
          %s484 = sshll.u32 %s8, 4
          %s485 = int_to_ptr.hbm [resolvable:$true] %s484
          %s486 = sshll.u32 [#allocation6], 4
          %s487 = int_to_ptr.vmem [resolvable:$true] %s486
          %492 = dma.hbm_to_vmem [thread:$0]  %s485, 1024, %s487, [#allocation5], 512, 512, 32
        $region36: #{hvae_decoder_forward.1} parent=11 // pred_fallthru
          _
        // Predicated region
        $region37: #{hvae_decoder_forward.1} parent=11 // pred_check
          %p493 = pneg %p254
        $region38: #{hvae_decoder_forward.1} parent=11 // pred_check_branch
          %495 = sbr.rel (%p493) target = $region40
        $region39: #{hvae_decoder_forward.1} parent=11 // pred_region
          _
        $region40: #{hvae_decoder_forward.1} parent=11 // pred_fallthru
          _
        // Predicated region
        $region41: #{hvae_decoder_forward.1} parent=11 // pred_check
          %p496 = pneg %p275
        $region42: #{hvae_decoder_forward.1} parent=11 // pred_check_branch
          %498 = sbr.rel (%p496) target = $region44
        $region43: #{hvae_decoder_forward.1} parent=11 // pred_region
          %500 = vsyncadd [#allocation8], 0
          %s501 = sshll.u32 %s10, 4
          %s502 = int_to_ptr.hbm [resolvable:$true] %s501
          %s503 = sshll.u32 [#allocation7], 4
          %s504 = int_to_ptr.vmem [resolvable:$true] %s503
          %509 = dma.hbm_to_vmem [thread:$0]  %s502, 8192, %s504, [#allocation8], 256, 256, 16
        $region44: #{hvae_decoder_forward.1} parent=11 // pred_fallthru
          _
        // Predicated region
        $region45: #{hvae_decoder_forward.1} parent=11 // pred_check
          %p510 = pneg %p296
        $region46: #{hvae_decoder_forward.1} parent=11 // pred_check_branch
          %512 = sbr.rel (%p510) target = $region48
        $region47: #{hvae_decoder_forward.1} parent=11 // pred_region
          %514 = vsyncadd [#allocation8], 0
          %s515 = sshll.u32 %s11, 4
          %s516 = int_to_ptr.hbm [resolvable:$true] %s515
          %s517 = sshll.u32 [#allocation9], 4
          %s518 = int_to_ptr.vmem [resolvable:$true] %s517
          %523 = dma.hbm_to_vmem [thread:$0]  %s516, 8192, %s518, [#allocation8], 256, 256, 16
        $region48: #{hvae_decoder_forward.1} parent=11 // pred_fallthru
          _
        // Predicated region
        $region49: #{hvae_decoder_forward.1} parent=11 // pred_check
          %p524 = pneg %p317
        $region50: #{hvae_decoder_forward.1} parent=11 // pred_check_branch
          %526 = sbr.rel (%p524) target = $region52
        $region51: #{hvae_decoder_forward.1} parent=11 // pred_region
          %528 = vsyncadd [#allocation11], 0
          %s530 = sshll.u32 %s12, 4
          %s531 = int_to_ptr.hbm [resolvable:$true] %s530
          %s532 = sshll.u32 [#allocation10], 4
          %s533 = int_to_ptr.vmem [resolvable:$true] %s532
          %535 = dma.hbm_to_vmem [thread:$0]  %s531, 64, %s533, [#allocation11]
        $region52: #{hvae_decoder_forward.1} parent=11 // pred_fallthru
          _
        // Predicated region
        $region53: #{hvae_decoder_forward.1} parent=11 // pred_check
          %p536 = pneg %p338
        $region54: #{hvae_decoder_forward.1} parent=11 // pred_check_branch
          %538 = sbr.rel (%p536) target = $region56
        $region55: #{hvae_decoder_forward.1} parent=11 // pred_region
          %540 = vsyncadd [#allocation11], 0
          %s541 = sshll.u32 %s13, 4
          %s542 = int_to_ptr.hbm [resolvable:$true] %s541
          %s543 = sshll.u32 [#allocation12], 4
          %s544 = int_to_ptr.vmem [resolvable:$true] %s543
          %549 = dma.hbm_to_vmem [thread:$0]  %s542, 12288, %s544, [#allocation11], 192, 192, 12
        $region56: #{hvae_decoder_forward.1} parent=11 // pred_fallthru
          _
        // Predicated region
        $region57: #{hvae_decoder_forward.1} parent=11 // pred_check
          %p550 = pneg %p359
        $region58: #{hvae_decoder_forward.1} parent=11 // pred_check_branch
          %552 = sbr.rel (%p550) target = $region60
        $region59: #{hvae_decoder_forward.1} parent=11 // pred_region
          %554 = vsyncadd [#allocation14], 0
          %s555 = sshll.u32 %s14, 4
          %s556 = int_to_ptr.hbm [resolvable:$true] %s555
          %s557 = sshll.u32 [#allocation13], 4
          %s558 = int_to_ptr.vmem [resolvable:$true] %s557
          %563 = dma.hbm_to_vmem [thread:$0]  %s556, 12288, %s558, [#allocation14], 192, 192, 12
        $region60: #{hvae_decoder_forward.1} parent=11 // pred_fallthru
          _
        // Predicated region
        $region61: #{hvae_decoder_forward.1} parent=11 // pred_check
          %p564 = pneg %p380
        $region62: #{hvae_decoder_forward.1} parent=11 // pred_check_branch
          %566 = sbr.rel (%p564) target = $region64
        $region63: #{hvae_decoder_forward.1} parent=11 // pred_region
          %568 = vsyncadd [#allocation14], 0
          %s569 = sshll.u32 %s15, 4
          %s570 = int_to_ptr.hbm [resolvable:$true] %s569
          %s571 = sshll.u32 [#allocation15], 4
          %s572 = int_to_ptr.vmem [resolvable:$true] %s571
          %577 = dma.hbm_to_vmem [thread:$0]  %s570, 12288, %s572, [#allocation14], 192, 192, 12
        $region64: #{hvae_decoder_forward.1} parent=11 // pred_fallthru
          _
        // Predicated region
        $region65: #{hvae_decoder_forward.1} parent=11 // pred_check
          %p578 = pneg %p401
        $region66: #{hvae_decoder_forward.1} parent=11 // pred_check_branch
          %580 = sbr.rel (%p578) target = $region68
        $region67: #{hvae_decoder_forward.1} parent=11 // pred_region
          %582 = vsyncadd [#allocation17], 0
          %s584 = sshll.u32 %s16, 4
          %s585 = int_to_ptr.hbm [resolvable:$true] %s584
          %s586 = sshll.u32 [#allocation16], 4
          %s587 = int_to_ptr.vmem [resolvable:$true] %s586
          %589 = dma.hbm_to_vmem [thread:$0]  %s585, 48, %s587, [#allocation17]
        $region68: #{hvae_decoder_forward.1} parent=11 // pred_fallthru
          _
      $region12: #{hvae_decoder_forward.1} parent=5 // pred_fallthru
        _
      %p590 = scmp.lt.s32.totalorder %s29, 2
      // Predicated region
      $region69: #{hvae_decoder_forward.1} parent=5 // pred_check
        %p591 = pneg %p590
      $region70: #{hvae_decoder_forward.1} parent=5 // pred_check_branch
        %593 = sbr.rel (%p591) target = $region72
      $region71: #{hvae_decoder_forward.1} parent=5 // pred_region
        // Predicated region
        $region73: #{hvae_decoder_forward.1} parent=71 // pred_check
          %p594 = pneg %p49
        $region74: #{hvae_decoder_forward.1} parent=71 // pred_check_branch
          %596 = sbr.rel (%p594) target = $region76
        $region75: #{hvae_decoder_forward.1} parent=71 // pred_region
          %p597 = scmp.lt.s32.totalorder %s29, 1
          %s598 = scalar_select %p597, %s29, 1
          %s599 = smul.addr %s598, 2
          %s600 = smul.addr %s599, 4
          %s601 = scalar_lea.vmem %s0, %s600
        $region76: #{hvae_decoder_forward.1} parent=71 // pred_fallthru
          _
        // Predicated region
        $region77: #{hvae_decoder_forward.1} parent=71 // pred_check
          %p602 = pneg %p75
        $region78: #{hvae_decoder_forward.1} parent=71 // pred_check_branch
          %604 = sbr.rel (%p602) target = $region80
        $region79: #{hvae_decoder_forward.1} parent=71 // pred_region
          %p605 = scmp.lt.s32.totalorder %s29, 1
          %s606 = scalar_select %p605, %s29, 1
          %s607 = smul.addr %s606, 2
          %s608 = smul.addr %s607, 4
          %s609 = scalar_lea.vmem %s1, %s608
        $region80: #{hvae_decoder_forward.1} parent=71 // pred_fallthru
          _
        // Predicated region
        $region81: #{hvae_decoder_forward.1} parent=71 // pred_check
          %p610 = pneg %p101
        $region82: #{hvae_decoder_forward.1} parent=71 // pred_check_branch
          %612 = sbr.rel (%p610) target = $region84
        $region83: #{hvae_decoder_forward.1} parent=71 // pred_region
          %p613 = scmp.lt.s32.totalorder %s29, 1
          %s614 = scalar_select %p613, %s29, 1
          %s615 = smul.addr %s614, 2
          %s616 = smul.addr %s615, 4
          %s617 = scalar_lea.vmem %s2, %s616
        $region84: #{hvae_decoder_forward.1} parent=71 // pred_fallthru
          _
      $region72: #{hvae_decoder_forward.1} parent=5 // pred_fallthru
        _
      %p618 = scmp.le.s32.totalorder 1, %s29
      %p619 = scmp.lt.s32.totalorder %s29, 3
      %p620 = pnand %p618, %p619
      %p621 = pneg %p620
      // Predicated region
      $region85: #{hvae_decoder_forward.1} parent=5 // pred_check
        _
      $region86: #{hvae_decoder_forward.1} parent=5 // pred_check_branch
        %623 = sbr.rel (%p620) target = $region88
      $region87: #{hvae_decoder_forward.1} parent=5 // pred_region
        %s624 = ssub.s32 %s29, 1
        // Predicated region
        $region89: #{hvae_decoder_forward.1} parent=87 // pred_check
          %p625 = pneg %p191
        $region90: #{hvae_decoder_forward.1} parent=87 // pred_check_branch
          %627 = sbr.rel (%p625) target = $region92
        $region91: #{hvae_decoder_forward.1} parent=87 // pred_region
          %629 = dma.done [#allocation3], 512
        $region92: #{hvae_decoder_forward.1} parent=87 // pred_fallthru
          _
        // Predicated region
        $region93: #{hvae_decoder_forward.1} parent=87 // pred_check
          %p630 = pneg %p212
        $region94: #{hvae_decoder_forward.1} parent=87 // pred_check_branch
          %632 = sbr.rel (%p630) target = $region96
        $region95: #{hvae_decoder_forward.1} parent=87 // pred_region
          %634 = dma.done [#allocation5], 1024
        $region96: #{hvae_decoder_forward.1} parent=87 // pred_fallthru
          _
        // Predicated region
        $region97: #{hvae_decoder_forward.1} parent=87 // pred_check
          %p635 = pneg %p233
        $region98: #{hvae_decoder_forward.1} parent=87 // pred_check_branch
          %637 = sbr.rel (%p635) target = $region100
        $region99: #{hvae_decoder_forward.1} parent=87 // pred_region
          %639 = dma.done [#allocation5], 1024
        $region100: #{hvae_decoder_forward.1} parent=87 // pred_fallthru
          _
        // Predicated region
        $region101: #{hvae_decoder_forward.1} parent=87 // pred_check
          %p640 = pneg %p275
        $region102: #{hvae_decoder_forward.1} parent=87 // pred_check_branch
          %642 = sbr.rel (%p640) target = $region104
        $region103: #{hvae_decoder_forward.1} parent=87 // pred_region
          %644 = dma.done [#allocation8], 8192
        $region104: #{hvae_decoder_forward.1} parent=87 // pred_fallthru
          _
        // Predicated region
        $region105: #{hvae_decoder_forward.1} parent=87 // pred_check
          %p645 = pneg %p296
        $region106: #{hvae_decoder_forward.1} parent=87 // pred_check_branch
          %647 = sbr.rel (%p645) target = $region108
        $region107: #{hvae_decoder_forward.1} parent=87 // pred_region
          %649 = dma.done [#allocation8], 8192
        $region108: #{hvae_decoder_forward.1} parent=87 // pred_fallthru
          _
        // Predicated region
        $region109: #{hvae_decoder_forward.1} parent=87 // pred_check
          %p650 = pneg %p317
        $region110: #{hvae_decoder_forward.1} parent=87 // pred_check_branch
          %652 = sbr.rel (%p650) target = $region112
        $region111: #{hvae_decoder_forward.1} parent=87 // pred_region
          %654 = dma.done [#allocation11], 64
        $region112: #{hvae_decoder_forward.1} parent=87 // pred_fallthru
          _
        // Predicated region
        $region113: #{hvae_decoder_forward.1} parent=87 // pred_check
          %p655 = pneg %p338
        $region114: #{hvae_decoder_forward.1} parent=87 // pred_check_branch
          %657 = sbr.rel (%p655) target = $region116
        $region115: #{hvae_decoder_forward.1} parent=87 // pred_region
          %659 = dma.done [#allocation11], 12288
        $region116: #{hvae_decoder_forward.1} parent=87 // pred_fallthru
          _
        // Predicated region
        $region117: #{hvae_decoder_forward.1} parent=87 // pred_check
          %p660 = pneg %p359
        $region118: #{hvae_decoder_forward.1} parent=87 // pred_check_branch
          %662 = sbr.rel (%p660) target = $region120
        $region119: #{hvae_decoder_forward.1} parent=87 // pred_region
          %664 = dma.done [#allocation14], 12288
        $region120: #{hvae_decoder_forward.1} parent=87 // pred_fallthru
          _
        // Predicated region
        $region121: #{hvae_decoder_forward.1} parent=87 // pred_check
          %p665 = pneg %p380
        $region122: #{hvae_decoder_forward.1} parent=87 // pred_check_branch
          %667 = sbr.rel (%p665) target = $region124
        $region123: #{hvae_decoder_forward.1} parent=87 // pred_region
          %669 = dma.done [#allocation14], 12288
        $region124: #{hvae_decoder_forward.1} parent=87 // pred_fallthru
          _
        // Predicated region
        $region125: #{hvae_decoder_forward.1} parent=87 // pred_check
          %p670 = pneg %p401
        $region126: #{hvae_decoder_forward.1} parent=87 // pred_check_branch
          %672 = sbr.rel (%p670) target = $region128
        $region127: #{hvae_decoder_forward.1} parent=87 // pred_region
          %674 = dma.done [#allocation17], 48
        $region128: #{hvae_decoder_forward.1} parent=87 // pred_fallthru
          _
        %p675 = scmp.lt.s32.totalorder %s34, 1
        %s676 = scalar_select %p675, %s34, 1
        %s677 = smul.addr %s676, 2
        %s678 = smul.addr %s677, 4
        %s679 = scalar_lea.vmem %s0, %s678
        %p680 = pneg %p55
        %p681 = pneg %p52
        %p682 = scmp.lt.s32.totalorder %s34, 1
        %s683 = scalar_select %p682, %s34, 1
        %s684 = smul.addr %s683, 2
        %s685 = smul.addr %s684, 4
        %s686 = scalar_lea.vmem %s1, %s685
        %p687 = pneg %p81
        %p688 = pneg %p78
        %p689 = scmp.lt.s32.totalorder %s34, 1
        %s690 = scalar_select %p689, %s34, 1
        %s691 = smul.addr %s690, 2
        %s692 = smul.addr %s691, 4
        %s693 = scalar_lea.vmem %s2, %s692
        %p694 = pneg %p107
        %p695 = pneg %p104
        %p696 = pneg %p128
        %p697 = pneg %p125
        %p698 = pneg %p149
        %p699 = pneg %p146
        %p700 = pneg %p170
        %p701 = pneg %p167
        %p702 = pneg %p191
        %p703 = pneg %p188
        %p704 = pneg %p212
        %p705 = pneg %p209
        %p706 = pneg %p233
        %p707 = pneg %p230
        %p708 = pneg %p254
        %p709 = pneg %p251
        %p710 = pneg %p275
        %p711 = pneg %p272
        %p712 = pneg %p296
        %p713 = pneg %p293
        %p714 = pneg %p317
        %p715 = pneg %p314
        %p716 = pneg %p338
        %p717 = pneg %p335
        %p718 = pneg %p359
        %p719 = pneg %p356
        %p720 = pneg %p380
        %p721 = pneg %p377
        %p722 = pneg %p401
        %p723 = pneg %p398
        %p724 = pneg %p427
        %p725 = pneg %p424
        %p726 = scmp.lt.s32.totalorder %s34, 1
        %s727 = scalar_select %p726, %s34, 1
        %s728 = smul.addr %s727, 3
        %s729 = smul.addr %s728, 8
        %s730 = scalar_lea.vmem %s17, %s729
        %p731 = scmp.lt.s32.totalorder %s34, 1
        %s732 = scalar_select %p731, %s34, 1
        %s733 = smul.addr %s732, 2
        %s734 = smul.addr %s733, 4
        %s735 = scalar_lea.vmem %s0, %s734
        %p736 = scmp.lt.s32.totalorder %s34, 1
        %s737 = scalar_select %p736, %s34, 1
        %s738 = smul.addr %s737, 2
        %s739 = smul.addr %s738, 4
        %s740 = scalar_lea.vmem %s1, %s739
        %p741 = scmp.lt.s32.totalorder %s34, 1
        %s742 = scalar_select %p741, %s34, 1
        %s743 = smul.addr %s742, 2
        %s744 = smul.addr %s743, 4
        %s745 = scalar_lea.vmem %s2, %s744
        %p746 = scmp.lt.s32.totalorder %s34, 1
        %s747 = scalar_select %p746, %s34, 1
        %s748 = smul.addr %s747, 3
        %s749 = smul.addr %s748, 8
        %s750 = scalar_lea.vmem %s17, %s749
        %v752 = vld [vmem:[%s735] sm:$0xf]
        %v753 = vld [vmem:[%s735 + $0x4] sm:$0x3]
        %v754 = vld [vmem:[%s740] sm:$0xf]
        %v755 = vld [vmem:[%s740 + $0x4] sm:$0x3]
        %v756 = vld [vmem:[%s745] sm:$0xf]
        %v757 = vld [vmem:[%s745 + $0x4] sm:$0x1]
        %v758 = vld [vmem:[%s3] sm:$0xff]
        %v759 = vld [vmem:[%s3 + $0x8] sm:$0xff]
        %v760 = vld [vmem:[%s3 + $0x10] sm:$0xff]
        %v761 = vld [vmem:[%s3 + $0x18] sm:$0xff]
        %v762 = vld [vmem:[%s3 + $0x20] sm:$0xff]
        %v763 = vld [vmem:[%s3 + $0x28] sm:$0xff]
        %v764 = vld [vmem:[%s3 + $0x30] sm:$0xff]
        %v765 = vld [vmem:[%s3 + $0x38] sm:$0xff]
        %v766 = vld [vmem:[%s3 + $0x40] sm:$0xff]
        %v767 = vld [vmem:[%s3 + $0x48] sm:$0xff]
        %v768 = vld [vmem:[%s3 + $0x50] sm:$0xff]
        %v769 = vld [vmem:[%s3 + $0x58] sm:$0xff]
        %v770 = vld [vmem:[%s3 + $0x60] sm:$0xff]
        %v771 = vld [vmem:[%s3 + $0x68] sm:$0xff]
        %v772 = vld [vmem:[%s3 + $0x70] sm:$0xff]
        %v773 = vld [vmem:[%s3 + $0x78] sm:$0xff]
        %v774 = vld [vmem:[%s4] sm:$0xff]
        %v775 = vld [vmem:[%s4 + $0x8] sm:$0xff]
        %v776 = vld [vmem:[%s4 + $0x10] sm:$0xf]
        %v777 = vld [vmem:[%s4 + $0x18] sm:$0xf]
        %v780 = vunpack.c.l.b16 %v752
        %v781 = vunpack.c.l.b16 %v753
        %v782 = vpack.c.b16 %v781, %v780
        %v800 = vunpack.c.l.b16 %v758
        %v801 = vunpack.c.h.b16 %v758
        %v802 = vunpack.c.l.b16 %v759
        %v803 = vunpack.c.h.b16 %v759
        %v804 = vunpack.c.l.b16 %v760
        %v805 = vunpack.c.h.b16 %v760
        %v806 = vunpack.c.l.b16 %v761
        %v807 = vunpack.c.h.b16 %v761
        %v808 = vunpack.c.l.b16 %v762
        %v809 = vunpack.c.h.b16 %v762
        %v810 = vunpack.c.l.b16 %v763
        %v811 = vunpack.c.h.b16 %v763
        %v812 = vunpack.c.l.b16 %v764
        %v813 = vunpack.c.h.b16 %v764
        %v814 = vunpack.c.l.b16 %v765
        %v815 = vunpack.c.h.b16 %v765
        %v816 = vunpack.c.l.b16 %v766
        %v817 = vunpack.c.h.b16 %v766
        %v818 = vunpack.c.l.b16 %v767
        %v819 = vunpack.c.h.b16 %v767
        %v820 = vunpack.c.l.b16 %v768
        %v821 = vunpack.c.h.b16 %v768
        %v822 = vunpack.c.l.b16 %v769
        %v823 = vunpack.c.h.b16 %v769
        %v824 = vunpack.c.l.b16 %v770
        %v825 = vunpack.c.h.b16 %v770
        %v826 = vunpack.c.l.b16 %v771
        %v827 = vunpack.c.h.b16 %v771
        %v828 = vunpack.c.l.b16 %v772
        %v829 = vunpack.c.h.b16 %v772
        %v830 = vunpack.c.l.b16 %v773
        %v831 = vunpack.c.h.b16 %v773
        %v832 = vpack.c.b16 %v802, %v800
        %v833 = vpack.c.b16 %v803, %v801
        %v834 = vpack.c.b16 %v806, %v804
        %v835 = vpack.c.b16 %v807, %v805
        %v836 = vpack.c.b16 %v810, %v808
        %v837 = vpack.c.b16 %v811, %v809
        %v838 = vpack.c.b16 %v814, %v812
        %v839 = vpack.c.b16 %v815, %v813
        %v840 = vpack.c.b16 %v818, %v816
        %v841 = vpack.c.b16 %v819, %v817
        %v842 = vpack.c.b16 %v822, %v820
        %v843 = vpack.c.b16 %v823, %v821
        %v844 = vpack.c.b16 %v826, %v824
        %v845 = vpack.c.b16 %v827, %v825
        %v846 = vpack.c.b16 %v830, %v828
        %v847 = vpack.c.b16 %v831, %v829
        %864 = vmatpush.bf16.msra.mxu0 %v846
        %865 = vmatpush.bf16.msra.mxu0 %v844
        %866 = vmatpush.bf16.msra.mxu0 %v842
        %867 = vmatpush.bf16.msra.mxu0 %v840
        %868 = vmatpush.bf16.msra.mxu0 %v838
        %869 = vmatpush.bf16.msra.mxu0 %v836
        %870 = vmatpush.bf16.msra.mxu0 %v834
        %871 = vmatpush.bf16.msra.mxu0 %v832
        %872 = vmatmul.bf16.gmra.mxu0 %v782
        %v873 = vpop.f32.mrf.mxu0
        %v874 = vadd.f32 %v774, %v873
        %v875 = vpop.f32.mrf.mxu0
        %v876 = vadd.f32 %v776, %v875
        %877 = vdwg.mxu0
        %878 = vmatpush.bf16.msra.mxu0 %v847
        %879 = vmatpush.bf16.msra.mxu0 %v845
        %880 = vmatpush.bf16.msra.mxu0 %v843
        %881 = vmatpush.bf16.msra.mxu0 %v841
        %882 = vmatpush.bf16.msra.mxu0 %v839
        %883 = vmatpush.bf16.msra.mxu0 %v837
        %884 = vmatpush.bf16.msra.mxu0 %v835
        %885 = vmatpush.bf16.msra.mxu0 %v833
        %886 = vmatmul.bf16.gmra.mxu0 %v782
        %v887 = vpop.f32.mrf.mxu0
        %v888 = vadd.f32 %v775, %v887
        %v889 = vpop.f32.mrf.mxu0
        %v890 = vadd.f32 %v777, %v889
        %891 = vdwg.mxu0
        %v892 = vld [vmem:[%s5] sm:$0xff]
        %v893 = vld [vmem:[%s5 + $0x8] sm:$0xff]
        %v894 = vld [vmem:[%s5 + $0x10] sm:$0xff]
        %v895 = vld [vmem:[%s5 + $0x18] sm:$0xff]
        %v896 = vld [vmem:[%s5 + $0x20] sm:$0xff]
        %v897 = vld [vmem:[%s5 + $0x28] sm:$0xff]
        %v898 = vld [vmem:[%s5 + $0x30] sm:$0xff]
        %v899 = vld [vmem:[%s5 + $0x38] sm:$0xff]
        %v900 = vld [vmem:[#allocation2] sm:$0xff]
        %v901 = vld [vmem:[#allocation2 + $0x8] sm:$0xff]
        %v902 = vld [vmem:[#allocation2 + $0x10] sm:$0xf]
        %v903 = vld [vmem:[#allocation2 + $0x18] sm:$0xf]
        %v906 = vunpack.c.l.b16 %v754
        %v907 = vunpack.c.l.b16 %v755
        %v908 = vpack.c.b16 %v907, %v906
        %v917 = vunpack.c.l.b16 %v892
        %v918 = vunpack.c.h.b16 %v892
        %v919 = vunpack.c.l.b16 %v893
        %v920 = vunpack.c.h.b16 %v893
        %v921 = vunpack.c.l.b16 %v894
        %v922 = vunpack.c.h.b16 %v894
        %v923 = vunpack.c.l.b16 %v895
        %v924 = vunpack.c.h.b16 %v895
        %v925 = vunpack.c.l.b16 %v896
        %v926 = vunpack.c.h.b16 %v896
        %v927 = vunpack.c.l.b16 %v897
        %v928 = vunpack.c.h.b16 %v897
        %v929 = vunpack.c.l.b16 %v898
        %v930 = vunpack.c.h.b16 %v898
        %v931 = vunpack.c.l.b16 %v899
        %v932 = vunpack.c.h.b16 %v899
        %v933 = vpack.c.b16 %v919, %v917
        %v934 = vpack.c.b16 %v920, %v918
        %v935 = vpack.c.b16 %v923, %v921
        %v936 = vpack.c.b16 %v924, %v922
        %v937 = vpack.c.b16 %v927, %v925
        %v938 = vpack.c.b16 %v928, %v926
        %v939 = vpack.c.b16 %v931, %v929
        %v940 = vpack.c.b16 %v932, %v930
        %vm949 = vcmask 523264
        %v951 = vsel %vm949, %v908, 0
        %953 = vmatpush.bf16.msra.mxu0 0
        %954 = vmatpush.bf16.msra.mxu0 0
        %955 = vmatpush.bf16.msra.mxu0 0
        %956 = vmatpush.bf16.msra.mxu0 0
        %957 = vmatpush.bf16.msra.mxu0 %v939
        %958 = vmatpush.bf16.msra.mxu0 %v937
        %959 = vmatpush.bf16.msra.mxu0 %v935
        %960 = vmatpush.bf16.msra.mxu0 %v933
        %961 = vmatmul.bf16.gmra.mxu0 %v951
        %v962 = vpop.f32.mrf.mxu0
        %v963 = vadd.f32 %v900, %v962
        %v964 = vpop.f32.mrf.mxu0
        %v965 = vadd.f32 %v902, %v964
        %966 = vdwg.mxu0
        %967 = vmatpush.bf16.msra.mxu0 0
        %968 = vmatpush.bf16.msra.mxu0 0
        %969 = vmatpush.bf16.msra.mxu0 0
        %970 = vmatpush.bf16.msra.mxu0 0
        %971 = vmatpush.bf16.msra.mxu0 %v940
        %972 = vmatpush.bf16.msra.mxu0 %v938
        %973 = vmatpush.bf16.msra.mxu0 %v936
        %974 = vmatpush.bf16.msra.mxu0 %v934
        %975 = vmatmul.bf16.gmra.mxu0 %v951
        %v976 = vpop.f32.mrf.mxu0
        %v977 = vadd.f32 %v901, %v976
        %v978 = vpop.f32.mrf.mxu0
        %v979 = vadd.f32 %v903, %v978
        %980 = vdwg.mxu0
        %v981 = vmax.f32 %v874, 0.0
        %v982 = vmax.f32 %v888, 0.0
        %v983 = vmax.f32 %v876, 0.0
        %v984 = vmax.f32 %v890, 0.0
        %v985 = vadd.f32 %v981, %v963
        %v986 = vadd.f32 %v982, %v977
        %v987 = vadd.f32 %v983, %v965
        %v988 = vadd.f32 %v984, %v979
        %v989 = vpack.c.bf16 %v987, %v985
        %v990 = vpack.c.bf16 %v988, %v986
        %v991 = vld [vmem:[%s9] sm:$0xff]
        %v992 = vld [vmem:[%s9 + $0x8] sm:$0xff]
        %v993 = vld [vmem:[%s9 + $0x10] sm:$0xff]
        %v994 = vld [vmem:[%s9 + $0x18] sm:$0xff]
        %v995 = vld [vmem:[%s9 + $0x20] sm:$0xff]
        %v996 = vld [vmem:[%s9 + $0x28] sm:$0xff]
        %v997 = vld [vmem:[%s9 + $0x30] sm:$0xff]
        %v998 = vld [vmem:[%s9 + $0x38] sm:$0xff]
        %v999 = vld [vmem:[%s9 + $0x40] sm:$0xff]
        %v1000 = vld [vmem:[%s9 + $0x48] sm:$0xff]
        %v1001 = vld [vmem:[%s9 + $0x50] sm:$0xff]
        %v1002 = vld [vmem:[%s9 + $0x58] sm:$0xff]
        %v1003 = vld [vmem:[%s9 + $0x60] sm:$0xff]
        %v1004 = vld [vmem:[%s9 + $0x68] sm:$0xff]
        %v1005 = vld [vmem:[%s9 + $0x70] sm:$0xff]
        %v1006 = vld [vmem:[%s9 + $0x78] sm:$0xff]
        %v1007 = vld [vmem:[%s9 + $0x80] sm:$0xff]
        %v1008 = vld [vmem:[%s9 + $0x88] sm:$0xff]
        %v1009 = vld [vmem:[%s9 + $0x90] sm:$0xff]
        %v1010 = vld [vmem:[%s9 + $0x98] sm:$0xff]
        %v1011 = vld [vmem:[%s9 + $0xa0] sm:$0xff]
        %v1012 = vld [vmem:[%s9 + $0xa8] sm:$0xff]
        %v1013 = vld [vmem:[%s9 + $0xb0] sm:$0xff]
        %v1014 = vld [vmem:[%s9 + $0xb8] sm:$0xff]
        %v1015 = vld [vmem:[%s9 + $0xc0] sm:$0xff]
        %v1016 = vld [vmem:[%s9 + $0xc8] sm:$0xff]
        %v1017 = vld [vmem:[%s9 + $0xd0] sm:$0xff]
        %v1018 = vld [vmem:[%s9 + $0xd8] sm:$0xff]
        %v1019 = vld [vmem:[%s9 + $0xe0] sm:$0xff]
        %v1020 = vld [vmem:[%s9 + $0xe8] sm:$0xff]
        %v1021 = vld [vmem:[%s9 + $0xf0] sm:$0xff]
        %v1022 = vld [vmem:[%s9 + $0xf8] sm:$0xff]
        %v1023 = vld [vmem:[%s9 + $0x100] sm:$0xff]
        %v1024 = vld [vmem:[%s9 + $0x108] sm:$0xff]
        %v1025 = vld [vmem:[%s9 + $0x110] sm:$0xff]
        %v1026 = vld [vmem:[%s9 + $0x118] sm:$0xff]
        %v1027 = vld [vmem:[%s9 + $0x120] sm:$0xff]
        %v1028 = vld [vmem:[%s9 + $0x128] sm:$0xff]
        %v1029 = vld [vmem:[%s9 + $0x130] sm:$0xff]
        %v1030 = vld [vmem:[%s9 + $0x138] sm:$0xff]
        %v1031 = vld [vmem:[%s9 + $0x140] sm:$0xff]
        %v1032 = vld [vmem:[%s9 + $0x148] sm:$0xff]
        %v1033 = vld [vmem:[%s9 + $0x150] sm:$0xff]
        %v1034 = vld [vmem:[%s9 + $0x158] sm:$0xff]
        %v1035 = vld [vmem:[%s9 + $0x160] sm:$0xff]
        %v1036 = vld [vmem:[%s9 + $0x168] sm:$0xff]
        %v1037 = vld [vmem:[%s9 + $0x170] sm:$0xff]
        %v1038 = vld [vmem:[%s9 + $0x178] sm:$0xff]
        %v1039 = vld [vmem:[%s9 + $0x180] sm:$0xff]
        %v1040 = vld [vmem:[%s9 + $0x188] sm:$0xff]
        %v1041 = vld [vmem:[%s9 + $0x190] sm:$0xff]
        %v1042 = vld [vmem:[%s9 + $0x198] sm:$0xff]
        %v1043 = vld [vmem:[%s9 + $0x1a0] sm:$0xff]
        %v1044 = vld [vmem:[%s9 + $0x1a8] sm:$0xff]
        %v1045 = vld [vmem:[%s9 + $0x1b0] sm:$0xff]
        %v1046 = vld [vmem:[%s9 + $0x1b8] sm:$0xff]
        %v1047 = vld [vmem:[%s9 + $0x1c0] sm:$0xff]
        %v1048 = vld [vmem:[%s9 + $0x1c8] sm:$0xff]
        %v1049 = vld [vmem:[%s9 + $0x1d0] sm:$0xff]
        %v1050 = vld [vmem:[%s9 + $0x1d8] sm:$0xff]
        %v1051 = vld [vmem:[%s9 + $0x1e0] sm:$0xff]
        %v1052 = vld [vmem:[%s9 + $0x1e8] sm:$0xff]
        %v1053 = vld [vmem:[%s9 + $0x1f0] sm:$0xff]
        %v1054 = vld [vmem:[%s9 + $0x1f8] sm:$0xff]
        %v1055 = vld [vmem:[#allocation7] sm:$0xff]
        %v1056 = vld [vmem:[#allocation7 + $0x8] sm:$0xff]
        %v1057 = vld [vmem:[#allocation7 + $0x10] sm:$0xff]
        %v1058 = vld [vmem:[#allocation7 + $0x18] sm:$0xff]
        %v1059 = vld [vmem:[#allocation7 + $0x20] sm:$0xff]
        %v1060 = vld [vmem:[#allocation7 + $0x28] sm:$0xff]
        %v1061 = vld [vmem:[#allocation7 + $0x30] sm:$0xff]
        %v1062 = vld [vmem:[#allocation7 + $0x38] sm:$0xff]
        %v1063 = vld [vmem:[#allocation7 + $0x40] sm:$0xff]
        %v1064 = vld [vmem:[#allocation7 + $0x48] sm:$0xff]
        %v1065 = vld [vmem:[#allocation7 + $0x50] sm:$0xff]
        %v1066 = vld [vmem:[#allocation7 + $0x58] sm:$0xff]
        %v1067 = vld [vmem:[#allocation7 + $0x60] sm:$0xff]
        %v1068 = vld [vmem:[#allocation7 + $0x68] sm:$0xff]
        %v1069 = vld [vmem:[#allocation7 + $0x70] sm:$0xff]
        %v1070 = vld [vmem:[#allocation7 + $0x78] sm:$0xff]
        %v1071 = vld [vmem:[#allocation7 + $0x80] sm:$0xff]
        %v1072 = vld [vmem:[#allocation7 + $0x88] sm:$0xff]
        %v1073 = vld [vmem:[#allocation7 + $0x90] sm:$0xff]
        %v1074 = vld [vmem:[#allocation7 + $0x98] sm:$0xff]
        %v1075 = vld [vmem:[#allocation7 + $0xa0] sm:$0xff]
        %v1076 = vld [vmem:[#allocation7 + $0xa8] sm:$0xff]
        %v1077 = vld [vmem:[#allocation7 + $0xb0] sm:$0xff]
        %v1078 = vld [vmem:[#allocation7 + $0xb8] sm:$0xff]
        %v1079 = vld [vmem:[#allocation7 + $0xc0] sm:$0xff]
        %v1080 = vld [vmem:[#allocation7 + $0xc8] sm:$0xff]
        %v1081 = vld [vmem:[#allocation7 + $0xd0] sm:$0xff]
        %v1082 = vld [vmem:[#allocation7 + $0xd8] sm:$0xff]
        %v1083 = vld [vmem:[#allocation7 + $0xe0] sm:$0xff]
        %v1084 = vld [vmem:[#allocation7 + $0xe8] sm:$0xff]
        %v1085 = vld [vmem:[#allocation7 + $0xf0] sm:$0xff]
        %v1086 = vld [vmem:[#allocation7 + $0xf8] sm:$0xff]
        %v1087 = vld [vmem:[#allocation7 + $0x100] sm:$0xff]
        %v1088 = vld [vmem:[#allocation7 + $0x108] sm:$0xff]
        %v1089 = vld [vmem:[#allocation7 + $0x110] sm:$0xff]
        %v1090 = vld [vmem:[#allocation7 + $0x118] sm:$0xff]
        %v1091 = vld [vmem:[#allocation7 + $0x120] sm:$0xff]
        %v1092 = vld [vmem:[#allocation7 + $0x128] sm:$0xff]
        %v1093 = vld [vmem:[#allocation7 + $0x130] sm:$0xff]
        %v1094 = vld [vmem:[#allocation7 + $0x138] sm:$0xff]
        %v1095 = vld [vmem:[#allocation7 + $0x140] sm:$0xff]
        %v1096 = vld [vmem:[#allocation7 + $0x148] sm:$0xff]
        %v1097 = vld [vmem:[#allocation7 + $0x150] sm:$0xff]
        %v1098 = vld [vmem:[#allocation7 + $0x158] sm:$0xff]
        %v1099 = vld [vmem:[#allocation7 + $0x160] sm:$0xff]
        %v1100 = vld [vmem:[#allocation7 + $0x168] sm:$0xff]
        %v1101 = vld [vmem:[#allocation7 + $0x170] sm:$0xff]
        %v1102 = vld [vmem:[#allocation7 + $0x178] sm:$0xff]
        %v1103 = vld [vmem:[#allocation7 + $0x180] sm:$0xff]
        %v1104 = vld [vmem:[#allocation7 + $0x188] sm:$0xff]
        %v1105 = vld [vmem:[#allocation7 + $0x190] sm:$0xff]
        %v1106 = vld [vmem:[#allocation7 + $0x198] sm:$0xff]
        %v1107 = vld [vmem:[#allocation7 + $0x1a0] sm:$0xff]
        %v1108 = vld [vmem:[#allocation7 + $0x1a8] sm:$0xff]
        %v1109 = vld [vmem:[#allocation7 + $0x1b0] sm:$0xff]
        %v1110 = vld [vmem:[#allocation7 + $0x1b8] sm:$0xff]
        %v1111 = vld [vmem:[#allocation7 + $0x1c0] sm:$0xff]
        %v1112 = vld [vmem:[#allocation7 + $0x1c8] sm:$0xff]
        %v1113 = vld [vmem:[#allocation7 + $0x1d0] sm:$0xff]
        %v1114 = vld [vmem:[#allocation7 + $0x1d8] sm:$0xff]
        %v1115 = vld [vmem:[#allocation7 + $0x1e0] sm:$0xff]
        %v1116 = vld [vmem:[#allocation7 + $0x1e8] sm:$0xff]
        %v1117 = vld [vmem:[#allocation7 + $0x1f0] sm:$0xff]
        %v1118 = vld [vmem:[#allocation7 + $0x1f8] sm:$0xff]
        %v1120 = vshrl.u32 %v989, 16
        %v1122 = vshll.u32 %v989, 16
        %v1124 = vrot.slane %v1122, 1
        %v1125 = vor.u32 %v1120, %v1124
        %v1127 = vshrl.u32 %v990, 16
        %v1129 = vshll.u32 %v990, 16
        %v1131 = vrot.slane %v1129, 1
        %v1132 = vor.u32 %v1127, %v1131
        %v1199 = vunpack.c.l.b16 %v1055
        %v1200 = vunpack.c.h.b16 %v1055
        %v1201 = vunpack.c.l.b16 %v1056
        %v1202 = vunpack.c.h.b16 %v1056
        %v1203 = vunpack.c.l.b16 %v1057
        %v1204 = vunpack.c.h.b16 %v1057
        %v1205 = vunpack.c.l.b16 %v1058
        %v1206 = vunpack.c.h.b16 %v1058
        %v1207 = vunpack.c.l.b16 %v1059
        %v1208 = vunpack.c.h.b16 %v1059
        %v1209 = vunpack.c.l.b16 %v1060
        %v1210 = vunpack.c.h.b16 %v1060
        %v1211 = vunpack.c.l.b16 %v1061
        %v1212 = vunpack.c.h.b16 %v1061
        %v1213 = vunpack.c.l.b16 %v1062
        %v1214 = vunpack.c.h.b16 %v1062
        %v1215 = vunpack.c.l.b16 %v1063
        %v1216 = vunpack.c.h.b16 %v1063
        %v1217 = vunpack.c.l.b16 %v1064
        %v1218 = vunpack.c.h.b16 %v1064
        %v1219 = vunpack.c.l.b16 %v1065
        %v1220 = vunpack.c.h.b16 %v1065
        %v1221 = vunpack.c.l.b16 %v1066
        %v1222 = vunpack.c.h.b16 %v1066
        %v1223 = vunpack.c.l.b16 %v1067
        %v1224 = vunpack.c.h.b16 %v1067
        %v1225 = vunpack.c.l.b16 %v1068
        %v1226 = vunpack.c.h.b16 %v1068
        %v1227 = vunpack.c.l.b16 %v1069
        %v1228 = vunpack.c.h.b16 %v1069
        %v1229 = vunpack.c.l.b16 %v1070
        %v1230 = vunpack.c.h.b16 %v1070
        %v1231 = vunpack.c.l.b16 %v1071
        %v1232 = vunpack.c.h.b16 %v1071
        %v1233 = vunpack.c.l.b16 %v1072
        %v1234 = vunpack.c.h.b16 %v1072
        %v1235 = vunpack.c.l.b16 %v1073
        %v1236 = vunpack.c.h.b16 %v1073
        %v1237 = vunpack.c.l.b16 %v1074
        %v1238 = vunpack.c.h.b16 %v1074
        %v1239 = vunpack.c.l.b16 %v1075
        %v1240 = vunpack.c.h.b16 %v1075
        %v1241 = vunpack.c.l.b16 %v1076
        %v1242 = vunpack.c.h.b16 %v1076
        %v1243 = vunpack.c.l.b16 %v1077
        %v1244 = vunpack.c.h.b16 %v1077
        %v1245 = vunpack.c.l.b16 %v1078
        %v1246 = vunpack.c.h.b16 %v1078
        %v1247 = vunpack.c.l.b16 %v1079
        %v1248 = vunpack.c.h.b16 %v1079
        %v1249 = vunpack.c.l.b16 %v1080
        %v1250 = vunpack.c.h.b16 %v1080
        %v1251 = vunpack.c.l.b16 %v1081
        %v1252 = vunpack.c.h.b16 %v1081
        %v1253 = vunpack.c.l.b16 %v1082
        %v1254 = vunpack.c.h.b16 %v1082
        %v1255 = vunpack.c.l.b16 %v1083
        %v1256 = vunpack.c.h.b16 %v1083
        %v1257 = vunpack.c.l.b16 %v1084
        %v1258 = vunpack.c.h.b16 %v1084
        %v1259 = vunpack.c.l.b16 %v1085
        %v1260 = vunpack.c.h.b16 %v1085
        %v1261 = vunpack.c.l.b16 %v1086
        %v1262 = vunpack.c.h.b16 %v1086
        %v1263 = vunpack.c.l.b16 %v1087
        %v1264 = vunpack.c.h.b16 %v1087
        %v1265 = vunpack.c.l.b16 %v1088
        %v1266 = vunpack.c.h.b16 %v1088
        %v1267 = vunpack.c.l.b16 %v1089
        %v1268 = vunpack.c.h.b16 %v1089
        %v1269 = vunpack.c.l.b16 %v1090
        %v1270 = vunpack.c.h.b16 %v1090
        %v1271 = vunpack.c.l.b16 %v1091
        %v1272 = vunpack.c.h.b16 %v1091
        %v1273 = vunpack.c.l.b16 %v1092
        %v1274 = vunpack.c.h.b16 %v1092
        %v1275 = vunpack.c.l.b16 %v1093
        %v1276 = vunpack.c.h.b16 %v1093
        %v1277 = vunpack.c.l.b16 %v1094
        %v1278 = vunpack.c.h.b16 %v1094
        %v1279 = vunpack.c.l.b16 %v1095
        %v1280 = vunpack.c.h.b16 %v1095
        %v1281 = vunpack.c.l.b16 %v1096
        %v1282 = vunpack.c.h.b16 %v1096
        %v1283 = vunpack.c.l.b16 %v1097
        %v1284 = vunpack.c.h.b16 %v1097
        %v1285 = vunpack.c.l.b16 %v1098
        %v1286 = vunpack.c.h.b16 %v1098
        %v1287 = vunpack.c.l.b16 %v1099
        %v1288 = vunpack.c.h.b16 %v1099
        %v1289 = vunpack.c.l.b16 %v1100
        %v1290 = vunpack.c.h.b16 %v1100
        %v1291 = vunpack.c.l.b16 %v1101
        %v1292 = vunpack.c.h.b16 %v1101
        %v1293 = vunpack.c.l.b16 %v1102
        %v1294 = vunpack.c.h.b16 %v1102
        %v1295 = vunpack.c.l.b16 %v1103
        %v1296 = vunpack.c.h.b16 %v1103
        %v1297 = vunpack.c.l.b16 %v1104
        %v1298 = vunpack.c.h.b16 %v1104
        %v1299 = vunpack.c.l.b16 %v1105
        %v1300 = vunpack.c.h.b16 %v1105
        %v1301 = vunpack.c.l.b16 %v1106
        %v1302 = vunpack.c.h.b16 %v1106
        %v1303 = vunpack.c.l.b16 %v1107
        %v1304 = vunpack.c.h.b16 %v1107
        %v1305 = vunpack.c.l.b16 %v1108
        %v1306 = vunpack.c.h.b16 %v1108
        %v1307 = vunpack.c.l.b16 %v1109
        %v1308 = vunpack.c.h.b16 %v1109
        %v1309 = vunpack.c.l.b16 %v1110
        %v1310 = vunpack.c.h.b16 %v1110
        %v1311 = vunpack.c.l.b16 %v1111
        %v1312 = vunpack.c.h.b16 %v1111
        %v1313 = vunpack.c.l.b16 %v1112
        %v1314 = vunpack.c.h.b16 %v1112
        %v1315 = vunpack.c.l.b16 %v1113
        %v1316 = vunpack.c.h.b16 %v1113
        %v1317 = vunpack.c.l.b16 %v1114
        %v1318 = vunpack.c.h.b16 %v1114
        %v1319 = vunpack.c.l.b16 %v1115
        %v1320 = vunpack.c.h.b16 %v1115
        %v1321 = vunpack.c.l.b16 %v1116
        %v1322 = vunpack.c.h.b16 %v1116
        %v1323 = vunpack.c.l.b16 %v1117
        %v1324 = vunpack.c.h.b16 %v1117
        %v1325 = vunpack.c.l.b16 %v1118
        %v1326 = vunpack.c.h.b16 %v1118
        %v1327 = vpack.c.b16 %v1203, %v1199
        %v1328 = vpack.c.b16 %v1204, %v1200
        %v1329 = vpack.c.b16 %v1205, %v1201
        %v1330 = vpack.c.b16 %v1206, %v1202
        %v1331 = vpack.c.b16 %v1211, %v1207
        %v1332 = vpack.c.b16 %v1212, %v1208
        %v1333 = vpack.c.b16 %v1213, %v1209
        %v1334 = vpack.c.b16 %v1214, %v1210
        %v1335 = vpack.c.b16 %v1219, %v1215
        %v1336 = vpack.c.b16 %v1220, %v1216
        %v1337 = vpack.c.b16 %v1221, %v1217
        %v1338 = vpack.c.b16 %v1222, %v1218
        %v1339 = vpack.c.b16 %v1227, %v1223
        %v1340 = vpack.c.b16 %v1228, %v1224
        %v1341 = vpack.c.b16 %v1229, %v1225
        %v1342 = vpack.c.b16 %v1230, %v1226
        %v1343 = vpack.c.b16 %v1235, %v1231
        %v1344 = vpack.c.b16 %v1236, %v1232
        %v1345 = vpack.c.b16 %v1237, %v1233
        %v1346 = vpack.c.b16 %v1238, %v1234
        %v1347 = vpack.c.b16 %v1243, %v1239
        %v1348 = vpack.c.b16 %v1244, %v1240
        %v1349 = vpack.c.b16 %v1245, %v1241
        %v1350 = vpack.c.b16 %v1246, %v1242
        %v1351 = vpack.c.b16 %v1251, %v1247
        %v1352 = vpack.c.b16 %v1252, %v1248
        %v1353 = vpack.c.b16 %v1253, %v1249
        %v1354 = vpack.c.b16 %v1254, %v1250
        %v1355 = vpack.c.b16 %v1259, %v1255
        %v1356 = vpack.c.b16 %v1260, %v1256
        %v1357 = vpack.c.b16 %v1261, %v1257
        %v1358 = vpack.c.b16 %v1262, %v1258
        %v1359 = vpack.c.b16 %v1267, %v1263
        %v1360 = vpack.c.b16 %v1268, %v1264
        %v1361 = vpack.c.b16 %v1269, %v1265
        %v1362 = vpack.c.b16 %v1270, %v1266
        %v1363 = vpack.c.b16 %v1275, %v1271
        %v1364 = vpack.c.b16 %v1276, %v1272
        %v1365 = vpack.c.b16 %v1277, %v1273
        %v1366 = vpack.c.b16 %v1278, %v1274
        %v1367 = vpack.c.b16 %v1283, %v1279
        %v1368 = vpack.c.b16 %v1284, %v1280
        %v1369 = vpack.c.b16 %v1285, %v1281
        %v1370 = vpack.c.b16 %v1286, %v1282
        %v1371 = vpack.c.b16 %v1291, %v1287
        %v1372 = vpack.c.b16 %v1292, %v1288
        %v1373 = vpack.c.b16 %v1293, %v1289
        %v1374 = vpack.c.b16 %v1294, %v1290
        %v1375 = vpack.c.b16 %v1299, %v1295
        %v1376 = vpack.c.b16 %v1300, %v1296
        %v1377 = vpack.c.b16 %v1301, %v1297
        %v1378 = vpack.c.b16 %v1302, %v1298
        %v1379 = vpack.c.b16 %v1307, %v1303
        %v1380 = vpack.c.b16 %v1308, %v1304
        %v1381 = vpack.c.b16 %v1309, %v1305
        %v1382 = vpack.c.b16 %v1310, %v1306
        %v1383 = vpack.c.b16 %v1315, %v1311
        %v1384 = vpack.c.b16 %v1316, %v1312
        %v1385 = vpack.c.b16 %v1317, %v1313
        %v1386 = vpack.c.b16 %v1318, %v1314
        %v1387 = vpack.c.b16 %v1323, %v1319
        %v1388 = vpack.c.b16 %v1324, %v1320
        %v1389 = vpack.c.b16 %v1325, %v1321
        %v1390 = vpack.c.b16 %v1326, %v1322
        %1455 = vmatpush.bf16.msra.mxu0 %v1355
        %1456 = vmatpush.bf16.msra.mxu0 %v1351
        %1457 = vmatpush.bf16.msra.mxu0 %v1347
        %1458 = vmatpush.bf16.msra.mxu0 %v1343
        %1459 = vmatpush.bf16.msra.mxu0 %v1339
        %1460 = vmatpush.bf16.msra.mxu0 %v1335
        %1461 = vmatpush.bf16.msra.mxu0 %v1331
        %1462 = vmatpush.bf16.msra.mxu0 %v1327
        %1463 = vmatmul.bf16.gmra.mxu0 %v1125
        %v1464 = vpop.f32.mrf.mxu0
        %v1465 = vadd.f32 0.0, %v1464
        %v1466 = vpop.f32.mrf.mxu0
        %v1467 = vadd.f32 0.0, %v1466
        %1468 = vdwg.mxu0
        %1469 = vmatpush.bf16.msra.mxu0 %v1387
        %1470 = vmatpush.bf16.msra.mxu0 %v1383
        %1471 = vmatpush.bf16.msra.mxu0 %v1379
        %1472 = vmatpush.bf16.msra.mxu0 %v1375
        %1473 = vmatpush.bf16.msra.mxu0 %v1371
        %1474 = vmatpush.bf16.msra.mxu0 %v1367
        %1475 = vmatpush.bf16.msra.mxu0 %v1363
        %1476 = vmatpush.bf16.msra.mxu0 %v1359
        %1477 = vmatmul.bf16.gmra.mxu0 %v1132
        %v1478 = vpop.f32.mrf.mxu0
        %v1479 = vadd.f32 %v1465, %v1478
        %v1480 = vpop.f32.mrf.mxu0
        %v1481 = vadd.f32 %v1467, %v1480
        %1482 = vdwg.mxu0
        %1483 = vmatpush.bf16.msra.mxu0 %v1356
        %1484 = vmatpush.bf16.msra.mxu0 %v1352
        %1485 = vmatpush.bf16.msra.mxu0 %v1348
        %1486 = vmatpush.bf16.msra.mxu0 %v1344
        %1487 = vmatpush.bf16.msra.mxu0 %v1340
        %1488 = vmatpush.bf16.msra.mxu0 %v1336
        %1489 = vmatpush.bf16.msra.mxu0 %v1332
        %1490 = vmatpush.bf16.msra.mxu0 %v1328
        %1491 = vmatmul.bf16.gmra.mxu0 %v1125
        %v1492 = vpop.f32.mrf.mxu0
        %v1493 = vadd.f32 0.0, %v1492
        %v1494 = vpop.f32.mrf.mxu0
        %v1495 = vadd.f32 0.0, %v1494
        %1496 = vdwg.mxu0
        %1497 = vmatpush.bf16.msra.mxu0 %v1388
        %1498 = vmatpush.bf16.msra.mxu0 %v1384
        %1499 = vmatpush.bf16.msra.mxu0 %v1380
        %1500 = vmatpush.bf16.msra.mxu0 %v1376
        %1501 = vmatpush.bf16.msra.mxu0 %v1372
        %1502 = vmatpush.bf16.msra.mxu0 %v1368
        %1503 = vmatpush.bf16.msra.mxu0 %v1364
        %1504 = vmatpush.bf16.msra.mxu0 %v1360
        %1505 = vmatmul.bf16.gmra.mxu0 %v1132
        %v1506 = vpop.f32.mrf.mxu0
        %v1507 = vadd.f32 %v1493, %v1506
        %v1508 = vpop.f32.mrf.mxu0
        %v1509 = vadd.f32 %v1495, %v1508
        %1510 = vdwg.mxu0
        %1511 = vmatpush.bf16.msra.mxu0 %v1357
        %1512 = vmatpush.bf16.msra.mxu0 %v1353
        %1513 = vmatpush.bf16.msra.mxu0 %v1349
        %1514 = vmatpush.bf16.msra.mxu0 %v1345
        %1515 = vmatpush.bf16.msra.mxu0 %v1341
        %1516 = vmatpush.bf16.msra.mxu0 %v1337
        %1517 = vmatpush.bf16.msra.mxu0 %v1333
        %1518 = vmatpush.bf16.msra.mxu0 %v1329
        %1519 = vmatmul.bf16.gmra.mxu0 %v1125
        %v1520 = vpop.f32.mrf.mxu0
        %v1521 = vadd.f32 0.0, %v1520
        %v1522 = vpop.f32.mrf.mxu0
        %v1523 = vadd.f32 0.0, %v1522
        %1524 = vdwg.mxu0
        %1525 = vmatpush.bf16.msra.mxu0 %v1389
        %1526 = vmatpush.bf16.msra.mxu0 %v1385
        %1527 = vmatpush.bf16.msra.mxu0 %v1381
        %1528 = vmatpush.bf16.msra.mxu0 %v1377
        %1529 = vmatpush.bf16.msra.mxu0 %v1373
        %1530 = vmatpush.bf16.msra.mxu0 %v1369
        %1531 = vmatpush.bf16.msra.mxu0 %v1365
        %1532 = vmatpush.bf16.msra.mxu0 %v1361
        %1533 = vmatmul.bf16.gmra.mxu0 %v1132
        %v1534 = vpop.f32.mrf.mxu0
        %v1535 = vadd.f32 %v1521, %v1534
        %v1536 = vpop.f32.mrf.mxu0
        %v1537 = vadd.f32 %v1523, %v1536
        %1538 = vdwg.mxu0
        %1539 = vmatpush.bf16.msra.mxu0 %v1358
        %1540 = vmatpush.bf16.msra.mxu0 %v1354
        %1541 = vmatpush.bf16.msra.mxu0 %v1350
        %1542 = vmatpush.bf16.msra.mxu0 %v1346
        %1543 = vmatpush.bf16.msra.mxu0 %v1342
        %1544 = vmatpush.bf16.msra.mxu0 %v1338
        %1545 = vmatpush.bf16.msra.mxu0 %v1334
        %1546 = vmatpush.bf16.msra.mxu0 %v1330
        %1547 = vmatmul.bf16.gmra.mxu0 %v1125
        %v1548 = vpop.f32.mrf.mxu0
        %v1549 = vadd.f32 0.0, %v1548
        %v1550 = vpop.f32.mrf.mxu0
        %v1551 = vadd.f32 0.0, %v1550
        %1552 = vdwg.mxu0
        %1553 = vmatpush.bf16.msra.mxu0 %v1390
        %1554 = vmatpush.bf16.msra.mxu0 %v1386
        %1555 = vmatpush.bf16.msra.mxu0 %v1382
        %1556 = vmatpush.bf16.msra.mxu0 %v1378
        %1557 = vmatpush.bf16.msra.mxu0 %v1374
        %1558 = vmatpush.bf16.msra.mxu0 %v1370
        %1559 = vmatpush.bf16.msra.mxu0 %v1366
        %1560 = vmatpush.bf16.msra.mxu0 %v1362
        %1561 = vmatmul.bf16.gmra.mxu0 %v1132
        %v1562 = vpop.f32.mrf.mxu0
        %v1563 = vadd.f32 %v1549, %v1562
        %v1564 = vpop.f32.mrf.mxu0
        %v1565 = vadd.f32 %v1551, %v1564
        %1566 = vdwg.mxu0
        %v1631 = vunpack.c.l.b16 %v991
        %v1632 = vunpack.c.h.b16 %v991
        %v1633 = vunpack.c.l.b16 %v992
        %v1634 = vunpack.c.h.b16 %v992
        %v1635 = vunpack.c.l.b16 %v993
        %v1636 = vunpack.c.h.b16 %v993
        %v1637 = vunpack.c.l.b16 %v994
        %v1638 = vunpack.c.h.b16 %v994
        %v1639 = vunpack.c.l.b16 %v995
        %v1640 = vunpack.c.h.b16 %v995
        %v1641 = vunpack.c.l.b16 %v996
        %v1642 = vunpack.c.h.b16 %v996
        %v1643 = vunpack.c.l.b16 %v997
        %v1644 = vunpack.c.h.b16 %v997
        %v1645 = vunpack.c.l.b16 %v998
        %v1646 = vunpack.c.h.b16 %v998
        %v1647 = vunpack.c.l.b16 %v999
        %v1648 = vunpack.c.h.b16 %v999
        %v1649 = vunpack.c.l.b16 %v1000
        %v1650 = vunpack.c.h.b16 %v1000
        %v1651 = vunpack.c.l.b16 %v1001
        %v1652 = vunpack.c.h.b16 %v1001
        %v1653 = vunpack.c.l.b16 %v1002
        %v1654 = vunpack.c.h.b16 %v1002
        %v1655 = vunpack.c.l.b16 %v1003
        %v1656 = vunpack.c.h.b16 %v1003
        %v1657 = vunpack.c.l.b16 %v1004
        %v1658 = vunpack.c.h.b16 %v1004
        %v1659 = vunpack.c.l.b16 %v1005
        %v1660 = vunpack.c.h.b16 %v1005
        %v1661 = vunpack.c.l.b16 %v1006
        %v1662 = vunpack.c.h.b16 %v1006
        %v1663 = vunpack.c.l.b16 %v1007
        %v1664 = vunpack.c.h.b16 %v1007
        %v1665 = vunpack.c.l.b16 %v1008
        %v1666 = vunpack.c.h.b16 %v1008
        %v1667 = vunpack.c.l.b16 %v1009
        %v1668 = vunpack.c.h.b16 %v1009
        %v1669 = vunpack.c.l.b16 %v1010
        %v1670 = vunpack.c.h.b16 %v1010
        %v1671 = vunpack.c.l.b16 %v1011
        %v1672 = vunpack.c.h.b16 %v1011
        %v1673 = vunpack.c.l.b16 %v1012
        %v1674 = vunpack.c.h.b16 %v1012
        %v1675 = vunpack.c.l.b16 %v1013
        %v1676 = vunpack.c.h.b16 %v1013
        %v1677 = vunpack.c.l.b16 %v1014
        %v1678 = vunpack.c.h.b16 %v1014
        %v1679 = vunpack.c.l.b16 %v1015
        %v1680 = vunpack.c.h.b16 %v1015
        %v1681 = vunpack.c.l.b16 %v1016
        %v1682 = vunpack.c.h.b16 %v1016
        %v1683 = vunpack.c.l.b16 %v1017
        %v1684 = vunpack.c.h.b16 %v1017
        %v1685 = vunpack.c.l.b16 %v1018
        %v1686 = vunpack.c.h.b16 %v1018
        %v1687 = vunpack.c.l.b16 %v1019
        %v1688 = vunpack.c.h.b16 %v1019
        %v1689 = vunpack.c.l.b16 %v1020
        %v1690 = vunpack.c.h.b16 %v1020
        %v1691 = vunpack.c.l.b16 %v1021
        %v1692 = vunpack.c.h.b16 %v1021
        %v1693 = vunpack.c.l.b16 %v1022
        %v1694 = vunpack.c.h.b16 %v1022
        %v1695 = vunpack.c.l.b16 %v1023
        %v1696 = vunpack.c.h.b16 %v1023
        %v1697 = vunpack.c.l.b16 %v1024
        %v1698 = vunpack.c.h.b16 %v1024
        %v1699 = vunpack.c.l.b16 %v1025
        %v1700 = vunpack.c.h.b16 %v1025
        %v1701 = vunpack.c.l.b16 %v1026
        %v1702 = vunpack.c.h.b16 %v1026
        %v1703 = vunpack.c.l.b16 %v1027
        %v1704 = vunpack.c.h.b16 %v1027
        %v1705 = vunpack.c.l.b16 %v1028
        %v1706 = vunpack.c.h.b16 %v1028
        %v1707 = vunpack.c.l.b16 %v1029
        %v1708 = vunpack.c.h.b16 %v1029
        %v1709 = vunpack.c.l.b16 %v1030
        %v1710 = vunpack.c.h.b16 %v1030
        %v1711 = vunpack.c.l.b16 %v1031
        %v1712 = vunpack.c.h.b16 %v1031
        %v1713 = vunpack.c.l.b16 %v1032
        %v1714 = vunpack.c.h.b16 %v1032
        %v1715 = vunpack.c.l.b16 %v1033
        %v1716 = vunpack.c.h.b16 %v1033
        %v1717 = vunpack.c.l.b16 %v1034
        %v1718 = vunpack.c.h.b16 %v1034
        %v1719 = vunpack.c.l.b16 %v1035
        %v1720 = vunpack.c.h.b16 %v1035
        %v1721 = vunpack.c.l.b16 %v1036
        %v1722 = vunpack.c.h.b16 %v1036
        %v1723 = vunpack.c.l.b16 %v1037
        %v1724 = vunpack.c.h.b16 %v1037
        %v1725 = vunpack.c.l.b16 %v1038
        %v1726 = vunpack.c.h.b16 %v1038
        %v1727 = vunpack.c.l.b16 %v1039
        %v1728 = vunpack.c.h.b16 %v1039
        %v1729 = vunpack.c.l.b16 %v1040
        %v1730 = vunpack.c.h.b16 %v1040
        %v1731 = vunpack.c.l.b16 %v1041
        %v1732 = vunpack.c.h.b16 %v1041
        %v1733 = vunpack.c.l.b16 %v1042
        %v1734 = vunpack.c.h.b16 %v1042
        %v1735 = vunpack.c.l.b16 %v1043
        %v1736 = vunpack.c.h.b16 %v1043
        %v1737 = vunpack.c.l.b16 %v1044
        %v1738 = vunpack.c.h.b16 %v1044
        %v1739 = vunpack.c.l.b16 %v1045
        %v1740 = vunpack.c.h.b16 %v1045
        %v1741 = vunpack.c.l.b16 %v1046
        %v1742 = vunpack.c.h.b16 %v1046
        %v1743 = vunpack.c.l.b16 %v1047
        %v1744 = vunpack.c.h.b16 %v1047
        %v1745 = vunpack.c.l.b16 %v1048
        %v1746 = vunpack.c.h.b16 %v1048
        %v1747 = vunpack.c.l.b16 %v1049
        %v1748 = vunpack.c.h.b16 %v1049
        %v1749 = vunpack.c.l.b16 %v1050
        %v1750 = vunpack.c.h.b16 %v1050
        %v1751 = vunpack.c.l.b16 %v1051
        %v1752 = vunpack.c.h.b16 %v1051
        %v1753 = vunpack.c.l.b16 %v1052
        %v1754 = vunpack.c.h.b16 %v1052
        %v1755 = vunpack.c.l.b16 %v1053
        %v1756 = vunpack.c.h.b16 %v1053
        %v1757 = vunpack.c.l.b16 %v1054
        %v1758 = vunpack.c.h.b16 %v1054
        %v1759 = vpack.c.b16 %v1635, %v1631
        %v1760 = vpack.c.b16 %v1636, %v1632
        %v1761 = vpack.c.b16 %v1637, %v1633
        %v1762 = vpack.c.b16 %v1638, %v1634
        %v1763 = vpack.c.b16 %v1643, %v1639
        %v1764 = vpack.c.b16 %v1644, %v1640
        %v1765 = vpack.c.b16 %v1645, %v1641
        %v1766 = vpack.c.b16 %v1646, %v1642
        %v1767 = vpack.c.b16 %v1651, %v1647
        %v1768 = vpack.c.b16 %v1652, %v1648
        %v1769 = vpack.c.b16 %v1653, %v1649
        %v1770 = vpack.c.b16 %v1654, %v1650
        %v1771 = vpack.c.b16 %v1659, %v1655
        %v1772 = vpack.c.b16 %v1660, %v1656
        %v1773 = vpack.c.b16 %v1661, %v1657
        %v1774 = vpack.c.b16 %v1662, %v1658
        %v1775 = vpack.c.b16 %v1667, %v1663
        %v1776 = vpack.c.b16 %v1668, %v1664
        %v1777 = vpack.c.b16 %v1669, %v1665
        %v1778 = vpack.c.b16 %v1670, %v1666
        %v1779 = vpack.c.b16 %v1675, %v1671
        %v1780 = vpack.c.b16 %v1676, %v1672
        %v1781 = vpack.c.b16 %v1677, %v1673
        %v1782 = vpack.c.b16 %v1678, %v1674
        %v1783 = vpack.c.b16 %v1683, %v1679
        %v1784 = vpack.c.b16 %v1684, %v1680
        %v1785 = vpack.c.b16 %v1685, %v1681
        %v1786 = vpack.c.b16 %v1686, %v1682
        %v1787 = vpack.c.b16 %v1691, %v1687
        %v1788 = vpack.c.b16 %v1692, %v1688
        %v1789 = vpack.c.b16 %v1693, %v1689
        %v1790 = vpack.c.b16 %v1694, %v1690
        %v1791 = vpack.c.b16 %v1699, %v1695
        %v1792 = vpack.c.b16 %v1700, %v1696
        %v1793 = vpack.c.b16 %v1701, %v1697
        %v1794 = vpack.c.b16 %v1702, %v1698
        %v1795 = vpack.c.b16 %v1707, %v1703
        %v1796 = vpack.c.b16 %v1708, %v1704
        %v1797 = vpack.c.b16 %v1709, %v1705
        %v1798 = vpack.c.b16 %v1710, %v1706
        %v1799 = vpack.c.b16 %v1715, %v1711
        %v1800 = vpack.c.b16 %v1716, %v1712
        %v1801 = vpack.c.b16 %v1717, %v1713
        %v1802 = vpack.c.b16 %v1718, %v1714
        %v1803 = vpack.c.b16 %v1723, %v1719
        %v1804 = vpack.c.b16 %v1724, %v1720
        %v1805 = vpack.c.b16 %v1725, %v1721
        %v1806 = vpack.c.b16 %v1726, %v1722
        %v1807 = vpack.c.b16 %v1731, %v1727
        %v1808 = vpack.c.b16 %v1732, %v1728
        %v1809 = vpack.c.b16 %v1733, %v1729
        %v1810 = vpack.c.b16 %v1734, %v1730
        %v1811 = vpack.c.b16 %v1739, %v1735
        %v1812 = vpack.c.b16 %v1740, %v1736
        %v1813 = vpack.c.b16 %v1741, %v1737
        %v1814 = vpack.c.b16 %v1742, %v1738
        %v1815 = vpack.c.b16 %v1747, %v1743
        %v1816 = vpack.c.b16 %v1748, %v1744
        %v1817 = vpack.c.b16 %v1749, %v1745
        %v1818 = vpack.c.b16 %v1750, %v1746
        %v1819 = vpack.c.b16 %v1755, %v1751
        %v1820 = vpack.c.b16 %v1756, %v1752
        %v1821 = vpack.c.b16 %v1757, %v1753
        %v1822 = vpack.c.b16 %v1758, %v1754
        %1887 = vmatpush.bf16.msra.mxu0 %v1787
        %1888 = vmatpush.bf16.msra.mxu0 %v1783
        %1889 = vmatpush.bf16.msra.mxu0 %v1779
        %1890 = vmatpush.bf16.msra.mxu0 %v1775
        %1891 = vmatpush.bf16.msra.mxu0 %v1771
        %1892 = vmatpush.bf16.msra.mxu0 %v1767
        %1893 = vmatpush.bf16.msra.mxu0 %v1763
        %1894 = vmatpush.bf16.msra.mxu0 %v1759
        %1895 = vmatmul.bf16.gmra.mxu0 %v989
        %v1896 = vpop.f32.mrf.mxu0
        %v1897 = vadd.f32 %v1479, %v1896
        %v1898 = vpop.f32.mrf.mxu0
        %v1899 = vadd.f32 %v1481, %v1898
        %1900 = vdwg.mxu0
        %1901 = vmatpush.bf16.msra.mxu0 %v1819
        %1902 = vmatpush.bf16.msra.mxu0 %v1815
        %1903 = vmatpush.bf16.msra.mxu0 %v1811
        %1904 = vmatpush.bf16.msra.mxu0 %v1807
        %1905 = vmatpush.bf16.msra.mxu0 %v1803
        %1906 = vmatpush.bf16.msra.mxu0 %v1799
        %1907 = vmatpush.bf16.msra.mxu0 %v1795
        %1908 = vmatpush.bf16.msra.mxu0 %v1791
        %1909 = vmatmul.bf16.gmra.mxu0 %v990
        %v1910 = vpop.f32.mrf.mxu0
        %v1911 = vadd.f32 %v1897, %v1910
        %v1912 = vpop.f32.mrf.mxu0
        %v1913 = vadd.f32 %v1899, %v1912
        %1914 = vdwg.mxu0
        %1915 = vmatpush.bf16.msra.mxu0 %v1788
        %1916 = vmatpush.bf16.msra.mxu0 %v1784
        %1917 = vmatpush.bf16.msra.mxu0 %v1780
        %1918 = vmatpush.bf16.msra.mxu0 %v1776
        %1919 = vmatpush.bf16.msra.mxu0 %v1772
        %1920 = vmatpush.bf16.msra.mxu0 %v1768
        %1921 = vmatpush.bf16.msra.mxu0 %v1764
        %1922 = vmatpush.bf16.msra.mxu0 %v1760
        %1923 = vmatmul.bf16.gmra.mxu0 %v989
        %v1924 = vpop.f32.mrf.mxu0
        %v1925 = vadd.f32 %v1507, %v1924
        %v1926 = vpop.f32.mrf.mxu0
        %v1927 = vadd.f32 %v1509, %v1926
        %1928 = vdwg.mxu0
        %1929 = vmatpush.bf16.msra.mxu0 %v1820
        %1930 = vmatpush.bf16.msra.mxu0 %v1816
        %1931 = vmatpush.bf16.msra.mxu0 %v1812
        %1932 = vmatpush.bf16.msra.mxu0 %v1808
        %1933 = vmatpush.bf16.msra.mxu0 %v1804
        %1934 = vmatpush.bf16.msra.mxu0 %v1800
        %1935 = vmatpush.bf16.msra.mxu0 %v1796
        %1936 = vmatpush.bf16.msra.mxu0 %v1792
        %1937 = vmatmul.bf16.gmra.mxu0 %v990
        %v1938 = vpop.f32.mrf.mxu0
        %v1939 = vadd.f32 %v1925, %v1938
        %v1940 = vpop.f32.mrf.mxu0
        %v1941 = vadd.f32 %v1927, %v1940
        %1942 = vdwg.mxu0
        %1943 = vmatpush.bf16.msra.mxu0 %v1789
        %1944 = vmatpush.bf16.msra.mxu0 %v1785
        %1945 = vmatpush.bf16.msra.mxu0 %v1781
        %1946 = vmatpush.bf16.msra.mxu0 %v1777
        %1947 = vmatpush.bf16.msra.mxu0 %v1773
        %1948 = vmatpush.bf16.msra.mxu0 %v1769
        %1949 = vmatpush.bf16.msra.mxu0 %v1765
        %1950 = vmatpush.bf16.msra.mxu0 %v1761
        %1951 = vmatmul.bf16.gmra.mxu0 %v989
        %v1952 = vpop.f32.mrf.mxu0
        %v1953 = vadd.f32 %v1535, %v1952
        %v1954 = vpop.f32.mrf.mxu0
        %v1955 = vadd.f32 %v1537, %v1954
        %1956 = vdwg.mxu0
        %1957 = vmatpush.bf16.msra.mxu0 %v1821
        %1958 = vmatpush.bf16.msra.mxu0 %v1817
        %1959 = vmatpush.bf16.msra.mxu0 %v1813
        %1960 = vmatpush.bf16.msra.mxu0 %v1809
        %1961 = vmatpush.bf16.msra.mxu0 %v1805
        %1962 = vmatpush.bf16.msra.mxu0 %v1801
        %1963 = vmatpush.bf16.msra.mxu0 %v1797
        %1964 = vmatpush.bf16.msra.mxu0 %v1793
        %1965 = vmatmul.bf16.gmra.mxu0 %v990
        %v1966 = vpop.f32.mrf.mxu0
        %v1967 = vadd.f32 %v1953, %v1966
        %v1968 = vpop.f32.mrf.mxu0
        %v1969 = vadd.f32 %v1955, %v1968
        %1970 = vdwg.mxu0
        %1971 = vmatpush.bf16.msra.mxu0 %v1790
        %1972 = vmatpush.bf16.msra.mxu0 %v1786
        %1973 = vmatpush.bf16.msra.mxu0 %v1782
        %1974 = vmatpush.bf16.msra.mxu0 %v1778
        %1975 = vmatpush.bf16.msra.mxu0 %v1774
        %1976 = vmatpush.bf16.msra.mxu0 %v1770
        %1977 = vmatpush.bf16.msra.mxu0 %v1766
        %1978 = vmatpush.bf16.msra.mxu0 %v1762
        %1979 = vmatmul.bf16.gmra.mxu0 %v989
        %v1980 = vpop.f32.mrf.mxu0
        %v1981 = vadd.f32 %v1563, %v1980
        %v1982 = vpop.f32.mrf.mxu0
        %v1983 = vadd.f32 %v1565, %v1982
        %1984 = vdwg.mxu0
        %1985 = vmatpush.bf16.msra.mxu0 %v1822
        %1986 = vmatpush.bf16.msra.mxu0 %v1818
        %1987 = vmatpush.bf16.msra.mxu0 %v1814
        %1988 = vmatpush.bf16.msra.mxu0 %v1810
        %1989 = vmatpush.bf16.msra.mxu0 %v1806
        %1990 = vmatpush.bf16.msra.mxu0 %v1802
        %1991 = vmatpush.bf16.msra.mxu0 %v1798
        %1992 = vmatpush.bf16.msra.mxu0 %v1794
        %1993 = vmatmul.bf16.gmra.mxu0 %v990
        %v1994 = vpop.f32.mrf.mxu0
        %v1995 = vadd.f32 %v1981, %v1994
        %v1996 = vpop.f32.mrf.mxu0
        %v1997 = vadd.f32 %v1983, %v1996
        %1998 = vdwg.mxu0
        %v1999 = vld [vmem:[#allocation9] sm:$0xff]
        %v2000 = vld [vmem:[#allocation9 + $0x8] sm:$0xff]
        %v2001 = vld [vmem:[#allocation9 + $0x10] sm:$0xff]
        %v2002 = vld [vmem:[#allocation9 + $0x18] sm:$0xff]
        %v2003 = vld [vmem:[#allocation9 + $0x20] sm:$0xff]
        %v2004 = vld [vmem:[#allocation9 + $0x28] sm:$0xff]
        %v2005 = vld [vmem:[#allocation9 + $0x30] sm:$0xff]
        %v2006 = vld [vmem:[#allocation9 + $0x38] sm:$0xff]
        %v2007 = vld [vmem:[#allocation9 + $0x40] sm:$0xff]
        %v2008 = vld [vmem:[#allocation9 + $0x48] sm:$0xff]
        %v2009 = vld [vmem:[#allocation9 + $0x50] sm:$0xff]
        %v2010 = vld [vmem:[#allocation9 + $0x58] sm:$0xff]
        %v2011 = vld [vmem:[#allocation9 + $0x60] sm:$0xff]
        %v2012 = vld [vmem:[#allocation9 + $0x68] sm:$0xff]
        %v2013 = vld [vmem:[#allocation9 + $0x70] sm:$0xff]
        %v2014 = vld [vmem:[#allocation9 + $0x78] sm:$0xff]
        %v2015 = vld [vmem:[#allocation9 + $0x80] sm:$0xff]
        %v2016 = vld [vmem:[#allocation9 + $0x88] sm:$0xff]
        %v2017 = vld [vmem:[#allocation9 + $0x90] sm:$0xff]
        %v2018 = vld [vmem:[#allocation9 + $0x98] sm:$0xff]
        %v2019 = vld [vmem:[#allocation9 + $0xa0] sm:$0xff]
        %v2020 = vld [vmem:[#allocation9 + $0xa8] sm:$0xff]
        %v2021 = vld [vmem:[#allocation9 + $0xb0] sm:$0xff]
        %v2022 = vld [vmem:[#allocation9 + $0xb8] sm:$0xff]
        %v2023 = vld [vmem:[#allocation9 + $0xc0] sm:$0xff]
        %v2024 = vld [vmem:[#allocation9 + $0xc8] sm:$0xff]
        %v2025 = vld [vmem:[#allocation9 + $0xd0] sm:$0xff]
        %v2026 = vld [vmem:[#allocation9 + $0xd8] sm:$0xff]
        %v2027 = vld [vmem:[#allocation9 + $0xe0] sm:$0xff]
        %v2028 = vld [vmem:[#allocation9 + $0xe8] sm:$0xff]
        %v2029 = vld [vmem:[#allocation9 + $0xf0] sm:$0xff]
        %v2030 = vld [vmem:[#allocation9 + $0xf8] sm:$0xff]
        %v2031 = vld [vmem:[#allocation9 + $0x100] sm:$0xff]
        %v2032 = vld [vmem:[#allocation9 + $0x108] sm:$0xff]
        %v2033 = vld [vmem:[#allocation9 + $0x110] sm:$0xff]
        %v2034 = vld [vmem:[#allocation9 + $0x118] sm:$0xff]
        %v2035 = vld [vmem:[#allocation9 + $0x120] sm:$0xff]
        %v2036 = vld [vmem:[#allocation9 + $0x128] sm:$0xff]
        %v2037 = vld [vmem:[#allocation9 + $0x130] sm:$0xff]
        %v2038 = vld [vmem:[#allocation9 + $0x138] sm:$0xff]
        %v2039 = vld [vmem:[#allocation9 + $0x140] sm:$0xff]
        %v2040 = vld [vmem:[#allocation9 + $0x148] sm:$0xff]
        %v2041 = vld [vmem:[#allocation9 + $0x150] sm:$0xff]
        %v2042 = vld [vmem:[#allocation9 + $0x158] sm:$0xff]
        %v2043 = vld [vmem:[#allocation9 + $0x160] sm:$0xff]
        %v2044 = vld [vmem:[#allocation9 + $0x168] sm:$0xff]
        %v2045 = vld [vmem:[#allocation9 + $0x170] sm:$0xff]
        %v2046 = vld [vmem:[#allocation9 + $0x178] sm:$0xff]
        %v2047 = vld [vmem:[#allocation9 + $0x180] sm:$0xff]
        %v2048 = vld [vmem:[#allocation9 + $0x188] sm:$0xff]
        %v2049 = vld [vmem:[#allocation9 + $0x190] sm:$0xff]
        %v2050 = vld [vmem:[#allocation9 + $0x198] sm:$0xff]
        %v2051 = vld [vmem:[#allocation9 + $0x1a0] sm:$0xff]
        %v2052 = vld [vmem:[#allocation9 + $0x1a8] sm:$0xff]
        %v2053 = vld [vmem:[#allocation9 + $0x1b0] sm:$0xff]
        %v2054 = vld [vmem:[#allocation9 + $0x1b8] sm:$0xff]
        %v2055 = vld [vmem:[#allocation9 + $0x1c0] sm:$0xff]
        %v2056 = vld [vmem:[#allocation9 + $0x1c8] sm:$0xff]
        %v2057 = vld [vmem:[#allocation9 + $0x1d0] sm:$0xff]
        %v2058 = vld [vmem:[#allocation9 + $0x1d8] sm:$0xff]
        %v2059 = vld [vmem:[#allocation9 + $0x1e0] sm:$0xff]
        %v2060 = vld [vmem:[#allocation9 + $0x1e8] sm:$0xff]
        %v2061 = vld [vmem:[#allocation9 + $0x1f0] sm:$0xff]
        %v2062 = vld [vmem:[#allocation9 + $0x1f8] sm:$0xff]
        %v2065 = vrot.slane %v989, 1
        %v2066 = vrot.slane %v990, 1
        %v2133 = vunpack.c.l.b16 %v1999
        %v2134 = vunpack.c.h.b16 %v1999
        %v2135 = vunpack.c.l.b16 %v2000
        %v2136 = vunpack.c.h.b16 %v2000
        %v2137 = vunpack.c.l.b16 %v2001
        %v2138 = vunpack.c.h.b16 %v2001
        %v2139 = vunpack.c.l.b16 %v2002
        %v2140 = vunpack.c.h.b16 %v2002
        %v2141 = vunpack.c.l.b16 %v2003
        %v2142 = vunpack.c.h.b16 %v2003
        %v2143 = vunpack.c.l.b16 %v2004
        %v2144 = vunpack.c.h.b16 %v2004
        %v2145 = vunpack.c.l.b16 %v2005
        %v2146 = vunpack.c.h.b16 %v2005
        %v2147 = vunpack.c.l.b16 %v2006
        %v2148 = vunpack.c.h.b16 %v2006
        %v2149 = vunpack.c.l.b16 %v2007
        %v2150 = vunpack.c.h.b16 %v2007
        %v2151 = vunpack.c.l.b16 %v2008
        %v2152 = vunpack.c.h.b16 %v2008
        %v2153 = vunpack.c.l.b16 %v2009
        %v2154 = vunpack.c.h.b16 %v2009
        %v2155 = vunpack.c.l.b16 %v2010
        %v2156 = vunpack.c.h.b16 %v2010
        %v2157 = vunpack.c.l.b16 %v2011
        %v2158 = vunpack.c.h.b16 %v2011
        %v2159 = vunpack.c.l.b16 %v2012
        %v2160 = vunpack.c.h.b16 %v2012
        %v2161 = vunpack.c.l.b16 %v2013
        %v2162 = vunpack.c.h.b16 %v2013
        %v2163 = vunpack.c.l.b16 %v2014
        %v2164 = vunpack.c.h.b16 %v2014
        %v2165 = vunpack.c.l.b16 %v2015
        %v2166 = vunpack.c.h.b16 %v2015
        %v2167 = vunpack.c.l.b16 %v2016
        %v2168 = vunpack.c.h.b16 %v2016
        %v2169 = vunpack.c.l.b16 %v2017
        %v2170 = vunpack.c.h.b16 %v2017
        %v2171 = vunpack.c.l.b16 %v2018
        %v2172 = vunpack.c.h.b16 %v2018
        %v2173 = vunpack.c.l.b16 %v2019
        %v2174 = vunpack.c.h.b16 %v2019
        %v2175 = vunpack.c.l.b16 %v2020
        %v2176 = vunpack.c.h.b16 %v2020
        %v2177 = vunpack.c.l.b16 %v2021
        %v2178 = vunpack.c.h.b16 %v2021
        %v2179 = vunpack.c.l.b16 %v2022
        %v2180 = vunpack.c.h.b16 %v2022
        %v2181 = vunpack.c.l.b16 %v2023
        %v2182 = vunpack.c.h.b16 %v2023
        %v2183 = vunpack.c.l.b16 %v2024
        %v2184 = vunpack.c.h.b16 %v2024
        %v2185 = vunpack.c.l.b16 %v2025
        %v2186 = vunpack.c.h.b16 %v2025
        %v2187 = vunpack.c.l.b16 %v2026
        %v2188 = vunpack.c.h.b16 %v2026
        %v2189 = vunpack.c.l.b16 %v2027
        %v2190 = vunpack.c.h.b16 %v2027
        %v2191 = vunpack.c.l.b16 %v2028
        %v2192 = vunpack.c.h.b16 %v2028
        %v2193 = vunpack.c.l.b16 %v2029
        %v2194 = vunpack.c.h.b16 %v2029
        %v2195 = vunpack.c.l.b16 %v2030
        %v2196 = vunpack.c.h.b16 %v2030
        %v2197 = vunpack.c.l.b16 %v2031
        %v2198 = vunpack.c.h.b16 %v2031
        %v2199 = vunpack.c.l.b16 %v2032
        %v2200 = vunpack.c.h.b16 %v2032
        %v2201 = vunpack.c.l.b16 %v2033
        %v2202 = vunpack.c.h.b16 %v2033
        %v2203 = vunpack.c.l.b16 %v2034
        %v2204 = vunpack.c.h.b16 %v2034
        %v2205 = vunpack.c.l.b16 %v2035
        %v2206 = vunpack.c.h.b16 %v2035
        %v2207 = vunpack.c.l.b16 %v2036
        %v2208 = vunpack.c.h.b16 %v2036
        %v2209 = vunpack.c.l.b16 %v2037
        %v2210 = vunpack.c.h.b16 %v2037
        %v2211 = vunpack.c.l.b16 %v2038
        %v2212 = vunpack.c.h.b16 %v2038
        %v2213 = vunpack.c.l.b16 %v2039
        %v2214 = vunpack.c.h.b16 %v2039
        %v2215 = vunpack.c.l.b16 %v2040
        %v2216 = vunpack.c.h.b16 %v2040
        %v2217 = vunpack.c.l.b16 %v2041
        %v2218 = vunpack.c.h.b16 %v2041
        %v2219 = vunpack.c.l.b16 %v2042
        %v2220 = vunpack.c.h.b16 %v2042
        %v2221 = vunpack.c.l.b16 %v2043
        %v2222 = vunpack.c.h.b16 %v2043
        %v2223 = vunpack.c.l.b16 %v2044
        %v2224 = vunpack.c.h.b16 %v2044
        %v2225 = vunpack.c.l.b16 %v2045
        %v2226 = vunpack.c.h.b16 %v2045
        %v2227 = vunpack.c.l.b16 %v2046
        %v2228 = vunpack.c.h.b16 %v2046
        %v2229 = vunpack.c.l.b16 %v2047
        %v2230 = vunpack.c.h.b16 %v2047
        %v2231 = vunpack.c.l.b16 %v2048
        %v2232 = vunpack.c.h.b16 %v2048
        %v2233 = vunpack.c.l.b16 %v2049
        %v2234 = vunpack.c.h.b16 %v2049
        %v2235 = vunpack.c.l.b16 %v2050
        %v2236 = vunpack.c.h.b16 %v2050
        %v2237 = vunpack.c.l.b16 %v2051
        %v2238 = vunpack.c.h.b16 %v2051
        %v2239 = vunpack.c.l.b16 %v2052
        %v2240 = vunpack.c.h.b16 %v2052
        %v2241 = vunpack.c.l.b16 %v2053
        %v2242 = vunpack.c.h.b16 %v2053
        %v2243 = vunpack.c.l.b16 %v2054
        %v2244 = vunpack.c.h.b16 %v2054
        %v2245 = vunpack.c.l.b16 %v2055
        %v2246 = vunpack.c.h.b16 %v2055
        %v2247 = vunpack.c.l.b16 %v2056
        %v2248 = vunpack.c.h.b16 %v2056
        %v2249 = vunpack.c.l.b16 %v2057
        %v2250 = vunpack.c.h.b16 %v2057
        %v2251 = vunpack.c.l.b16 %v2058
        %v2252 = vunpack.c.h.b16 %v2058
        %v2253 = vunpack.c.l.b16 %v2059
        %v2254 = vunpack.c.h.b16 %v2059
        %v2255 = vunpack.c.l.b16 %v2060
        %v2256 = vunpack.c.h.b16 %v2060
        %v2257 = vunpack.c.l.b16 %v2061
        %v2258 = vunpack.c.h.b16 %v2061
        %v2259 = vunpack.c.l.b16 %v2062
        %v2260 = vunpack.c.h.b16 %v2062
        %v2261 = vpack.c.b16 %v2137, %v2133
        %v2262 = vpack.c.b16 %v2138, %v2134
        %v2263 = vpack.c.b16 %v2139, %v2135
        %v2264 = vpack.c.b16 %v2140, %v2136
        %v2265 = vpack.c.b16 %v2145, %v2141
        %v2266 = vpack.c.b16 %v2146, %v2142
        %v2267 = vpack.c.b16 %v2147, %v2143
        %v2268 = vpack.c.b16 %v2148, %v2144
        %v2269 = vpack.c.b16 %v2153, %v2149
        %v2270 = vpack.c.b16 %v2154, %v2150
        %v2271 = vpack.c.b16 %v2155, %v2151
        %v2272 = vpack.c.b16 %v2156, %v2152
        %v2273 = vpack.c.b16 %v2161, %v2157
        %v2274 = vpack.c.b16 %v2162, %v2158
        %v2275 = vpack.c.b16 %v2163, %v2159
        %v2276 = vpack.c.b16 %v2164, %v2160
        %v2277 = vpack.c.b16 %v2169, %v2165
        %v2278 = vpack.c.b16 %v2170, %v2166
        %v2279 = vpack.c.b16 %v2171, %v2167
        %v2280 = vpack.c.b16 %v2172, %v2168
        %v2281 = vpack.c.b16 %v2177, %v2173
        %v2282 = vpack.c.b16 %v2178, %v2174
        %v2283 = vpack.c.b16 %v2179, %v2175
        %v2284 = vpack.c.b16 %v2180, %v2176
        %v2285 = vpack.c.b16 %v2185, %v2181
        %v2286 = vpack.c.b16 %v2186, %v2182
        %v2287 = vpack.c.b16 %v2187, %v2183
        %v2288 = vpack.c.b16 %v2188, %v2184
        %v2289 = vpack.c.b16 %v2193, %v2189
        %v2290 = vpack.c.b16 %v2194, %v2190
        %v2291 = vpack.c.b16 %v2195, %v2191
        %v2292 = vpack.c.b16 %v2196, %v2192
        %v2293 = vpack.c.b16 %v2201, %v2197
        %v2294 = vpack.c.b16 %v2202, %v2198
        %v2295 = vpack.c.b16 %v2203, %v2199
        %v2296 = vpack.c.b16 %v2204, %v2200
        %v2297 = vpack.c.b16 %v2209, %v2205
        %v2298 = vpack.c.b16 %v2210, %v2206
        %v2299 = vpack.c.b16 %v2211, %v2207
        %v2300 = vpack.c.b16 %v2212, %v2208
        %v2301 = vpack.c.b16 %v2217, %v2213
        %v2302 = vpack.c.b16 %v2218, %v2214
        %v2303 = vpack.c.b16 %v2219, %v2215
        %v2304 = vpack.c.b16 %v2220, %v2216
        %v2305 = vpack.c.b16 %v2225, %v2221
        %v2306 = vpack.c.b16 %v2226, %v2222
        %v2307 = vpack.c.b16 %v2227, %v2223
        %v2308 = vpack.c.b16 %v2228, %v2224
        %v2309 = vpack.c.b16 %v2233, %v2229
        %v2310 = vpack.c.b16 %v2234, %v2230
        %v2311 = vpack.c.b16 %v2235, %v2231
        %v2312 = vpack.c.b16 %v2236, %v2232
        %v2313 = vpack.c.b16 %v2241, %v2237
        %v2314 = vpack.c.b16 %v2242, %v2238
        %v2315 = vpack.c.b16 %v2243, %v2239
        %v2316 = vpack.c.b16 %v2244, %v2240
        %v2317 = vpack.c.b16 %v2249, %v2245
        %v2318 = vpack.c.b16 %v2250, %v2246
        %v2319 = vpack.c.b16 %v2251, %v2247
        %v2320 = vpack.c.b16 %v2252, %v2248
        %v2321 = vpack.c.b16 %v2257, %v2253
        %v2322 = vpack.c.b16 %v2258, %v2254
        %v2323 = vpack.c.b16 %v2259, %v2255
        %v2324 = vpack.c.b16 %v2260, %v2256
        %2389 = vmatpush.bf16.msra.mxu0 %v2289
        %2390 = vmatpush.bf16.msra.mxu0 %v2285
        %2391 = vmatpush.bf16.msra.mxu0 %v2281
        %2392 = vmatpush.bf16.msra.mxu0 %v2277
        %2393 = vmatpush.bf16.msra.mxu0 %v2273
        %2394 = vmatpush.bf16.msra.mxu0 %v2269
        %2395 = vmatpush.bf16.msra.mxu0 %v2265
        %2396 = vmatpush.bf16.msra.mxu0 %v2261
        %2397 = vmatmul.bf16.gmra.mxu0 %v2065
        %v2398 = vpop.f32.mrf.mxu0
        %v2399 = vadd.f32 0.0, %v2398
        %v2400 = vpop.f32.mrf.mxu0
        %v2401 = vadd.f32 0.0, %v2400
        %2402 = vdwg.mxu0
        %2403 = vmatpush.bf16.msra.mxu0 %v2321
        %2404 = vmatpush.bf16.msra.mxu0 %v2317
        %2405 = vmatpush.bf16.msra.mxu0 %v2313
        %2406 = vmatpush.bf16.msra.mxu0 %v2309
        %2407 = vmatpush.bf16.msra.mxu0 %v2305
        %2408 = vmatpush.bf16.msra.mxu0 %v2301
        %2409 = vmatpush.bf16.msra.mxu0 %v2297
        %2410 = vmatpush.bf16.msra.mxu0 %v2293
        %2411 = vmatmul.bf16.gmra.mxu0 %v2066
        %v2412 = vpop.f32.mrf.mxu0
        %v2413 = vadd.f32 %v2399, %v2412
        %v2414 = vpop.f32.mrf.mxu0
        %v2415 = vadd.f32 %v2401, %v2414
        %2416 = vdwg.mxu0
        %2417 = vmatpush.bf16.msra.mxu0 %v2290
        %2418 = vmatpush.bf16.msra.mxu0 %v2286
        %2419 = vmatpush.bf16.msra.mxu0 %v2282
        %2420 = vmatpush.bf16.msra.mxu0 %v2278
        %2421 = vmatpush.bf16.msra.mxu0 %v2274
        %2422 = vmatpush.bf16.msra.mxu0 %v2270
        %2423 = vmatpush.bf16.msra.mxu0 %v2266
        %2424 = vmatpush.bf16.msra.mxu0 %v2262
        %2425 = vmatmul.bf16.gmra.mxu0 %v2065
        %v2426 = vpop.f32.mrf.mxu0
        %v2427 = vadd.f32 0.0, %v2426
        %v2428 = vpop.f32.mrf.mxu0
        %v2429 = vadd.f32 0.0, %v2428
        %2430 = vdwg.mxu0
        %2431 = vmatpush.bf16.msra.mxu0 %v2322
        %2432 = vmatpush.bf16.msra.mxu0 %v2318
        %2433 = vmatpush.bf16.msra.mxu0 %v2314
        %2434 = vmatpush.bf16.msra.mxu0 %v2310
        %2435 = vmatpush.bf16.msra.mxu0 %v2306
        %2436 = vmatpush.bf16.msra.mxu0 %v2302
        %2437 = vmatpush.bf16.msra.mxu0 %v2298
        %2438 = vmatpush.bf16.msra.mxu0 %v2294
        %2439 = vmatmul.bf16.gmra.mxu0 %v2066
        %v2440 = vpop.f32.mrf.mxu0
        %v2441 = vadd.f32 %v2427, %v2440
        %v2442 = vpop.f32.mrf.mxu0
        %v2443 = vadd.f32 %v2429, %v2442
        %2444 = vdwg.mxu0
        %2445 = vmatpush.bf16.msra.mxu0 %v2291
        %2446 = vmatpush.bf16.msra.mxu0 %v2287
        %2447 = vmatpush.bf16.msra.mxu0 %v2283
        %2448 = vmatpush.bf16.msra.mxu0 %v2279
        %2449 = vmatpush.bf16.msra.mxu0 %v2275
        %2450 = vmatpush.bf16.msra.mxu0 %v2271
        %2451 = vmatpush.bf16.msra.mxu0 %v2267
        %2452 = vmatpush.bf16.msra.mxu0 %v2263
        %2453 = vmatmul.bf16.gmra.mxu0 %v2065
        %v2454 = vpop.f32.mrf.mxu0
        %v2455 = vadd.f32 0.0, %v2454
        %v2456 = vpop.f32.mrf.mxu0
        %v2457 = vadd.f32 0.0, %v2456
        %2458 = vdwg.mxu0
        %2459 = vmatpush.bf16.msra.mxu0 %v2323
        %2460 = vmatpush.bf16.msra.mxu0 %v2319
        %2461 = vmatpush.bf16.msra.mxu0 %v2315
        %2462 = vmatpush.bf16.msra.mxu0 %v2311
        %2463 = vmatpush.bf16.msra.mxu0 %v2307
        %2464 = vmatpush.bf16.msra.mxu0 %v2303
        %2465 = vmatpush.bf16.msra.mxu0 %v2299
        %2466 = vmatpush.bf16.msra.mxu0 %v2295
        %2467 = vmatmul.bf16.gmra.mxu0 %v2066
        %v2468 = vpop.f32.mrf.mxu0
        %v2469 = vadd.f32 %v2455, %v2468
        %v2470 = vpop.f32.mrf.mxu0
        %v2471 = vadd.f32 %v2457, %v2470
        %2472 = vdwg.mxu0
        %2473 = vmatpush.bf16.msra.mxu0 %v2292
        %2474 = vmatpush.bf16.msra.mxu0 %v2288
        %2475 = vmatpush.bf16.msra.mxu0 %v2284
        %2476 = vmatpush.bf16.msra.mxu0 %v2280
        %2477 = vmatpush.bf16.msra.mxu0 %v2276
        %2478 = vmatpush.bf16.msra.mxu0 %v2272
        %2479 = vmatpush.bf16.msra.mxu0 %v2268
        %2480 = vmatpush.bf16.msra.mxu0 %v2264
        %2481 = vmatmul.bf16.gmra.mxu0 %v2065
        %v2482 = vpop.f32.mrf.mxu0
        %v2483 = vadd.f32 0.0, %v2482
        %v2484 = vpop.f32.mrf.mxu0
        %v2485 = vadd.f32 0.0, %v2484
        %2486 = vdwg.mxu0
        %2487 = vmatpush.bf16.msra.mxu0 %v2324
        %2488 = vmatpush.bf16.msra.mxu0 %v2320
        %2489 = vmatpush.bf16.msra.mxu0 %v2316
        %2490 = vmatpush.bf16.msra.mxu0 %v2312
        %2491 = vmatpush.bf16.msra.mxu0 %v2308
        %2492 = vmatpush.bf16.msra.mxu0 %v2304
        %2493 = vmatpush.bf16.msra.mxu0 %v2300
        %2494 = vmatpush.bf16.msra.mxu0 %v2296
        %2495 = vmatmul.bf16.gmra.mxu0 %v2066
        %v2496 = vpop.f32.mrf.mxu0
        %v2497 = vadd.f32 %v2483, %v2496
        %v2498 = vpop.f32.mrf.mxu0
        %v2499 = vadd.f32 %v2485, %v2498
        %2500 = vdwg.mxu0
        %v2501 = vadd.f32 %v1911, %v2413
        %v2502 = vadd.f32 %v1939, %v2441
        %v2503 = vadd.f32 %v1967, %v2469
        %v2504 = vadd.f32 %v1995, %v2497
        %v2505 = vadd.f32 %v1913, %v2415
        %v2506 = vadd.f32 %v1941, %v2443
        %v2507 = vadd.f32 %v1969, %v2471
        %v2508 = vadd.f32 %v1997, %v2499
        %v2509 = vld [vmem:[#allocation10] sm:$0xf]
        %v2511 = vperm.slane %v2509, 0
        %v2512 = vperm.slane %v2509, 1
        %v2513 = vperm.slane %v2509, 2
        %v2514 = vperm.slane %v2509, 3
        %v2519 = vadd.f32 %v2501, %v2511
        %v2520 = vadd.f32 %v2502, %v2512
        %v2521 = vadd.f32 %v2503, %v2513
        %v2522 = vadd.f32 %v2504, %v2514
        %v2523 = vadd.f32 %v2505, %v2511
        %v2524 = vadd.f32 %v2506, %v2512
        %v2525 = vadd.f32 %v2507, %v2513
        %v2526 = vadd.f32 %v2508, %v2514
        %v2527 = vld [vmem:[#allocation4] sm:$0xff]
        %v2528 = vld [vmem:[#allocation4 + $0x8] sm:$0xff]
        %v2529 = vld [vmem:[#allocation4 + $0x10] sm:$0xff]
        %v2530 = vld [vmem:[#allocation4 + $0x18] sm:$0xff]
        %v2531 = vld [vmem:[#allocation4 + $0x20] sm:$0xff]
        %v2532 = vld [vmem:[#allocation4 + $0x28] sm:$0xff]
        %v2533 = vld [vmem:[#allocation4 + $0x30] sm:$0xff]
        %v2534 = vld [vmem:[#allocation4 + $0x38] sm:$0xff]
        %v2535 = vld [vmem:[#allocation6] sm:$0xff]
        %v2536 = vld [vmem:[#allocation6 + $0x8] sm:$0xff]
        %v2537 = vld [vmem:[#allocation6 + $0x10] sm:$0xff]
        %v2538 = vld [vmem:[#allocation6 + $0x18] sm:$0xff]
        %v2539 = vld [vmem:[#allocation6 + $0x20] sm:$0x3]
        %v2540 = vld [vmem:[#allocation6 + $0x28] sm:$0x3]
        %v2541 = vld [vmem:[#allocation6 + $0x30] sm:$0x3]
        %v2542 = vld [vmem:[#allocation6 + $0x38] sm:$0x3]
        %v2545 = vunpack.c.l.b16 %v756
        %v2546 = vunpack.c.l.b16 %v757
        %v2547 = vpack.c.b16 %v2546, %v2545
        %v2556 = vunpack.c.l.b16 %v2527
        %v2557 = vunpack.c.h.b16 %v2527
        %v2558 = vunpack.c.l.b16 %v2528
        %v2559 = vunpack.c.h.b16 %v2528
        %v2560 = vunpack.c.l.b16 %v2529
        %v2561 = vunpack.c.h.b16 %v2529
        %v2562 = vunpack.c.l.b16 %v2530
        %v2563 = vunpack.c.h.b16 %v2530
        %v2564 = vunpack.c.l.b16 %v2531
        %v2565 = vunpack.c.h.b16 %v2531
        %v2566 = vunpack.c.l.b16 %v2532
        %v2567 = vunpack.c.h.b16 %v2532
        %v2568 = vunpack.c.l.b16 %v2533
        %v2569 = vunpack.c.h.b16 %v2533
        %v2570 = vunpack.c.l.b16 %v2534
        %v2571 = vunpack.c.h.b16 %v2534
        %v2572 = vpack.c.b16 %v2560, %v2556
        %v2573 = vpack.c.b16 %v2561, %v2557
        %v2574 = vpack.c.b16 %v2562, %v2558
        %v2575 = vpack.c.b16 %v2563, %v2559
        %v2576 = vpack.c.b16 %v2568, %v2564
        %v2577 = vpack.c.b16 %v2569, %v2565
        %v2578 = vpack.c.b16 %v2570, %v2566
        %v2579 = vpack.c.b16 %v2571, %v2567
        %vm2588 = vcmask 261120
        %v2590 = vsel %vm2588, %v2547, 0
        %2592 = vmatpush.bf16.msra.mxu0 0
        %2593 = vmatpush.bf16.msra.mxu0 0
        %2594 = vmatpush.bf16.msra.mxu0 0
        %2595 = vmatpush.bf16.msra.mxu0 0
        %2596 = vmatpush.bf16.msra.mxu0 0
        %2597 = vmatpush.bf16.msra.mxu0 0
        %2598 = vmatpush.bf16.msra.mxu0 %v2576
        %2599 = vmatpush.bf16.msra.mxu0 %v2572
        %2600 = vmatmul.bf16.gmra.mxu0 %v2590
        %v2601 = vpop.f32.mrf.mxu0
        %v2602 = vadd.f32 %v2535, %v2601
        %v2603 = vpop.f32.mrf.mxu0
        %v2604 = vadd.f32 %v2539, %v2603
        %2605 = vdwg.mxu0
        %2606 = vmatpush.bf16.msra.mxu0 0
        %2607 = vmatpush.bf16.msra.mxu0 0
        %2608 = vmatpush.bf16.msra.mxu0 0
        %2609 = vmatpush.bf16.msra.mxu0 0
        %2610 = vmatpush.bf16.msra.mxu0 0
        %2611 = vmatpush.bf16.msra.mxu0 0
        %2612 = vmatpush.bf16.msra.mxu0 %v2577
        %2613 = vmatpush.bf16.msra.mxu0 %v2573
        %2614 = vmatmul.bf16.gmra.mxu0 %v2590
        %v2615 = vpop.f32.mrf.mxu0
        %v2616 = vadd.f32 %v2536, %v2615
        %v2617 = vpop.f32.mrf.mxu0
        %v2618 = vadd.f32 %v2540, %v2617
        %2619 = vdwg.mxu0
        %2620 = vmatpush.bf16.msra.mxu0 0
        %2621 = vmatpush.bf16.msra.mxu0 0
        %2622 = vmatpush.bf16.msra.mxu0 0
        %2623 = vmatpush.bf16.msra.mxu0 0
        %2624 = vmatpush.bf16.msra.mxu0 0
        %2625 = vmatpush.bf16.msra.mxu0 0
        %2626 = vmatpush.bf16.msra.mxu0 %v2578
        %2627 = vmatpush.bf16.msra.mxu0 %v2574
        %2628 = vmatmul.bf16.gmra.mxu0 %v2590
        %v2629 = vpop.f32.mrf.mxu0
        %v2630 = vadd.f32 %v2537, %v2629
        %v2631 = vpop.f32.mrf.mxu0
        %v2632 = vadd.f32 %v2541, %v2631
        %2633 = vdwg.mxu0
        %2634 = vmatpush.bf16.msra.mxu0 0
        %2635 = vmatpush.bf16.msra.mxu0 0
        %2636 = vmatpush.bf16.msra.mxu0 0
        %2637 = vmatpush.bf16.msra.mxu0 0
        %2638 = vmatpush.bf16.msra.mxu0 0
        %2639 = vmatpush.bf16.msra.mxu0 0
        %2640 = vmatpush.bf16.msra.mxu0 %v2579
        %2641 = vmatpush.bf16.msra.mxu0 %v2575
        %2642 = vmatmul.bf16.gmra.mxu0 %v2590
        %v2643 = vpop.f32.mrf.mxu0
        %v2644 = vadd.f32 %v2538, %v2643
        %v2645 = vpop.f32.mrf.mxu0
        %v2646 = vadd.f32 %v2542, %v2645
        %2647 = vdwg.mxu0
        %v2648 = vlaneseq
        %v2649 = vshrl.u32 %v2648, 7
        %v2650 = vadd.s32 %v2649, 8
        %vm2651 = vcmp.ge.s32.totalorder %v2649, 1
        %vm2652 = vcmp.ge.s32.totalorder %v2650, 1
        %vm2653 = vcmp.le.s32.totalorder %v2649, 8
        %vm2654 = vcmp.le.s32.totalorder %v2650, 8
        %vm2655 = vmand %vm2651, %vm2653
        %vm2656 = vmand %vm2652, %vm2654
        %v2657 = vmax.f32 %v2519, 0.0
        %v2658 = vmax.f32 %v2520, 0.0
        %v2659 = vmax.f32 %v2521, 0.0
        %v2660 = vmax.f32 %v2522, 0.0
        %v2661 = vmax.f32 %v2523, 0.0
        %v2662 = vmax.f32 %v2524, 0.0
        %v2663 = vmax.f32 %v2525, 0.0
        %v2664 = vmax.f32 %v2526, 0.0
        %v2665 = vadd.f32 %v2657, %v2602
        %v2666 = vadd.f32 %v2658, %v2616
        %v2667 = vadd.f32 %v2659, %v2630
        %v2668 = vadd.f32 %v2660, %v2644
        %v2669 = vadd.f32 %v2661, %v2604
        %v2670 = vadd.f32 %v2662, %v2618
        %v2671 = vadd.f32 %v2663, %v2632
        %v2672 = vadd.f32 %v2664, %v2646
        %v2673 = vsel %vm2655, %v2665, 0.0
        %v2674 = vsel %vm2655, %v2666, 0.0
        %v2675 = vsel %vm2655, %v2667, 0.0
        %v2676 = vsel %vm2655, %v2668, 0.0
        %v2677 = vsel %vm2656, %v2669, 0.0
        %v2678 = vsel %vm2656, %v2670, 0.0
        %v2679 = vsel %vm2656, %v2671, 0.0
        %v2680 = vsel %vm2656, %v2672, 0.0
        %v2681 = vpack.c.bf16 %v2673, %v2673
        %v2682 = vpack.c.bf16 %v2674, %v2674
        %v2683 = vpack.c.bf16 %v2675, %v2675
        %v2684 = vpack.c.bf16 %v2676, %v2676
        %v2685 = vld [vmem:[#allocation12] sm:$0xff]
        %v2686 = vld [vmem:[#allocation12 + $0x8] sm:$0xf]
        %v2687 = vld [vmem:[#allocation12 + $0xc] sm:$0xff]
        %v2688 = vld [vmem:[#allocation12 + $0x14] sm:$0xf]
        %v2689 = vld [vmem:[#allocation12 + $0x18] sm:$0xff]
        %v2690 = vld [vmem:[#allocation12 + $0x20] sm:$0xf]
        %v2691 = vld [vmem:[#allocation12 + $0x24] sm:$0xff]
        %v2692 = vld [vmem:[#allocation12 + $0x2c] sm:$0xf]
        %v2693 = vld [vmem:[#allocation12 + $0x30] sm:$0xff]
        %v2694 = vld [vmem:[#allocation12 + $0x38] sm:$0xf]
        %v2695 = vld [vmem:[#allocation12 + $0x3c] sm:$0xff]
        %v2696 = vld [vmem:[#allocation12 + $0x44] sm:$0xf]
        %v2697 = vld [vmem:[#allocation12 + $0x48] sm:$0xff]
        %v2698 = vld [vmem:[#allocation12 + $0x50] sm:$0xf]
        %v2699 = vld [vmem:[#allocation12 + $0x54] sm:$0xff]
        %v2700 = vld [vmem:[#allocation12 + $0x5c] sm:$0xf]
        %v2701 = vld [vmem:[#allocation12 + $0x60] sm:$0xff]
        %v2702 = vld [vmem:[#allocation12 + $0x68] sm:$0xf]
        %v2703 = vld [vmem:[#allocation12 + $0x6c] sm:$0xff]
        %v2704 = vld [vmem:[#allocation12 + $0x74] sm:$0xf]
        %v2705 = vld [vmem:[#allocation12 + $0x78] sm:$0xff]
        %v2706 = vld [vmem:[#allocation12 + $0x80] sm:$0xf]
        %v2707 = vld [vmem:[#allocation12 + $0x84] sm:$0xff]
        %v2708 = vld [vmem:[#allocation12 + $0x8c] sm:$0xf]
        %v2709 = vld [vmem:[#allocation12 + $0x90] sm:$0xff]
        %v2710 = vld [vmem:[#allocation12 + $0x98] sm:$0xf]
        %v2711 = vld [vmem:[#allocation12 + $0x9c] sm:$0xff]
        %v2712 = vld [vmem:[#allocation12 + $0xa4] sm:$0xf]
        %v2713 = vld [vmem:[#allocation12 + $0xa8] sm:$0xff]
        %v2714 = vld [vmem:[#allocation12 + $0xb0] sm:$0xf]
        %v2715 = vld [vmem:[#allocation12 + $0xb4] sm:$0xff]
        %v2716 = vld [vmem:[#allocation12 + $0xbc] sm:$0xf]
        %v2717 = vld [vmem:[#allocation12 + $0xc0] sm:$0xff]
        %v2718 = vld [vmem:[#allocation12 + $0xc8] sm:$0xf]
        %v2719 = vld [vmem:[#allocation12 + $0xcc] sm:$0xff]
        %v2720 = vld [vmem:[#allocation12 + $0xd4] sm:$0xf]
        %v2721 = vld [vmem:[#allocation12 + $0xd8] sm:$0xff]
        %v2722 = vld [vmem:[#allocation12 + $0xe0] sm:$0xf]
        %v2723 = vld [vmem:[#allocation12 + $0xe4] sm:$0xff]
        %v2724 = vld [vmem:[#allocation12 + $0xec] sm:$0xf]
        %v2725 = vld [vmem:[#allocation12 + $0xf0] sm:$0xff]
        %v2726 = vld [vmem:[#allocation12 + $0xf8] sm:$0xf]
        %v2727 = vld [vmem:[#allocation12 + $0xfc] sm:$0xff]
        %v2728 = vld [vmem:[#allocation12 + $0x104] sm:$0xf]
        %v2729 = vld [vmem:[#allocation12 + $0x108] sm:$0xff]
        %v2730 = vld [vmem:[#allocation12 + $0x110] sm:$0xf]
        %v2731 = vld [vmem:[#allocation12 + $0x114] sm:$0xff]
        %v2732 = vld [vmem:[#allocation12 + $0x11c] sm:$0xf]
        %v2733 = vld [vmem:[#allocation12 + $0x120] sm:$0xff]
        %v2734 = vld [vmem:[#allocation12 + $0x128] sm:$0xf]
        %v2735 = vld [vmem:[#allocation12 + $0x12c] sm:$0xff]
        %v2736 = vld [vmem:[#allocation12 + $0x134] sm:$0xf]
        %v2737 = vld [vmem:[#allocation12 + $0x138] sm:$0xff]
        %v2738 = vld [vmem:[#allocation12 + $0x140] sm:$0xf]
        %v2739 = vld [vmem:[#allocation12 + $0x144] sm:$0xff]
        %v2740 = vld [vmem:[#allocation12 + $0x14c] sm:$0xf]
        %v2741 = vld [vmem:[#allocation12 + $0x150] sm:$0xff]
        %v2742 = vld [vmem:[#allocation12 + $0x158] sm:$0xf]
        %v2743 = vld [vmem:[#allocation12 + $0x15c] sm:$0xff]
        %v2744 = vld [vmem:[#allocation12 + $0x164] sm:$0xf]
        %v2745 = vld [vmem:[#allocation12 + $0x168] sm:$0xff]
        %v2746 = vld [vmem:[#allocation12 + $0x170] sm:$0xf]
        %v2747 = vld [vmem:[#allocation12 + $0x174] sm:$0xff]
        %v2748 = vld [vmem:[#allocation12 + $0x17c] sm:$0xf]
        %v2749 = vld [vmem:[#allocation12 + $0x180] sm:$0xff]
        %v2750 = vld [vmem:[#allocation12 + $0x188] sm:$0xf]
        %v2751 = vld [vmem:[#allocation12 + $0x18c] sm:$0xff]
        %v2752 = vld [vmem:[#allocation12 + $0x194] sm:$0xf]
        %v2753 = vld [vmem:[#allocation12 + $0x198] sm:$0xff]
        %v2754 = vld [vmem:[#allocation12 + $0x1a0] sm:$0xf]
        %v2755 = vld [vmem:[#allocation12 + $0x1a4] sm:$0xff]
        %v2756 = vld [vmem:[#allocation12 + $0x1ac] sm:$0xf]
        %v2757 = vld [vmem:[#allocation12 + $0x1b0] sm:$0xff]
        %v2758 = vld [vmem:[#allocation12 + $0x1b8] sm:$0xf]
        %v2759 = vld [vmem:[#allocation12 + $0x1bc] sm:$0xff]
        %v2760 = vld [vmem:[#allocation12 + $0x1c4] sm:$0xf]
        %v2761 = vld [vmem:[#allocation12 + $0x1c8] sm:$0xff]
        %v2762 = vld [vmem:[#allocation12 + $0x1d0] sm:$0xf]
        %v2763 = vld [vmem:[#allocation12 + $0x1d4] sm:$0xff]
        %v2764 = vld [vmem:[#allocation12 + $0x1dc] sm:$0xf]
        %v2765 = vld [vmem:[#allocation12 + $0x1e0] sm:$0xff]
        %v2766 = vld [vmem:[#allocation12 + $0x1e8] sm:$0xf]
        %v2767 = vld [vmem:[#allocation12 + $0x1ec] sm:$0xff]
        %v2768 = vld [vmem:[#allocation12 + $0x1f4] sm:$0xf]
        %v2769 = vld [vmem:[#allocation12 + $0x1f8] sm:$0xff]
        %v2770 = vld [vmem:[#allocation12 + $0x200] sm:$0xf]
        %v2771 = vld [vmem:[#allocation12 + $0x204] sm:$0xff]
        %v2772 = vld [vmem:[#allocation12 + $0x20c] sm:$0xf]
        %v2773 = vld [vmem:[#allocation12 + $0x210] sm:$0xff]
        %v2774 = vld [vmem:[#allocation12 + $0x218] sm:$0xf]
        %v2775 = vld [vmem:[#allocation12 + $0x21c] sm:$0xff]
        %v2776 = vld [vmem:[#allocation12 + $0x224] sm:$0xf]
        %v2777 = vld [vmem:[#allocation12 + $0x228] sm:$0xff]
        %v2778 = vld [vmem:[#allocation12 + $0x230] sm:$0xf]
        %v2779 = vld [vmem:[#allocation12 + $0x234] sm:$0xff]
        %v2780 = vld [vmem:[#allocation12 + $0x23c] sm:$0xf]
        %v2781 = vld [vmem:[#allocation12 + $0x240] sm:$0xff]
        %v2782 = vld [vmem:[#allocation12 + $0x248] sm:$0xf]
        %v2783 = vld [vmem:[#allocation12 + $0x24c] sm:$0xff]
        %v2784 = vld [vmem:[#allocation12 + $0x254] sm:$0xf]
        %v2785 = vld [vmem:[#allocation12 + $0x258] sm:$0xff]
        %v2786 = vld [vmem:[#allocation12 + $0x260] sm:$0xf]
        %v2787 = vld [vmem:[#allocation12 + $0x264] sm:$0xff]
        %v2788 = vld [vmem:[#allocation12 + $0x26c] sm:$0xf]
        %v2789 = vld [vmem:[#allocation12 + $0x270] sm:$0xff]
        %v2790 = vld [vmem:[#allocation12 + $0x278] sm:$0xf]
        %v2791 = vld [vmem:[#allocation12 + $0x27c] sm:$0xff]
        %v2792 = vld [vmem:[#allocation12 + $0x284] sm:$0xf]
        %v2793 = vld [vmem:[#allocation12 + $0x288] sm:$0xff]
        %v2794 = vld [vmem:[#allocation12 + $0x290] sm:$0xf]
        %v2795 = vld [vmem:[#allocation12 + $0x294] sm:$0xff]
        %v2796 = vld [vmem:[#allocation12 + $0x29c] sm:$0xf]
        %v2797 = vld [vmem:[#allocation12 + $0x2a0] sm:$0xff]
        %v2798 = vld [vmem:[#allocation12 + $0x2a8] sm:$0xf]
        %v2799 = vld [vmem:[#allocation12 + $0x2ac] sm:$0xff]
        %v2800 = vld [vmem:[#allocation12 + $0x2b4] sm:$0xf]
        %v2801 = vld [vmem:[#allocation12 + $0x2b8] sm:$0xff]
        %v2802 = vld [vmem:[#allocation12 + $0x2c0] sm:$0xf]
        %v2803 = vld [vmem:[#allocation12 + $0x2c4] sm:$0xff]
        %v2804 = vld [vmem:[#allocation12 + $0x2cc] sm:$0xf]
        %v2805 = vld [vmem:[#allocation12 + $0x2d0] sm:$0xff]
        %v2806 = vld [vmem:[#allocation12 + $0x2d8] sm:$0xf]
        %v2807 = vld [vmem:[#allocation12 + $0x2dc] sm:$0xff]
        %v2808 = vld [vmem:[#allocation12 + $0x2e4] sm:$0xf]
        %v2809 = vld [vmem:[#allocation12 + $0x2e8] sm:$0xff]
        %v2810 = vld [vmem:[#allocation12 + $0x2f0] sm:$0xf]
        %v2811 = vld [vmem:[#allocation12 + $0x2f4] sm:$0xff]
        %v2812 = vld [vmem:[#allocation12 + $0x2fc] sm:$0xf]
        %v2813 = vpack.c.bf16 %v2677, %v2673
        %v2814 = vpack.c.bf16 %v2678, %v2674
        %v2815 = vpack.c.bf16 %v2679, %v2675
        %v2816 = vpack.c.bf16 %v2680, %v2676
        %v2817 = vld [vmem:[#allocation13] sm:$0xff]
        %v2818 = vld [vmem:[#allocation13 + $0x8] sm:$0xf]
        %v2819 = vld [vmem:[#allocation13 + $0xc] sm:$0xff]
        %v2820 = vld [vmem:[#allocation13 + $0x14] sm:$0xf]
        %v2821 = vld [vmem:[#allocation13 + $0x18] sm:$0xff]
        %v2822 = vld [vmem:[#allocation13 + $0x20] sm:$0xf]
        %v2823 = vld [vmem:[#allocation13 + $0x24] sm:$0xff]
        %v2824 = vld [vmem:[#allocation13 + $0x2c] sm:$0xf]
        %v2825 = vld [vmem:[#allocation13 + $0x30] sm:$0xff]
        %v2826 = vld [vmem:[#allocation13 + $0x38] sm:$0xf]
        %v2827 = vld [vmem:[#allocation13 + $0x3c] sm:$0xff]
        %v2828 = vld [vmem:[#allocation13 + $0x44] sm:$0xf]
        %v2829 = vld [vmem:[#allocation13 + $0x48] sm:$0xff]
        %v2830 = vld [vmem:[#allocation13 + $0x50] sm:$0xf]
        %v2831 = vld [vmem:[#allocation13 + $0x54] sm:$0xff]
        %v2832 = vld [vmem:[#allocation13 + $0x5c] sm:$0xf]
        %v2833 = vld [vmem:[#allocation13 + $0x60] sm:$0xff]
        %v2834 = vld [vmem:[#allocation13 + $0x68] sm:$0xf]
        %v2835 = vld [vmem:[#allocation13 + $0x6c] sm:$0xff]
        %v2836 = vld [vmem:[#allocation13 + $0x74] sm:$0xf]
        %v2837 = vld [vmem:[#allocation13 + $0x78] sm:$0xff]
        %v2838 = vld [vmem:[#allocation13 + $0x80] sm:$0xf]
        %v2839 = vld [vmem:[#allocation13 + $0x84] sm:$0xff]
        %v2840 = vld [vmem:[#allocation13 + $0x8c] sm:$0xf]
        %v2841 = vld [vmem:[#allocation13 + $0x90] sm:$0xff]
        %v2842 = vld [vmem:[#allocation13 + $0x98] sm:$0xf]
        %v2843 = vld [vmem:[#allocation13 + $0x9c] sm:$0xff]
        %v2844 = vld [vmem:[#allocation13 + $0xa4] sm:$0xf]
        %v2845 = vld [vmem:[#allocation13 + $0xa8] sm:$0xff]
        %v2846 = vld [vmem:[#allocation13 + $0xb0] sm:$0xf]
        %v2847 = vld [vmem:[#allocation13 + $0xb4] sm:$0xff]
        %v2848 = vld [vmem:[#allocation13 + $0xbc] sm:$0xf]
        %v2849 = vld [vmem:[#allocation13 + $0xc0] sm:$0xff]
        %v2850 = vld [vmem:[#allocation13 + $0xc8] sm:$0xf]
        %v2851 = vld [vmem:[#allocation13 + $0xcc] sm:$0xff]
        %v2852 = vld [vmem:[#allocation13 + $0xd4] sm:$0xf]
        %v2853 = vld [vmem:[#allocation13 + $0xd8] sm:$0xff]
        %v2854 = vld [vmem:[#allocation13 + $0xe0] sm:$0xf]
        %v2855 = vld [vmem:[#allocation13 + $0xe4] sm:$0xff]
        %v2856 = vld [vmem:[#allocation13 + $0xec] sm:$0xf]
        %v2857 = vld [vmem:[#allocation13 + $0xf0] sm:$0xff]
        %v2858 = vld [vmem:[#allocation13 + $0xf8] sm:$0xf]
        %v2859 = vld [vmem:[#allocation13 + $0xfc] sm:$0xff]
        %v2860 = vld [vmem:[#allocation13 + $0x104] sm:$0xf]
        %v2861 = vld [vmem:[#allocation13 + $0x108] sm:$0xff]
        %v2862 = vld [vmem:[#allocation13 + $0x110] sm:$0xf]
        %v2863 = vld [vmem:[#allocation13 + $0x114] sm:$0xff]
        %v2864 = vld [vmem:[#allocation13 + $0x11c] sm:$0xf]
        %v2865 = vld [vmem:[#allocation13 + $0x120] sm:$0xff]
        %v2866 = vld [vmem:[#allocation13 + $0x128] sm:$0xf]
        %v2867 = vld [vmem:[#allocation13 + $0x12c] sm:$0xff]
        %v2868 = vld [vmem:[#allocation13 + $0x134] sm:$0xf]
        %v2869 = vld [vmem:[#allocation13 + $0x138] sm:$0xff]
        %v2870 = vld [vmem:[#allocation13 + $0x140] sm:$0xf]
        %v2871 = vld [vmem:[#allocation13 + $0x144] sm:$0xff]
        %v2872 = vld [vmem:[#allocation13 + $0x14c] sm:$0xf]
        %v2873 = vld [vmem:[#allocation13 + $0x150] sm:$0xff]
        %v2874 = vld [vmem:[#allocation13 + $0x158] sm:$0xf]
        %v2875 = vld [vmem:[#allocation13 + $0x15c] sm:$0xff]
        %v2876 = vld [vmem:[#allocation13 + $0x164] sm:$0xf]
        %v2877 = vld [vmem:[#allocation13 + $0x168] sm:$0xff]
        %v2878 = vld [vmem:[#allocation13 + $0x170] sm:$0xf]
        %v2879 = vld [vmem:[#allocation13 + $0x174] sm:$0xff]
        %v2880 = vld [vmem:[#allocation13 + $0x17c] sm:$0xf]
        %v2881 = vld [vmem:[#allocation13 + $0x180] sm:$0xff]
        %v2882 = vld [vmem:[#allocation13 + $0x188] sm:$0xf]
        %v2883 = vld [vmem:[#allocation13 + $0x18c] sm:$0xff]
        %v2884 = vld [vmem:[#allocation13 + $0x194] sm:$0xf]
        %v2885 = vld [vmem:[#allocation13 + $0x198] sm:$0xff]
        %v2886 = vld [vmem:[#allocation13 + $0x1a0] sm:$0xf]
        %v2887 = vld [vmem:[#allocation13 + $0x1a4] sm:$0xff]
        %v2888 = vld [vmem:[#allocation13 + $0x1ac] sm:$0xf]
        %v2889 = vld [vmem:[#allocation13 + $0x1b0] sm:$0xff]
        %v2890 = vld [vmem:[#allocation13 + $0x1b8] sm:$0xf]
        %v2891 = vld [vmem:[#allocation13 + $0x1bc] sm:$0xff]
        %v2892 = vld [vmem:[#allocation13 + $0x1c4] sm:$0xf]
        %v2893 = vld [vmem:[#allocation13 + $0x1c8] sm:$0xff]
        %v2894 = vld [vmem:[#allocation13 + $0x1d0] sm:$0xf]
        %v2895 = vld [vmem:[#allocation13 + $0x1d4] sm:$0xff]
        %v2896 = vld [vmem:[#allocation13 + $0x1dc] sm:$0xf]
        %v2897 = vld [vmem:[#allocation13 + $0x1e0] sm:$0xff]
        %v2898 = vld [vmem:[#allocation13 + $0x1e8] sm:$0xf]
        %v2899 = vld [vmem:[#allocation13 + $0x1ec] sm:$0xff]
        %v2900 = vld [vmem:[#allocation13 + $0x1f4] sm:$0xf]
        %v2901 = vld [vmem:[#allocation13 + $0x1f8] sm:$0xff]
        %v2902 = vld [vmem:[#allocation13 + $0x200] sm:$0xf]
        %v2903 = vld [vmem:[#allocation13 + $0x204] sm:$0xff]
        %v2904 = vld [vmem:[#allocation13 + $0x20c] sm:$0xf]
        %v2905 = vld [vmem:[#allocation13 + $0x210] sm:$0xff]
        %v2906 = vld [vmem:[#allocation13 + $0x218] sm:$0xf]
        %v2907 = vld [vmem:[#allocation13 + $0x21c] sm:$0xff]
        %v2908 = vld [vmem:[#allocation13 + $0x224] sm:$0xf]
        %v2909 = vld [vmem:[#allocation13 + $0x228] sm:$0xff]
        %v2910 = vld [vmem:[#allocation13 + $0x230] sm:$0xf]
        %v2911 = vld [vmem:[#allocation13 + $0x234] sm:$0xff]
        %v2912 = vld [vmem:[#allocation13 + $0x23c] sm:$0xf]
        %v2913 = vld [vmem:[#allocation13 + $0x240] sm:$0xff]
        %v2914 = vld [vmem:[#allocation13 + $0x248] sm:$0xf]
        %v2915 = vld [vmem:[#allocation13 + $0x24c] sm:$0xff]
        %v2916 = vld [vmem:[#allocation13 + $0x254] sm:$0xf]
        %v2917 = vld [vmem:[#allocation13 + $0x258] sm:$0xff]
        %v2918 = vld [vmem:[#allocation13 + $0x260] sm:$0xf]
        %v2919 = vld [vmem:[#allocation13 + $0x264] sm:$0xff]
        %v2920 = vld [vmem:[#allocation13 + $0x26c] sm:$0xf]
        %v2921 = vld [vmem:[#allocation13 + $0x270] sm:$0xff]
        %v2922 = vld [vmem:[#allocation13 + $0x278] sm:$0xf]
        %v2923 = vld [vmem:[#allocation13 + $0x27c] sm:$0xff]
        %v2924 = vld [vmem:[#allocation13 + $0x284] sm:$0xf]
        %v2925 = vld [vmem:[#allocation13 + $0x288] sm:$0xff]
        %v2926 = vld [vmem:[#allocation13 + $0x290] sm:$0xf]
        %v2927 = vld [vmem:[#allocation13 + $0x294] sm:$0xff]
        %v2928 = vld [vmem:[#allocation13 + $0x29c] sm:$0xf]
        %v2929 = vld [vmem:[#allocation13 + $0x2a0] sm:$0xff]
        %v2930 = vld [vmem:[#allocation13 + $0x2a8] sm:$0xf]
        %v2931 = vld [vmem:[#allocation13 + $0x2ac] sm:$0xff]
        %v2932 = vld [vmem:[#allocation13 + $0x2b4] sm:$0xf]
        %v2933 = vld [vmem:[#allocation13 + $0x2b8] sm:$0xff]
        %v2934 = vld [vmem:[#allocation13 + $0x2c0] sm:$0xf]
        %v2935 = vld [vmem:[#allocation13 + $0x2c4] sm:$0xff]
        %v2936 = vld [vmem:[#allocation13 + $0x2cc] sm:$0xf]
        %v2937 = vld [vmem:[#allocation13 + $0x2d0] sm:$0xff]
        %v2938 = vld [vmem:[#allocation13 + $0x2d8] sm:$0xf]
        %v2939 = vld [vmem:[#allocation13 + $0x2dc] sm:$0xff]
        %v2940 = vld [vmem:[#allocation13 + $0x2e4] sm:$0xf]
        %v2941 = vld [vmem:[#allocation13 + $0x2e8] sm:$0xff]
        %v2942 = vld [vmem:[#allocation13 + $0x2f0] sm:$0xf]
        %v2943 = vld [vmem:[#allocation13 + $0x2f4] sm:$0xff]
        %v2944 = vld [vmem:[#allocation13 + $0x2fc] sm:$0xf]
        %v2946 = vshrl.u32 %v2813, 16
        %v2948 = vshll.u32 %v2813, 16
        %v2950 = vrot.slane %v2948, 1
        %v2951 = vor.u32 %v2946, %v2950
        %v2953 = vshrl.u32 %v2814, 16
        %v2955 = vshll.u32 %v2814, 16
        %v2957 = vrot.slane %v2955, 1
        %v2958 = vor.u32 %v2953, %v2957
        %v2960 = vshrl.u32 %v2815, 16
        %v2962 = vshll.u32 %v2815, 16
        %v2964 = vrot.slane %v2962, 1
        %v2965 = vor.u32 %v2960, %v2964
        %v2967 = vshrl.u32 %v2816, 16
        %v2969 = vshll.u32 %v2816, 16
        %v2971 = vrot.slane %v2969, 1
        %v2972 = vor.u32 %v2967, %v2971
        %v3105 = vunpack.c.l.b16 %v2817
        %v3106 = vunpack.c.h.b16 %v2817
        %v3107 = vunpack.c.l.b16 %v2818
        %v3108 = vunpack.c.l.b16 %v2819
        %v3109 = vunpack.c.h.b16 %v2819
        %v3110 = vunpack.c.l.b16 %v2820
        %v3111 = vunpack.c.l.b16 %v2821
        %v3112 = vunpack.c.h.b16 %v2821
        %v3113 = vunpack.c.l.b16 %v2822
        %v3114 = vunpack.c.l.b16 %v2823
        %v3115 = vunpack.c.h.b16 %v2823
        %v3116 = vunpack.c.l.b16 %v2824
        %v3117 = vunpack.c.l.b16 %v2825
        %v3118 = vunpack.c.h.b16 %v2825
        %v3119 = vunpack.c.l.b16 %v2826
        %v3120 = vunpack.c.l.b16 %v2827
        %v3121 = vunpack.c.h.b16 %v2827
        %v3122 = vunpack.c.l.b16 %v2828
        %v3123 = vunpack.c.l.b16 %v2829
        %v3124 = vunpack.c.h.b16 %v2829
        %v3125 = vunpack.c.l.b16 %v2830
        %v3126 = vunpack.c.l.b16 %v2831
        %v3127 = vunpack.c.h.b16 %v2831
        %v3128 = vunpack.c.l.b16 %v2832
        %v3129 = vunpack.c.l.b16 %v2833
        %v3130 = vunpack.c.h.b16 %v2833
        %v3131 = vunpack.c.l.b16 %v2834
        %v3132 = vunpack.c.l.b16 %v2835
        %v3133 = vunpack.c.h.b16 %v2835
        %v3134 = vunpack.c.l.b16 %v2836
        %v3135 = vunpack.c.l.b16 %v2837
        %v3136 = vunpack.c.h.b16 %v2837
        %v3137 = vunpack.c.l.b16 %v2838
        %v3138 = vunpack.c.l.b16 %v2839
        %v3139 = vunpack.c.h.b16 %v2839
        %v3140 = vunpack.c.l.b16 %v2840
        %v3141 = vunpack.c.l.b16 %v2841
        %v3142 = vunpack.c.h.b16 %v2841
        %v3143 = vunpack.c.l.b16 %v2842
        %v3144 = vunpack.c.l.b16 %v2843
        %v3145 = vunpack.c.h.b16 %v2843
        %v3146 = vunpack.c.l.b16 %v2844
        %v3147 = vunpack.c.l.b16 %v2845
        %v3148 = vunpack.c.h.b16 %v2845
        %v3149 = vunpack.c.l.b16 %v2846
        %v3150 = vunpack.c.l.b16 %v2847
        %v3151 = vunpack.c.h.b16 %v2847
        %v3152 = vunpack.c.l.b16 %v2848
        %v3153 = vunpack.c.l.b16 %v2849
        %v3154 = vunpack.c.h.b16 %v2849
        %v3155 = vunpack.c.l.b16 %v2850
        %v3156 = vunpack.c.l.b16 %v2851
        %v3157 = vunpack.c.h.b16 %v2851
        %v3158 = vunpack.c.l.b16 %v2852
        %v3159 = vunpack.c.l.b16 %v2853
        %v3160 = vunpack.c.h.b16 %v2853
        %v3161 = vunpack.c.l.b16 %v2854
        %v3162 = vunpack.c.l.b16 %v2855
        %v3163 = vunpack.c.h.b16 %v2855
        %v3164 = vunpack.c.l.b16 %v2856
        %v3165 = vunpack.c.l.b16 %v2857
        %v3166 = vunpack.c.h.b16 %v2857
        %v3167 = vunpack.c.l.b16 %v2858
        %v3168 = vunpack.c.l.b16 %v2859
        %v3169 = vunpack.c.h.b16 %v2859
        %v3170 = vunpack.c.l.b16 %v2860
        %v3171 = vunpack.c.l.b16 %v2861
        %v3172 = vunpack.c.h.b16 %v2861
        %v3173 = vunpack.c.l.b16 %v2862
        %v3174 = vunpack.c.l.b16 %v2863
        %v3175 = vunpack.c.h.b16 %v2863
        %v3176 = vunpack.c.l.b16 %v2864
        %v3177 = vunpack.c.l.b16 %v2865
        %v3178 = vunpack.c.h.b16 %v2865
        %v3179 = vunpack.c.l.b16 %v2866
        %v3180 = vunpack.c.l.b16 %v2867
        %v3181 = vunpack.c.h.b16 %v2867
        %v3182 = vunpack.c.l.b16 %v2868
        %v3183 = vunpack.c.l.b16 %v2869
        %v3184 = vunpack.c.h.b16 %v2869
        %v3185 = vunpack.c.l.b16 %v2870
        %v3186 = vunpack.c.l.b16 %v2871
        %v3187 = vunpack.c.h.b16 %v2871
        %v3188 = vunpack.c.l.b16 %v2872
        %v3189 = vunpack.c.l.b16 %v2873
        %v3190 = vunpack.c.h.b16 %v2873
        %v3191 = vunpack.c.l.b16 %v2874
        %v3192 = vunpack.c.l.b16 %v2875
        %v3193 = vunpack.c.h.b16 %v2875
        %v3194 = vunpack.c.l.b16 %v2876
        %v3195 = vunpack.c.l.b16 %v2877
        %v3196 = vunpack.c.h.b16 %v2877
        %v3197 = vunpack.c.l.b16 %v2878
        %v3198 = vunpack.c.l.b16 %v2879
        %v3199 = vunpack.c.h.b16 %v2879
        %v3200 = vunpack.c.l.b16 %v2880
        %v3201 = vunpack.c.l.b16 %v2881
        %v3202 = vunpack.c.h.b16 %v2881
        %v3203 = vunpack.c.l.b16 %v2882
        %v3204 = vunpack.c.l.b16 %v2883
        %v3205 = vunpack.c.h.b16 %v2883
        %v3206 = vunpack.c.l.b16 %v2884
        %v3207 = vunpack.c.l.b16 %v2885
        %v3208 = vunpack.c.h.b16 %v2885
        %v3209 = vunpack.c.l.b16 %v2886
        %v3210 = vunpack.c.l.b16 %v2887
        %v3211 = vunpack.c.h.b16 %v2887
        %v3212 = vunpack.c.l.b16 %v2888
        %v3213 = vunpack.c.l.b16 %v2889
        %v3214 = vunpack.c.h.b16 %v2889
        %v3215 = vunpack.c.l.b16 %v2890
        %v3216 = vunpack.c.l.b16 %v2891
        %v3217 = vunpack.c.h.b16 %v2891
        %v3218 = vunpack.c.l.b16 %v2892
        %v3219 = vunpack.c.l.b16 %v2893
        %v3220 = vunpack.c.h.b16 %v2893
        %v3221 = vunpack.c.l.b16 %v2894
        %v3222 = vunpack.c.l.b16 %v2895
        %v3223 = vunpack.c.h.b16 %v2895
        %v3224 = vunpack.c.l.b16 %v2896
        %v3225 = vunpack.c.l.b16 %v2897
        %v3226 = vunpack.c.h.b16 %v2897
        %v3227 = vunpack.c.l.b16 %v2898
        %v3228 = vunpack.c.l.b16 %v2899
        %v3229 = vunpack.c.h.b16 %v2899
        %v3230 = vunpack.c.l.b16 %v2900
        %v3231 = vunpack.c.l.b16 %v2901
        %v3232 = vunpack.c.h.b16 %v2901
        %v3233 = vunpack.c.l.b16 %v2902
        %v3234 = vunpack.c.l.b16 %v2903
        %v3235 = vunpack.c.h.b16 %v2903
        %v3236 = vunpack.c.l.b16 %v2904
        %v3237 = vunpack.c.l.b16 %v2905
        %v3238 = vunpack.c.h.b16 %v2905
        %v3239 = vunpack.c.l.b16 %v2906
        %v3240 = vunpack.c.l.b16 %v2907
        %v3241 = vunpack.c.h.b16 %v2907
        %v3242 = vunpack.c.l.b16 %v2908
        %v3243 = vunpack.c.l.b16 %v2909
        %v3244 = vunpack.c.h.b16 %v2909
        %v3245 = vunpack.c.l.b16 %v2910
        %v3246 = vunpack.c.l.b16 %v2911
        %v3247 = vunpack.c.h.b16 %v2911
        %v3248 = vunpack.c.l.b16 %v2912
        %v3249 = vunpack.c.l.b16 %v2913
        %v3250 = vunpack.c.h.b16 %v2913
        %v3251 = vunpack.c.l.b16 %v2914
        %v3252 = vunpack.c.l.b16 %v2915
        %v3253 = vunpack.c.h.b16 %v2915
        %v3254 = vunpack.c.l.b16 %v2916
        %v3255 = vunpack.c.l.b16 %v2917
        %v3256 = vunpack.c.h.b16 %v2917
        %v3257 = vunpack.c.l.b16 %v2918
        %v3258 = vunpack.c.l.b16 %v2919
        %v3259 = vunpack.c.h.b16 %v2919
        %v3260 = vunpack.c.l.b16 %v2920
        %v3261 = vunpack.c.l.b16 %v2921
        %v3262 = vunpack.c.h.b16 %v2921
        %v3263 = vunpack.c.l.b16 %v2922
        %v3264 = vunpack.c.l.b16 %v2923
        %v3265 = vunpack.c.h.b16 %v2923
        %v3266 = vunpack.c.l.b16 %v2924
        %v3267 = vunpack.c.l.b16 %v2925
        %v3268 = vunpack.c.h.b16 %v2925
        %v3269 = vunpack.c.l.b16 %v2926
        %v3270 = vunpack.c.l.b16 %v2927
        %v3271 = vunpack.c.h.b16 %v2927
        %v3272 = vunpack.c.l.b16 %v2928
        %v3273 = vunpack.c.l.b16 %v2929
        %v3274 = vunpack.c.h.b16 %v2929
        %v3275 = vunpack.c.l.b16 %v2930
        %v3276 = vunpack.c.l.b16 %v2931
        %v3277 = vunpack.c.h.b16 %v2931
        %v3278 = vunpack.c.l.b16 %v2932
        %v3279 = vunpack.c.l.b16 %v2933
        %v3280 = vunpack.c.h.b16 %v2933
        %v3281 = vunpack.c.l.b16 %v2934
        %v3282 = vunpack.c.l.b16 %v2935
        %v3283 = vunpack.c.h.b16 %v2935
        %v3284 = vunpack.c.l.b16 %v2936
        %v3285 = vunpack.c.l.b16 %v2937
        %v3286 = vunpack.c.h.b16 %v2937
        %v3287 = vunpack.c.l.b16 %v2938
        %v3288 = vunpack.c.l.b16 %v2939
        %v3289 = vunpack.c.h.b16 %v2939
        %v3290 = vunpack.c.l.b16 %v2940
        %v3291 = vunpack.c.l.b16 %v2941
        %v3292 = vunpack.c.h.b16 %v2941
        %v3293 = vunpack.c.l.b16 %v2942
        %v3294 = vunpack.c.l.b16 %v2943
        %v3295 = vunpack.c.h.b16 %v2943
        %v3296 = vunpack.c.l.b16 %v2944
        %v3297 = vpack.c.b16 %v3108, %v3105
        %v3298 = vpack.c.b16 %v3109, %v3106
        %v3299 = vpack.c.b16 %v3110, %v3107
        %v3300 = vpack.c.b16 %v3114, %v3111
        %v3301 = vpack.c.b16 %v3115, %v3112
        %v3302 = vpack.c.b16 %v3116, %v3113
        %v3303 = vpack.c.b16 %v3120, %v3117
        %v3304 = vpack.c.b16 %v3121, %v3118
        %v3305 = vpack.c.b16 %v3122, %v3119
        %v3306 = vpack.c.b16 %v3126, %v3123
        %v3307 = vpack.c.b16 %v3127, %v3124
        %v3308 = vpack.c.b16 %v3128, %v3125
        %v3309 = vpack.c.b16 %v3132, %v3129
        %v3310 = vpack.c.b16 %v3133, %v3130
        %v3311 = vpack.c.b16 %v3134, %v3131
        %v3312 = vpack.c.b16 %v3138, %v3135
        %v3313 = vpack.c.b16 %v3139, %v3136
        %v3314 = vpack.c.b16 %v3140, %v3137
        %v3315 = vpack.c.b16 %v3144, %v3141
        %v3316 = vpack.c.b16 %v3145, %v3142
        %v3317 = vpack.c.b16 %v3146, %v3143
        %v3318 = vpack.c.b16 %v3150, %v3147
        %v3319 = vpack.c.b16 %v3151, %v3148
        %v3320 = vpack.c.b16 %v3152, %v3149
        %v3321 = vpack.c.b16 %v3156, %v3153
        %v3322 = vpack.c.b16 %v3157, %v3154
        %v3323 = vpack.c.b16 %v3158, %v3155
        %v3324 = vpack.c.b16 %v3162, %v3159
        %v3325 = vpack.c.b16 %v3163, %v3160
        %v3326 = vpack.c.b16 %v3164, %v3161
        %v3327 = vpack.c.b16 %v3168, %v3165
        %v3328 = vpack.c.b16 %v3169, %v3166
        %v3329 = vpack.c.b16 %v3170, %v3167
        %v3330 = vpack.c.b16 %v3174, %v3171
        %v3331 = vpack.c.b16 %v3175, %v3172
        %v3332 = vpack.c.b16 %v3176, %v3173
        %v3333 = vpack.c.b16 %v3180, %v3177
        %v3334 = vpack.c.b16 %v3181, %v3178
        %v3335 = vpack.c.b16 %v3182, %v3179
        %v3336 = vpack.c.b16 %v3186, %v3183
        %v3337 = vpack.c.b16 %v3187, %v3184
        %v3338 = vpack.c.b16 %v3188, %v3185
        %v3339 = vpack.c.b16 %v3192, %v3189
        %v3340 = vpack.c.b16 %v3193, %v3190
        %v3341 = vpack.c.b16 %v3194, %v3191
        %v3342 = vpack.c.b16 %v3198, %v3195
        %v3343 = vpack.c.b16 %v3199, %v3196
        %v3344 = vpack.c.b16 %v3200, %v3197
        %v3345 = vpack.c.b16 %v3204, %v3201
        %v3346 = vpack.c.b16 %v3205, %v3202
        %v3347 = vpack.c.b16 %v3206, %v3203
        %v3348 = vpack.c.b16 %v3210, %v3207
        %v3349 = vpack.c.b16 %v3211, %v3208
        %v3350 = vpack.c.b16 %v3212, %v3209
        %v3351 = vpack.c.b16 %v3216, %v3213
        %v3352 = vpack.c.b16 %v3217, %v3214
        %v3353 = vpack.c.b16 %v3218, %v3215
        %v3354 = vpack.c.b16 %v3222, %v3219
        %v3355 = vpack.c.b16 %v3223, %v3220
        %v3356 = vpack.c.b16 %v3224, %v3221
        %v3357 = vpack.c.b16 %v3228, %v3225
        %v3358 = vpack.c.b16 %v3229, %v3226
        %v3359 = vpack.c.b16 %v3230, %v3227
        %v3360 = vpack.c.b16 %v3234, %v3231
        %v3361 = vpack.c.b16 %v3235, %v3232
        %v3362 = vpack.c.b16 %v3236, %v3233
        %v3363 = vpack.c.b16 %v3240, %v3237
        %v3364 = vpack.c.b16 %v3241, %v3238
        %v3365 = vpack.c.b16 %v3242, %v3239
        %v3366 = vpack.c.b16 %v3246, %v3243
        %v3367 = vpack.c.b16 %v3247, %v3244
        %v3368 = vpack.c.b16 %v3248, %v3245
        %v3369 = vpack.c.b16 %v3252, %v3249
        %v3370 = vpack.c.b16 %v3253, %v3250
        %v3371 = vpack.c.b16 %v3254, %v3251
        %v3372 = vpack.c.b16 %v3258, %v3255
        %v3373 = vpack.c.b16 %v3259, %v3256
        %v3374 = vpack.c.b16 %v3260, %v3257
        %v3375 = vpack.c.b16 %v3264, %v3261
        %v3376 = vpack.c.b16 %v3265, %v3262
        %v3377 = vpack.c.b16 %v3266, %v3263
        %v3378 = vpack.c.b16 %v3270, %v3267
        %v3379 = vpack.c.b16 %v3271, %v3268
        %v3380 = vpack.c.b16 %v3272, %v3269
        %v3381 = vpack.c.b16 %v3276, %v3273
        %v3382 = vpack.c.b16 %v3277, %v3274
        %v3383 = vpack.c.b16 %v3278, %v3275
        %v3384 = vpack.c.b16 %v3282, %v3279
        %v3385 = vpack.c.b16 %v3283, %v3280
        %v3386 = vpack.c.b16 %v3284, %v3281
        %v3387 = vpack.c.b16 %v3288, %v3285
        %v3388 = vpack.c.b16 %v3289, %v3286
        %v3389 = vpack.c.b16 %v3290, %v3287
        %v3390 = vpack.c.b16 %v3294, %v3291
        %v3391 = vpack.c.b16 %v3295, %v3292
        %v3392 = vpack.c.b16 %v3296, %v3293
        %3489 = vmatpush.bf16.msra.mxu0 %v3318
        %3490 = vmatpush.bf16.msra.mxu0 %v3315
        %3491 = vmatpush.bf16.msra.mxu0 %v3312
        %3492 = vmatpush.bf16.msra.mxu0 %v3309
        %3493 = vmatpush.bf16.msra.mxu0 %v3306
        %3494 = vmatpush.bf16.msra.mxu0 %v3303
        %3495 = vmatpush.bf16.msra.mxu0 %v3300
        %3496 = vmatpush.bf16.msra.mxu0 %v3297
        %3497 = vmatmul.bf16.gmra.mxu0 %v2951
        %v3498 = vpop.f32.mrf.mxu0
        %v3499 = vadd.f32 0.0, %v3498
        %v3500 = vpop.f32.mrf.mxu0
        %3501 = vdwg.mxu0
        %3502 = vmatpush.bf16.msra.mxu0 %v3342
        %3503 = vmatpush.bf16.msra.mxu0 %v3339
        %3504 = vmatpush.bf16.msra.mxu0 %v3336
        %3505 = vmatpush.bf16.msra.mxu0 %v3333
        %3506 = vmatpush.bf16.msra.mxu0 %v3330
        %3507 = vmatpush.bf16.msra.mxu0 %v3327
        %3508 = vmatpush.bf16.msra.mxu0 %v3324
        %3509 = vmatpush.bf16.msra.mxu0 %v3321
        %3510 = vmatmul.bf16.gmra.mxu0 %v2958
        %v3511 = vpop.f32.mrf.mxu0
        %v3512 = vadd.f32 %v3499, %v3511
        %v3513 = vpop.f32.mrf.mxu0
        %3514 = vdwg.mxu0
        %3515 = vmatpush.bf16.msra.mxu0 %v3366
        %3516 = vmatpush.bf16.msra.mxu0 %v3363
        %3517 = vmatpush.bf16.msra.mxu0 %v3360
        %3518 = vmatpush.bf16.msra.mxu0 %v3357
        %3519 = vmatpush.bf16.msra.mxu0 %v3354
        %3520 = vmatpush.bf16.msra.mxu0 %v3351
        %3521 = vmatpush.bf16.msra.mxu0 %v3348
        %3522 = vmatpush.bf16.msra.mxu0 %v3345
        %3523 = vmatmul.bf16.gmra.mxu0 %v2965
        %v3524 = vpop.f32.mrf.mxu0
        %v3525 = vadd.f32 %v3512, %v3524
        %v3526 = vpop.f32.mrf.mxu0
        %3527 = vdwg.mxu0
        %3528 = vmatpush.bf16.msra.mxu0 %v3390
        %3529 = vmatpush.bf16.msra.mxu0 %v3387
        %3530 = vmatpush.bf16.msra.mxu0 %v3384
        %3531 = vmatpush.bf16.msra.mxu0 %v3381
        %3532 = vmatpush.bf16.msra.mxu0 %v3378
        %3533 = vmatpush.bf16.msra.mxu0 %v3375
        %3534 = vmatpush.bf16.msra.mxu0 %v3372
        %3535 = vmatpush.bf16.msra.mxu0 %v3369
        %3536 = vmatmul.bf16.gmra.mxu0 %v2972
        %v3537 = vpop.f32.mrf.mxu0
        %v3538 = vadd.f32 %v3525, %v3537
        %v3539 = vpop.f32.mrf.mxu0
        %3540 = vdwg.mxu0
        %3541 = vmatpush.bf16.msra.mxu0 %v3319
        %3542 = vmatpush.bf16.msra.mxu0 %v3316
        %3543 = vmatpush.bf16.msra.mxu0 %v3313
        %3544 = vmatpush.bf16.msra.mxu0 %v3310
        %3545 = vmatpush.bf16.msra.mxu0 %v3307
        %3546 = vmatpush.bf16.msra.mxu0 %v3304
        %3547 = vmatpush.bf16.msra.mxu0 %v3301
        %3548 = vmatpush.bf16.msra.mxu0 %v3298
        %3549 = vmatmul.bf16.gmra.mxu0 %v2951
        %v3550 = vpop.f32.mrf.mxu0
        %v3551 = vadd.f32 0.0, %v3550
        %v3552 = vpop.f32.mrf.mxu0
        %3553 = vdwg.mxu0
        %3554 = vmatpush.bf16.msra.mxu0 %v3343
        %3555 = vmatpush.bf16.msra.mxu0 %v3340
        %3556 = vmatpush.bf16.msra.mxu0 %v3337
        %3557 = vmatpush.bf16.msra.mxu0 %v3334
        %3558 = vmatpush.bf16.msra.mxu0 %v3331
        %3559 = vmatpush.bf16.msra.mxu0 %v3328
        %3560 = vmatpush.bf16.msra.mxu0 %v3325
        %3561 = vmatpush.bf16.msra.mxu0 %v3322
        %3562 = vmatmul.bf16.gmra.mxu0 %v2958
        %v3563 = vpop.f32.mrf.mxu0
        %v3564 = vadd.f32 %v3551, %v3563
        %v3565 = vpop.f32.mrf.mxu0
        %3566 = vdwg.mxu0
        %3567 = vmatpush.bf16.msra.mxu0 %v3367
        %3568 = vmatpush.bf16.msra.mxu0 %v3364
        %3569 = vmatpush.bf16.msra.mxu0 %v3361
        %3570 = vmatpush.bf16.msra.mxu0 %v3358
        %3571 = vmatpush.bf16.msra.mxu0 %v3355
        %3572 = vmatpush.bf16.msra.mxu0 %v3352
        %3573 = vmatpush.bf16.msra.mxu0 %v3349
        %3574 = vmatpush.bf16.msra.mxu0 %v3346
        %3575 = vmatmul.bf16.gmra.mxu0 %v2965
        %v3576 = vpop.f32.mrf.mxu0
        %v3577 = vadd.f32 %v3564, %v3576
        %v3578 = vpop.f32.mrf.mxu0
        %3579 = vdwg.mxu0
        %3580 = vmatpush.bf16.msra.mxu0 %v3391
        %3581 = vmatpush.bf16.msra.mxu0 %v3388
        %3582 = vmatpush.bf16.msra.mxu0 %v3385
        %3583 = vmatpush.bf16.msra.mxu0 %v3382
        %3584 = vmatpush.bf16.msra.mxu0 %v3379
        %3585 = vmatpush.bf16.msra.mxu0 %v3376
        %3586 = vmatpush.bf16.msra.mxu0 %v3373
        %3587 = vmatpush.bf16.msra.mxu0 %v3370
        %3588 = vmatmul.bf16.gmra.mxu0 %v2972
        %v3589 = vpop.f32.mrf.mxu0
        %v3590 = vadd.f32 %v3577, %v3589
        %v3591 = vpop.f32.mrf.mxu0
        %3592 = vdwg.mxu0
        %3593 = vmatpush.bf16.msra.mxu0 %v3320
        %3594 = vmatpush.bf16.msra.mxu0 %v3317
        %3595 = vmatpush.bf16.msra.mxu0 %v3314
        %3596 = vmatpush.bf16.msra.mxu0 %v3311
        %3597 = vmatpush.bf16.msra.mxu0 %v3308
        %3598 = vmatpush.bf16.msra.mxu0 %v3305
        %3599 = vmatpush.bf16.msra.mxu0 %v3302
        %3600 = vmatpush.bf16.msra.mxu0 %v3299
        %3601 = vmatmul.bf16.gmra.mxu0 %v2951
        %v3602 = vpop.f32.mrf.mxu0
        %v3603 = vadd.f32 0.0, %v3602
        %v3604 = vpop.f32.mrf.mxu0
        %3605 = vdwg.mxu0
        %3606 = vmatpush.bf16.msra.mxu0 %v3344
        %3607 = vmatpush.bf16.msra.mxu0 %v3341
        %3608 = vmatpush.bf16.msra.mxu0 %v3338
        %3609 = vmatpush.bf16.msra.mxu0 %v3335
        %3610 = vmatpush.bf16.msra.mxu0 %v3332
        %3611 = vmatpush.bf16.msra.mxu0 %v3329
        %3612 = vmatpush.bf16.msra.mxu0 %v3326
        %3613 = vmatpush.bf16.msra.mxu0 %v3323
        %3614 = vmatmul.bf16.gmra.mxu0 %v2958
        %v3615 = vpop.f32.mrf.mxu0
        %v3616 = vadd.f32 %v3603, %v3615
        %v3617 = vpop.f32.mrf.mxu0
        %3618 = vdwg.mxu0
        %3619 = vmatpush.bf16.msra.mxu0 %v3368
        %3620 = vmatpush.bf16.msra.mxu0 %v3365
        %3621 = vmatpush.bf16.msra.mxu0 %v3362
        %3622 = vmatpush.bf16.msra.mxu0 %v3359
        %3623 = vmatpush.bf16.msra.mxu0 %v3356
        %3624 = vmatpush.bf16.msra.mxu0 %v3353
        %3625 = vmatpush.bf16.msra.mxu0 %v3350
        %3626 = vmatpush.bf16.msra.mxu0 %v3347
        %3627 = vmatmul.bf16.gmra.mxu0 %v2965
        %v3628 = vpop.f32.mrf.mxu0
        %v3629 = vadd.f32 %v3616, %v3628
        %v3630 = vpop.f32.mrf.mxu0
        %3631 = vdwg.mxu0
        %3632 = vmatpush.bf16.msra.mxu0 %v3392
        %3633 = vmatpush.bf16.msra.mxu0 %v3389
        %3634 = vmatpush.bf16.msra.mxu0 %v3386
        %3635 = vmatpush.bf16.msra.mxu0 %v3383
        %3636 = vmatpush.bf16.msra.mxu0 %v3380
        %3637 = vmatpush.bf16.msra.mxu0 %v3377
        %3638 = vmatpush.bf16.msra.mxu0 %v3374
        %3639 = vmatpush.bf16.msra.mxu0 %v3371
        %3640 = vmatmul.bf16.gmra.mxu0 %v2972
        %v3641 = vpop.f32.mrf.mxu0
        %v3642 = vadd.f32 %v3629, %v3641
        %v3643 = vpop.f32.mrf.mxu0
        %3644 = vdwg.mxu0
        %v3773 = vunpack.c.l.b16 %v2685
        %v3774 = vunpack.c.h.b16 %v2685
        %v3775 = vunpack.c.l.b16 %v2686
        %v3776 = vunpack.c.l.b16 %v2687
        %v3777 = vunpack.c.h.b16 %v2687
        %v3778 = vunpack.c.l.b16 %v2688
        %v3779 = vunpack.c.l.b16 %v2689
        %v3780 = vunpack.c.h.b16 %v2689
        %v3781 = vunpack.c.l.b16 %v2690
        %v3782 = vunpack.c.l.b16 %v2691
        %v3783 = vunpack.c.h.b16 %v2691
        %v3784 = vunpack.c.l.b16 %v2692
        %v3785 = vunpack.c.l.b16 %v2693
        %v3786 = vunpack.c.h.b16 %v2693
        %v3787 = vunpack.c.l.b16 %v2694
        %v3788 = vunpack.c.l.b16 %v2695
        %v3789 = vunpack.c.h.b16 %v2695
        %v3790 = vunpack.c.l.b16 %v2696
        %v3791 = vunpack.c.l.b16 %v2697
        %v3792 = vunpack.c.h.b16 %v2697
        %v3793 = vunpack.c.l.b16 %v2698
        %v3794 = vunpack.c.l.b16 %v2699
        %v3795 = vunpack.c.h.b16 %v2699
        %v3796 = vunpack.c.l.b16 %v2700
        %v3797 = vunpack.c.l.b16 %v2701
        %v3798 = vunpack.c.h.b16 %v2701
        %v3799 = vunpack.c.l.b16 %v2702
        %v3800 = vunpack.c.l.b16 %v2703
        %v3801 = vunpack.c.h.b16 %v2703
        %v3802 = vunpack.c.l.b16 %v2704
        %v3803 = vunpack.c.l.b16 %v2705
        %v3804 = vunpack.c.h.b16 %v2705
        %v3805 = vunpack.c.l.b16 %v2706
        %v3806 = vunpack.c.l.b16 %v2707
        %v3807 = vunpack.c.h.b16 %v2707
        %v3808 = vunpack.c.l.b16 %v2708
        %v3809 = vunpack.c.l.b16 %v2709
        %v3810 = vunpack.c.h.b16 %v2709
        %v3811 = vunpack.c.l.b16 %v2710
        %v3812 = vunpack.c.l.b16 %v2711
        %v3813 = vunpack.c.h.b16 %v2711
        %v3814 = vunpack.c.l.b16 %v2712
        %v3815 = vunpack.c.l.b16 %v2713
        %v3816 = vunpack.c.h.b16 %v2713
        %v3817 = vunpack.c.l.b16 %v2714
        %v3818 = vunpack.c.l.b16 %v2715
        %v3819 = vunpack.c.h.b16 %v2715
        %v3820 = vunpack.c.l.b16 %v2716
        %v3821 = vunpack.c.l.b16 %v2717
        %v3822 = vunpack.c.h.b16 %v2717
        %v3823 = vunpack.c.l.b16 %v2718
        %v3824 = vunpack.c.l.b16 %v2719
        %v3825 = vunpack.c.h.b16 %v2719
        %v3826 = vunpack.c.l.b16 %v2720
        %v3827 = vunpack.c.l.b16 %v2721
        %v3828 = vunpack.c.h.b16 %v2721
        %v3829 = vunpack.c.l.b16 %v2722
        %v3830 = vunpack.c.l.b16 %v2723
        %v3831 = vunpack.c.h.b16 %v2723
        %v3832 = vunpack.c.l.b16 %v2724
        %v3833 = vunpack.c.l.b16 %v2725
        %v3834 = vunpack.c.h.b16 %v2725
        %v3835 = vunpack.c.l.b16 %v2726
        %v3836 = vunpack.c.l.b16 %v2727
        %v3837 = vunpack.c.h.b16 %v2727
        %v3838 = vunpack.c.l.b16 %v2728
        %v3839 = vunpack.c.l.b16 %v2729
        %v3840 = vunpack.c.h.b16 %v2729
        %v3841 = vunpack.c.l.b16 %v2730
        %v3842 = vunpack.c.l.b16 %v2731
        %v3843 = vunpack.c.h.b16 %v2731
        %v3844 = vunpack.c.l.b16 %v2732
        %v3845 = vunpack.c.l.b16 %v2733
        %v3846 = vunpack.c.h.b16 %v2733
        %v3847 = vunpack.c.l.b16 %v2734
        %v3848 = vunpack.c.l.b16 %v2735
        %v3849 = vunpack.c.h.b16 %v2735
        %v3850 = vunpack.c.l.b16 %v2736
        %v3851 = vunpack.c.l.b16 %v2737
        %v3852 = vunpack.c.h.b16 %v2737
        %v3853 = vunpack.c.l.b16 %v2738
        %v3854 = vunpack.c.l.b16 %v2739
        %v3855 = vunpack.c.h.b16 %v2739
        %v3856 = vunpack.c.l.b16 %v2740
        %v3857 = vunpack.c.l.b16 %v2741
        %v3858 = vunpack.c.h.b16 %v2741
        %v3859 = vunpack.c.l.b16 %v2742
        %v3860 = vunpack.c.l.b16 %v2743
        %v3861 = vunpack.c.h.b16 %v2743
        %v3862 = vunpack.c.l.b16 %v2744
        %v3863 = vunpack.c.l.b16 %v2745
        %v3864 = vunpack.c.h.b16 %v2745
        %v3865 = vunpack.c.l.b16 %v2746
        %v3866 = vunpack.c.l.b16 %v2747
        %v3867 = vunpack.c.h.b16 %v2747
        %v3868 = vunpack.c.l.b16 %v2748
        %v3869 = vunpack.c.l.b16 %v2749
        %v3870 = vunpack.c.h.b16 %v2749
        %v3871 = vunpack.c.l.b16 %v2750
        %v3872 = vunpack.c.l.b16 %v2751
        %v3873 = vunpack.c.h.b16 %v2751
        %v3874 = vunpack.c.l.b16 %v2752
        %v3875 = vunpack.c.l.b16 %v2753
        %v3876 = vunpack.c.h.b16 %v2753
        %v3877 = vunpack.c.l.b16 %v2754
        %v3878 = vunpack.c.l.b16 %v2755
        %v3879 = vunpack.c.h.b16 %v2755
        %v3880 = vunpack.c.l.b16 %v2756
        %v3881 = vunpack.c.l.b16 %v2757
        %v3882 = vunpack.c.h.b16 %v2757
        %v3883 = vunpack.c.l.b16 %v2758
        %v3884 = vunpack.c.l.b16 %v2759
        %v3885 = vunpack.c.h.b16 %v2759
        %v3886 = vunpack.c.l.b16 %v2760
        %v3887 = vunpack.c.l.b16 %v2761
        %v3888 = vunpack.c.h.b16 %v2761
        %v3889 = vunpack.c.l.b16 %v2762
        %v3890 = vunpack.c.l.b16 %v2763
        %v3891 = vunpack.c.h.b16 %v2763
        %v3892 = vunpack.c.l.b16 %v2764
        %v3893 = vunpack.c.l.b16 %v2765
        %v3894 = vunpack.c.h.b16 %v2765
        %v3895 = vunpack.c.l.b16 %v2766
        %v3896 = vunpack.c.l.b16 %v2767
        %v3897 = vunpack.c.h.b16 %v2767
        %v3898 = vunpack.c.l.b16 %v2768
        %v3899 = vunpack.c.l.b16 %v2769
        %v3900 = vunpack.c.h.b16 %v2769
        %v3901 = vunpack.c.l.b16 %v2770
        %v3902 = vunpack.c.l.b16 %v2771
        %v3903 = vunpack.c.h.b16 %v2771
        %v3904 = vunpack.c.l.b16 %v2772
        %v3905 = vunpack.c.l.b16 %v2773
        %v3906 = vunpack.c.h.b16 %v2773
        %v3907 = vunpack.c.l.b16 %v2774
        %v3908 = vunpack.c.l.b16 %v2775
        %v3909 = vunpack.c.h.b16 %v2775
        %v3910 = vunpack.c.l.b16 %v2776
        %v3911 = vunpack.c.l.b16 %v2777
        %v3912 = vunpack.c.h.b16 %v2777
        %v3913 = vunpack.c.l.b16 %v2778
        %v3914 = vunpack.c.l.b16 %v2779
        %v3915 = vunpack.c.h.b16 %v2779
        %v3916 = vunpack.c.l.b16 %v2780
        %v3917 = vunpack.c.l.b16 %v2781
        %v3918 = vunpack.c.h.b16 %v2781
        %v3919 = vunpack.c.l.b16 %v2782
        %v3920 = vunpack.c.l.b16 %v2783
        %v3921 = vunpack.c.h.b16 %v2783
        %v3922 = vunpack.c.l.b16 %v2784
        %v3923 = vunpack.c.l.b16 %v2785
        %v3924 = vunpack.c.h.b16 %v2785
        %v3925 = vunpack.c.l.b16 %v2786
        %v3926 = vunpack.c.l.b16 %v2787
        %v3927 = vunpack.c.h.b16 %v2787
        %v3928 = vunpack.c.l.b16 %v2788
        %v3929 = vunpack.c.l.b16 %v2789
        %v3930 = vunpack.c.h.b16 %v2789
        %v3931 = vunpack.c.l.b16 %v2790
        %v3932 = vunpack.c.l.b16 %v2791
        %v3933 = vunpack.c.h.b16 %v2791
        %v3934 = vunpack.c.l.b16 %v2792
        %v3935 = vunpack.c.l.b16 %v2793
        %v3936 = vunpack.c.h.b16 %v2793
        %v3937 = vunpack.c.l.b16 %v2794
        %v3938 = vunpack.c.l.b16 %v2795
        %v3939 = vunpack.c.h.b16 %v2795
        %v3940 = vunpack.c.l.b16 %v2796
        %v3941 = vunpack.c.l.b16 %v2797
        %v3942 = vunpack.c.h.b16 %v2797
        %v3943 = vunpack.c.l.b16 %v2798
        %v3944 = vunpack.c.l.b16 %v2799
        %v3945 = vunpack.c.h.b16 %v2799
        %v3946 = vunpack.c.l.b16 %v2800
        %v3947 = vunpack.c.l.b16 %v2801
        %v3948 = vunpack.c.h.b16 %v2801
        %v3949 = vunpack.c.l.b16 %v2802
        %v3950 = vunpack.c.l.b16 %v2803
        %v3951 = vunpack.c.h.b16 %v2803
        %v3952 = vunpack.c.l.b16 %v2804
        %v3953 = vunpack.c.l.b16 %v2805
        %v3954 = vunpack.c.h.b16 %v2805
        %v3955 = vunpack.c.l.b16 %v2806
        %v3956 = vunpack.c.l.b16 %v2807
        %v3957 = vunpack.c.h.b16 %v2807
        %v3958 = vunpack.c.l.b16 %v2808
        %v3959 = vunpack.c.l.b16 %v2809
        %v3960 = vunpack.c.h.b16 %v2809
        %v3961 = vunpack.c.l.b16 %v2810
        %v3962 = vunpack.c.l.b16 %v2811
        %v3963 = vunpack.c.h.b16 %v2811
        %v3964 = vunpack.c.l.b16 %v2812
        %v3965 = vpack.c.b16 %v3776, %v3773
        %v3966 = vpack.c.b16 %v3777, %v3774
        %v3967 = vpack.c.b16 %v3778, %v3775
        %v3968 = vpack.c.b16 %v3782, %v3779
        %v3969 = vpack.c.b16 %v3783, %v3780
        %v3970 = vpack.c.b16 %v3784, %v3781
        %v3971 = vpack.c.b16 %v3788, %v3785
        %v3972 = vpack.c.b16 %v3789, %v3786
        %v3973 = vpack.c.b16 %v3790, %v3787
        %v3974 = vpack.c.b16 %v3794, %v3791
        %v3975 = vpack.c.b16 %v3795, %v3792
        %v3976 = vpack.c.b16 %v3796, %v3793
        %v3977 = vpack.c.b16 %v3800, %v3797
        %v3978 = vpack.c.b16 %v3801, %v3798
        %v3979 = vpack.c.b16 %v3802, %v3799
        %v3980 = vpack.c.b16 %v3806, %v3803
        %v3981 = vpack.c.b16 %v3807, %v3804
        %v3982 = vpack.c.b16 %v3808, %v3805
        %v3983 = vpack.c.b16 %v3812, %v3809
        %v3984 = vpack.c.b16 %v3813, %v3810
        %v3985 = vpack.c.b16 %v3814, %v3811
        %v3986 = vpack.c.b16 %v3818, %v3815
        %v3987 = vpack.c.b16 %v3819, %v3816
        %v3988 = vpack.c.b16 %v3820, %v3817
        %v3989 = vpack.c.b16 %v3824, %v3821
        %v3990 = vpack.c.b16 %v3825, %v3822
        %v3991 = vpack.c.b16 %v3826, %v3823
        %v3992 = vpack.c.b16 %v3830, %v3827
        %v3993 = vpack.c.b16 %v3831, %v3828
        %v3994 = vpack.c.b16 %v3832, %v3829
        %v3995 = vpack.c.b16 %v3836, %v3833
        %v3996 = vpack.c.b16 %v3837, %v3834
        %v3997 = vpack.c.b16 %v3838, %v3835
        %v3998 = vpack.c.b16 %v3842, %v3839
        %v3999 = vpack.c.b16 %v3843, %v3840
        %v4000 = vpack.c.b16 %v3844, %v3841
        %v4001 = vpack.c.b16 %v3848, %v3845
        %v4002 = vpack.c.b16 %v3849, %v3846
        %v4003 = vpack.c.b16 %v3850, %v3847
        %v4004 = vpack.c.b16 %v3854, %v3851
        %v4005 = vpack.c.b16 %v3855, %v3852
        %v4006 = vpack.c.b16 %v3856, %v3853
        %v4007 = vpack.c.b16 %v3860, %v3857
        %v4008 = vpack.c.b16 %v3861, %v3858
        %v4009 = vpack.c.b16 %v3862, %v3859
        %v4010 = vpack.c.b16 %v3866, %v3863
        %v4011 = vpack.c.b16 %v3867, %v3864
        %v4012 = vpack.c.b16 %v3868, %v3865
        %v4013 = vpack.c.b16 %v3872, %v3869
        %v4014 = vpack.c.b16 %v3873, %v3870
        %v4015 = vpack.c.b16 %v3874, %v3871
        %v4016 = vpack.c.b16 %v3878, %v3875
        %v4017 = vpack.c.b16 %v3879, %v3876
        %v4018 = vpack.c.b16 %v3880, %v3877
        %v4019 = vpack.c.b16 %v3884, %v3881
        %v4020 = vpack.c.b16 %v3885, %v3882
        %v4021 = vpack.c.b16 %v3886, %v3883
        %v4022 = vpack.c.b16 %v3890, %v3887
        %v4023 = vpack.c.b16 %v3891, %v3888
        %v4024 = vpack.c.b16 %v3892, %v3889
        %v4025 = vpack.c.b16 %v3896, %v3893
        %v4026 = vpack.c.b16 %v3897, %v3894
        %v4027 = vpack.c.b16 %v3898, %v3895
        %v4028 = vpack.c.b16 %v3902, %v3899
        %v4029 = vpack.c.b16 %v3903, %v3900
        %v4030 = vpack.c.b16 %v3904, %v3901
        %v4031 = vpack.c.b16 %v3908, %v3905
        %v4032 = vpack.c.b16 %v3909, %v3906
        %v4033 = vpack.c.b16 %v3910, %v3907
        %v4034 = vpack.c.b16 %v3914, %v3911
        %v4035 = vpack.c.b16 %v3915, %v3912
        %v4036 = vpack.c.b16 %v3916, %v3913
        %v4037 = vpack.c.b16 %v3920, %v3917
        %v4038 = vpack.c.b16 %v3921, %v3918
        %v4039 = vpack.c.b16 %v3922, %v3919
        %v4040 = vpack.c.b16 %v3926, %v3923
        %v4041 = vpack.c.b16 %v3927, %v3924
        %v4042 = vpack.c.b16 %v3928, %v3925
        %v4043 = vpack.c.b16 %v3932, %v3929
        %v4044 = vpack.c.b16 %v3933, %v3930
        %v4045 = vpack.c.b16 %v3934, %v3931
        %v4046 = vpack.c.b16 %v3938, %v3935
        %v4047 = vpack.c.b16 %v3939, %v3936
        %v4048 = vpack.c.b16 %v3940, %v3937
        %v4049 = vpack.c.b16 %v3944, %v3941
        %v4050 = vpack.c.b16 %v3945, %v3942
        %v4051 = vpack.c.b16 %v3946, %v3943
        %v4052 = vpack.c.b16 %v3950, %v3947
        %v4053 = vpack.c.b16 %v3951, %v3948
        %v4054 = vpack.c.b16 %v3952, %v3949
        %v4055 = vpack.c.b16 %v3956, %v3953
        %v4056 = vpack.c.b16 %v3957, %v3954
        %v4057 = vpack.c.b16 %v3958, %v3955
        %v4058 = vpack.c.b16 %v3962, %v3959
        %v4059 = vpack.c.b16 %v3963, %v3960
        %v4060 = vpack.c.b16 %v3964, %v3961
        %4157 = vmatpush.bf16.msra.mxu0 %v3986
        %4158 = vmatpush.bf16.msra.mxu0 %v3983
        %4159 = vmatpush.bf16.msra.mxu0 %v3980
        %4160 = vmatpush.bf16.msra.mxu0 %v3977
        %4161 = vmatpush.bf16.msra.mxu0 %v3974
        %4162 = vmatpush.bf16.msra.mxu0 %v3971
        %4163 = vmatpush.bf16.msra.mxu0 %v3968
        %4164 = vmatpush.bf16.msra.mxu0 %v3965
        %4165 = vmatmul.bf16.gmra.mxu0 %v2681
        %v4166 = vpop.f32.mrf.mxu0
        %v4167 = vadd.f32 %v3538, %v4166
        %v4168 = vpop.f32.mrf.mxu0
        %4169 = vdwg.mxu0
        %4170 = vmatpush.bf16.msra.mxu0 %v4010
        %4171 = vmatpush.bf16.msra.mxu0 %v4007
        %4172 = vmatpush.bf16.msra.mxu0 %v4004
        %4173 = vmatpush.bf16.msra.mxu0 %v4001
        %4174 = vmatpush.bf16.msra.mxu0 %v3998
        %4175 = vmatpush.bf16.msra.mxu0 %v3995
        %4176 = vmatpush.bf16.msra.mxu0 %v3992
        %4177 = vmatpush.bf16.msra.mxu0 %v3989
        %4178 = vmatmul.bf16.gmra.mxu0 %v2682
        %v4179 = vpop.f32.mrf.mxu0
        %v4180 = vadd.f32 %v4167, %v4179
        %v4181 = vpop.f32.mrf.mxu0
        %4182 = vdwg.mxu0
        %4183 = vmatpush.bf16.msra.mxu0 %v4034
        %4184 = vmatpush.bf16.msra.mxu0 %v4031
        %4185 = vmatpush.bf16.msra.mxu0 %v4028
        %4186 = vmatpush.bf16.msra.mxu0 %v4025
        %4187 = vmatpush.bf16.msra.mxu0 %v4022
        %4188 = vmatpush.bf16.msra.mxu0 %v4019
        %4189 = vmatpush.bf16.msra.mxu0 %v4016
        %4190 = vmatpush.bf16.msra.mxu0 %v4013
        %4191 = vmatmul.bf16.gmra.mxu0 %v2683
        %v4192 = vpop.f32.mrf.mxu0
        %v4193 = vadd.f32 %v4180, %v4192
        %v4194 = vpop.f32.mrf.mxu0
        %4195 = vdwg.mxu0
        %4196 = vmatpush.bf16.msra.mxu0 %v4058
        %4197 = vmatpush.bf16.msra.mxu0 %v4055
        %4198 = vmatpush.bf16.msra.mxu0 %v4052
        %4199 = vmatpush.bf16.msra.mxu0 %v4049
        %4200 = vmatpush.bf16.msra.mxu0 %v4046
        %4201 = vmatpush.bf16.msra.mxu0 %v4043
        %4202 = vmatpush.bf16.msra.mxu0 %v4040
        %4203 = vmatpush.bf16.msra.mxu0 %v4037
        %4204 = vmatmul.bf16.gmra.mxu0 %v2684
        %v4205 = vpop.f32.mrf.mxu0
        %v4206 = vadd.f32 %v4193, %v4205
        %v4207 = vpop.f32.mrf.mxu0
        %4208 = vdwg.mxu0
        %4209 = vmatpush.bf16.msra.mxu0 %v3987
        %4210 = vmatpush.bf16.msra.mxu0 %v3984
        %4211 = vmatpush.bf16.msra.mxu0 %v3981
        %4212 = vmatpush.bf16.msra.mxu0 %v3978
        %4213 = vmatpush.bf16.msra.mxu0 %v3975
        %4214 = vmatpush.bf16.msra.mxu0 %v3972
        %4215 = vmatpush.bf16.msra.mxu0 %v3969
        %4216 = vmatpush.bf16.msra.mxu0 %v3966
        %4217 = vmatmul.bf16.gmra.mxu0 %v2681
        %v4218 = vpop.f32.mrf.mxu0
        %v4219 = vadd.f32 %v3590, %v4218
        %v4220 = vpop.f32.mrf.mxu0
        %4221 = vdwg.mxu0
        %4222 = vmatpush.bf16.msra.mxu0 %v4011
        %4223 = vmatpush.bf16.msra.mxu0 %v4008
        %4224 = vmatpush.bf16.msra.mxu0 %v4005
        %4225 = vmatpush.bf16.msra.mxu0 %v4002
        %4226 = vmatpush.bf16.msra.mxu0 %v3999
        %4227 = vmatpush.bf16.msra.mxu0 %v3996
        %4228 = vmatpush.bf16.msra.mxu0 %v3993
        %4229 = vmatpush.bf16.msra.mxu0 %v3990
        %4230 = vmatmul.bf16.gmra.mxu0 %v2682
        %v4231 = vpop.f32.mrf.mxu0
        %v4232 = vadd.f32 %v4219, %v4231
        %v4233 = vpop.f32.mrf.mxu0
        %4234 = vdwg.mxu0
        %4235 = vmatpush.bf16.msra.mxu0 %v4035
        %4236 = vmatpush.bf16.msra.mxu0 %v4032
        %4237 = vmatpush.bf16.msra.mxu0 %v4029
        %4238 = vmatpush.bf16.msra.mxu0 %v4026
        %4239 = vmatpush.bf16.msra.mxu0 %v4023
        %4240 = vmatpush.bf16.msra.mxu0 %v4020
        %4241 = vmatpush.bf16.msra.mxu0 %v4017
        %4242 = vmatpush.bf16.msra.mxu0 %v4014
        %4243 = vmatmul.bf16.gmra.mxu0 %v2683
        %v4244 = vpop.f32.mrf.mxu0
        %v4245 = vadd.f32 %v4232, %v4244
        %v4246 = vpop.f32.mrf.mxu0
        %4247 = vdwg.mxu0
        %4248 = vmatpush.bf16.msra.mxu0 %v4059
        %4249 = vmatpush.bf16.msra.mxu0 %v4056
        %4250 = vmatpush.bf16.msra.mxu0 %v4053
        %4251 = vmatpush.bf16.msra.mxu0 %v4050
        %4252 = vmatpush.bf16.msra.mxu0 %v4047
        %4253 = vmatpush.bf16.msra.mxu0 %v4044
        %4254 = vmatpush.bf16.msra.mxu0 %v4041
        %4255 = vmatpush.bf16.msra.mxu0 %v4038
        %4256 = vmatmul.bf16.gmra.mxu0 %v2684
        %v4257 = vpop.f32.mrf.mxu0
        %v4258 = vadd.f32 %v4245, %v4257
        %v4259 = vpop.f32.mrf.mxu0
        %4260 = vdwg.mxu0
        %4261 = vmatpush.bf16.msra.mxu0 %v3988
        %4262 = vmatpush.bf16.msra.mxu0 %v3985
        %4263 = vmatpush.bf16.msra.mxu0 %v3982
        %4264 = vmatpush.bf16.msra.mxu0 %v3979
        %4265 = vmatpush.bf16.msra.mxu0 %v3976
        %4266 = vmatpush.bf16.msra.mxu0 %v3973
        %4267 = vmatpush.bf16.msra.mxu0 %v3970
        %4268 = vmatpush.bf16.msra.mxu0 %v3967
        %4269 = vmatmul.bf16.gmra.mxu0 %v2681
        %v4270 = vpop.f32.mrf.mxu0
        %v4271 = vadd.f32 %v3642, %v4270
        %v4272 = vpop.f32.mrf.mxu0
        %4273 = vdwg.mxu0
        %4274 = vmatpush.bf16.msra.mxu0 %v4012
        %4275 = vmatpush.bf16.msra.mxu0 %v4009
        %4276 = vmatpush.bf16.msra.mxu0 %v4006
        %4277 = vmatpush.bf16.msra.mxu0 %v4003
        %4278 = vmatpush.bf16.msra.mxu0 %v4000
        %4279 = vmatpush.bf16.msra.mxu0 %v3997
        %4280 = vmatpush.bf16.msra.mxu0 %v3994
        %4281 = vmatpush.bf16.msra.mxu0 %v3991
        %4282 = vmatmul.bf16.gmra.mxu0 %v2682
        %v4283 = vpop.f32.mrf.mxu0
        %v4284 = vadd.f32 %v4271, %v4283
        %v4285 = vpop.f32.mrf.mxu0
        %4286 = vdwg.mxu0
        %4287 = vmatpush.bf16.msra.mxu0 %v4036
        %4288 = vmatpush.bf16.msra.mxu0 %v4033
        %4289 = vmatpush.bf16.msra.mxu0 %v4030
        %4290 = vmatpush.bf16.msra.mxu0 %v4027
        %4291 = vmatpush.bf16.msra.mxu0 %v4024
        %4292 = vmatpush.bf16.msra.mxu0 %v4021
        %4293 = vmatpush.bf16.msra.mxu0 %v4018
        %4294 = vmatpush.bf16.msra.mxu0 %v4015
        %4295 = vmatmul.bf16.gmra.mxu0 %v2683
        %v4296 = vpop.f32.mrf.mxu0
        %v4297 = vadd.f32 %v4284, %v4296
        %v4298 = vpop.f32.mrf.mxu0
        %4299 = vdwg.mxu0
        %4300 = vmatpush.bf16.msra.mxu0 %v4060
        %4301 = vmatpush.bf16.msra.mxu0 %v4057
        %4302 = vmatpush.bf16.msra.mxu0 %v4054
        %4303 = vmatpush.bf16.msra.mxu0 %v4051
        %4304 = vmatpush.bf16.msra.mxu0 %v4048
        %4305 = vmatpush.bf16.msra.mxu0 %v4045
        %4306 = vmatpush.bf16.msra.mxu0 %v4042
        %4307 = vmatpush.bf16.msra.mxu0 %v4039
        %4308 = vmatmul.bf16.gmra.mxu0 %v2684
        %v4309 = vpop.f32.mrf.mxu0
        %v4310 = vadd.f32 %v4297, %v4309
        %v4311 = vpop.f32.mrf.mxu0
        %4312 = vdwg.mxu0
        %v4313 = vld [vmem:[#allocation15] sm:$0xff]
        %v4314 = vld [vmem:[#allocation15 + $0x8] sm:$0xf]
        %v4315 = vld [vmem:[#allocation15 + $0xc] sm:$0xff]
        %v4316 = vld [vmem:[#allocation15 + $0x14] sm:$0xf]
        %v4317 = vld [vmem:[#allocation15 + $0x18] sm:$0xff]
        %v4318 = vld [vmem:[#allocation15 + $0x20] sm:$0xf]
        %v4319 = vld [vmem:[#allocation15 + $0x24] sm:$0xff]
        %v4320 = vld [vmem:[#allocation15 + $0x2c] sm:$0xf]
        %v4321 = vld [vmem:[#allocation15 + $0x30] sm:$0xff]
        %v4322 = vld [vmem:[#allocation15 + $0x38] sm:$0xf]
        %v4323 = vld [vmem:[#allocation15 + $0x3c] sm:$0xff]
        %v4324 = vld [vmem:[#allocation15 + $0x44] sm:$0xf]
        %v4325 = vld [vmem:[#allocation15 + $0x48] sm:$0xff]
        %v4326 = vld [vmem:[#allocation15 + $0x50] sm:$0xf]
        %v4327 = vld [vmem:[#allocation15 + $0x54] sm:$0xff]
        %v4328 = vld [vmem:[#allocation15 + $0x5c] sm:$0xf]
        %v4329 = vld [vmem:[#allocation15 + $0x60] sm:$0xff]
        %v4330 = vld [vmem:[#allocation15 + $0x68] sm:$0xf]
        %v4331 = vld [vmem:[#allocation15 + $0x6c] sm:$0xff]
        %v4332 = vld [vmem:[#allocation15 + $0x74] sm:$0xf]
        %v4333 = vld [vmem:[#allocation15 + $0x78] sm:$0xff]
        %v4334 = vld [vmem:[#allocation15 + $0x80] sm:$0xf]
        %v4335 = vld [vmem:[#allocation15 + $0x84] sm:$0xff]
        %v4336 = vld [vmem:[#allocation15 + $0x8c] sm:$0xf]
        %v4337 = vld [vmem:[#allocation15 + $0x90] sm:$0xff]
        %v4338 = vld [vmem:[#allocation15 + $0x98] sm:$0xf]
        %v4339 = vld [vmem:[#allocation15 + $0x9c] sm:$0xff]
        %v4340 = vld [vmem:[#allocation15 + $0xa4] sm:$0xf]
        %v4341 = vld [vmem:[#allocation15 + $0xa8] sm:$0xff]
        %v4342 = vld [vmem:[#allocation15 + $0xb0] sm:$0xf]
        %v4343 = vld [vmem:[#allocation15 + $0xb4] sm:$0xff]
        %v4344 = vld [vmem:[#allocation15 + $0xbc] sm:$0xf]
        %v4345 = vld [vmem:[#allocation15 + $0xc0] sm:$0xff]
        %v4346 = vld [vmem:[#allocation15 + $0xc8] sm:$0xf]
        %v4347 = vld [vmem:[#allocation15 + $0xcc] sm:$0xff]
        %v4348 = vld [vmem:[#allocation15 + $0xd4] sm:$0xf]
        %v4349 = vld [vmem:[#allocation15 + $0xd8] sm:$0xff]
        %v4350 = vld [vmem:[#allocation15 + $0xe0] sm:$0xf]
        %v4351 = vld [vmem:[#allocation15 + $0xe4] sm:$0xff]
        %v4352 = vld [vmem:[#allocation15 + $0xec] sm:$0xf]
        %v4353 = vld [vmem:[#allocation15 + $0xf0] sm:$0xff]
        %v4354 = vld [vmem:[#allocation15 + $0xf8] sm:$0xf]
        %v4355 = vld [vmem:[#allocation15 + $0xfc] sm:$0xff]
        %v4356 = vld [vmem:[#allocation15 + $0x104] sm:$0xf]
        %v4357 = vld [vmem:[#allocation15 + $0x108] sm:$0xff]
        %v4358 = vld [vmem:[#allocation15 + $0x110] sm:$0xf]
        %v4359 = vld [vmem:[#allocation15 + $0x114] sm:$0xff]
        %v4360 = vld [vmem:[#allocation15 + $0x11c] sm:$0xf]
        %v4361 = vld [vmem:[#allocation15 + $0x120] sm:$0xff]
        %v4362 = vld [vmem:[#allocation15 + $0x128] sm:$0xf]
        %v4363 = vld [vmem:[#allocation15 + $0x12c] sm:$0xff]
        %v4364 = vld [vmem:[#allocation15 + $0x134] sm:$0xf]
        %v4365 = vld [vmem:[#allocation15 + $0x138] sm:$0xff]
        %v4366 = vld [vmem:[#allocation15 + $0x140] sm:$0xf]
        %v4367 = vld [vmem:[#allocation15 + $0x144] sm:$0xff]
        %v4368 = vld [vmem:[#allocation15 + $0x14c] sm:$0xf]
        %v4369 = vld [vmem:[#allocation15 + $0x150] sm:$0xff]
        %v4370 = vld [vmem:[#allocation15 + $0x158] sm:$0xf]
        %v4371 = vld [vmem:[#allocation15 + $0x15c] sm:$0xff]
        %v4372 = vld [vmem:[#allocation15 + $0x164] sm:$0xf]
        %v4373 = vld [vmem:[#allocation15 + $0x168] sm:$0xff]
        %v4374 = vld [vmem:[#allocation15 + $0x170] sm:$0xf]
        %v4375 = vld [vmem:[#allocation15 + $0x174] sm:$0xff]
        %v4376 = vld [vmem:[#allocation15 + $0x17c] sm:$0xf]
        %v4377 = vld [vmem:[#allocation15 + $0x180] sm:$0xff]
        %v4378 = vld [vmem:[#allocation15 + $0x188] sm:$0xf]
        %v4379 = vld [vmem:[#allocation15 + $0x18c] sm:$0xff]
        %v4380 = vld [vmem:[#allocation15 + $0x194] sm:$0xf]
        %v4381 = vld [vmem:[#allocation15 + $0x198] sm:$0xff]
        %v4382 = vld [vmem:[#allocation15 + $0x1a0] sm:$0xf]
        %v4383 = vld [vmem:[#allocation15 + $0x1a4] sm:$0xff]
        %v4384 = vld [vmem:[#allocation15 + $0x1ac] sm:$0xf]
        %v4385 = vld [vmem:[#allocation15 + $0x1b0] sm:$0xff]
        %v4386 = vld [vmem:[#allocation15 + $0x1b8] sm:$0xf]
        %v4387 = vld [vmem:[#allocation15 + $0x1bc] sm:$0xff]
        %v4388 = vld [vmem:[#allocation15 + $0x1c4] sm:$0xf]
        %v4389 = vld [vmem:[#allocation15 + $0x1c8] sm:$0xff]
        %v4390 = vld [vmem:[#allocation15 + $0x1d0] sm:$0xf]
        %v4391 = vld [vmem:[#allocation15 + $0x1d4] sm:$0xff]
        %v4392 = vld [vmem:[#allocation15 + $0x1dc] sm:$0xf]
        %v4393 = vld [vmem:[#allocation15 + $0x1e0] sm:$0xff]
        %v4394 = vld [vmem:[#allocation15 + $0x1e8] sm:$0xf]
        %v4395 = vld [vmem:[#allocation15 + $0x1ec] sm:$0xff]
        %v4396 = vld [vmem:[#allocation15 + $0x1f4] sm:$0xf]
        %v4397 = vld [vmem:[#allocation15 + $0x1f8] sm:$0xff]
        %v4398 = vld [vmem:[#allocation15 + $0x200] sm:$0xf]
        %v4399 = vld [vmem:[#allocation15 + $0x204] sm:$0xff]
        %v4400 = vld [vmem:[#allocation15 + $0x20c] sm:$0xf]
        %v4401 = vld [vmem:[#allocation15 + $0x210] sm:$0xff]
        %v4402 = vld [vmem:[#allocation15 + $0x218] sm:$0xf]
        %v4403 = vld [vmem:[#allocation15 + $0x21c] sm:$0xff]
        %v4404 = vld [vmem:[#allocation15 + $0x224] sm:$0xf]
        %v4405 = vld [vmem:[#allocation15 + $0x228] sm:$0xff]
        %v4406 = vld [vmem:[#allocation15 + $0x230] sm:$0xf]
        %v4407 = vld [vmem:[#allocation15 + $0x234] sm:$0xff]
        %v4408 = vld [vmem:[#allocation15 + $0x23c] sm:$0xf]
        %v4409 = vld [vmem:[#allocation15 + $0x240] sm:$0xff]
        %v4410 = vld [vmem:[#allocation15 + $0x248] sm:$0xf]
        %v4411 = vld [vmem:[#allocation15 + $0x24c] sm:$0xff]
        %v4412 = vld [vmem:[#allocation15 + $0x254] sm:$0xf]
        %v4413 = vld [vmem:[#allocation15 + $0x258] sm:$0xff]
        %v4414 = vld [vmem:[#allocation15 + $0x260] sm:$0xf]
        %v4415 = vld [vmem:[#allocation15 + $0x264] sm:$0xff]
        %v4416 = vld [vmem:[#allocation15 + $0x26c] sm:$0xf]
        %v4417 = vld [vmem:[#allocation15 + $0x270] sm:$0xff]
        %v4418 = vld [vmem:[#allocation15 + $0x278] sm:$0xf]
        %v4419 = vld [vmem:[#allocation15 + $0x27c] sm:$0xff]
        %v4420 = vld [vmem:[#allocation15 + $0x284] sm:$0xf]
        %v4421 = vld [vmem:[#allocation15 + $0x288] sm:$0xff]
        %v4422 = vld [vmem:[#allocation15 + $0x290] sm:$0xf]
        %v4423 = vld [vmem:[#allocation15 + $0x294] sm:$0xff]
        %v4424 = vld [vmem:[#allocation15 + $0x29c] sm:$0xf]
        %v4425 = vld [vmem:[#allocation15 + $0x2a0] sm:$0xff]
        %v4426 = vld [vmem:[#allocation15 + $0x2a8] sm:$0xf]
        %v4427 = vld [vmem:[#allocation15 + $0x2ac] sm:$0xff]
        %v4428 = vld [vmem:[#allocation15 + $0x2b4] sm:$0xf]
        %v4429 = vld [vmem:[#allocation15 + $0x2b8] sm:$0xff]
        %v4430 = vld [vmem:[#allocation15 + $0x2c0] sm:$0xf]
        %v4431 = vld [vmem:[#allocation15 + $0x2c4] sm:$0xff]
        %v4432 = vld [vmem:[#allocation15 + $0x2cc] sm:$0xf]
        %v4433 = vld [vmem:[#allocation15 + $0x2d0] sm:$0xff]
        %v4434 = vld [vmem:[#allocation15 + $0x2d8] sm:$0xf]
        %v4435 = vld [vmem:[#allocation15 + $0x2dc] sm:$0xff]
        %v4436 = vld [vmem:[#allocation15 + $0x2e4] sm:$0xf]
        %v4437 = vld [vmem:[#allocation15 + $0x2e8] sm:$0xff]
        %v4438 = vld [vmem:[#allocation15 + $0x2f0] sm:$0xf]
        %v4439 = vld [vmem:[#allocation15 + $0x2f4] sm:$0xff]
        %v4440 = vld [vmem:[#allocation15 + $0x2fc] sm:$0xf]
        %v4445 = vrot.slane %v2813, 1
        %v4446 = vrot.slane %v2814, 1
        %v4447 = vrot.slane %v2815, 1
        %v4448 = vrot.slane %v2816, 1
        %v4581 = vunpack.c.l.b16 %v4313
        %v4582 = vunpack.c.h.b16 %v4313
        %v4583 = vunpack.c.l.b16 %v4314
        %v4584 = vunpack.c.l.b16 %v4315
        %v4585 = vunpack.c.h.b16 %v4315
        %v4586 = vunpack.c.l.b16 %v4316
        %v4587 = vunpack.c.l.b16 %v4317
        %v4588 = vunpack.c.h.b16 %v4317
        %v4589 = vunpack.c.l.b16 %v4318
        %v4590 = vunpack.c.l.b16 %v4319
        %v4591 = vunpack.c.h.b16 %v4319
        %v4592 = vunpack.c.l.b16 %v4320
        %v4593 = vunpack.c.l.b16 %v4321
        %v4594 = vunpack.c.h.b16 %v4321
        %v4595 = vunpack.c.l.b16 %v4322
        %v4596 = vunpack.c.l.b16 %v4323
        %v4597 = vunpack.c.h.b16 %v4323
        %v4598 = vunpack.c.l.b16 %v4324
        %v4599 = vunpack.c.l.b16 %v4325
        %v4600 = vunpack.c.h.b16 %v4325
        %v4601 = vunpack.c.l.b16 %v4326
        %v4602 = vunpack.c.l.b16 %v4327
        %v4603 = vunpack.c.h.b16 %v4327
        %v4604 = vunpack.c.l.b16 %v4328
        %v4605 = vunpack.c.l.b16 %v4329
        %v4606 = vunpack.c.h.b16 %v4329
        %v4607 = vunpack.c.l.b16 %v4330
        %v4608 = vunpack.c.l.b16 %v4331
        %v4609 = vunpack.c.h.b16 %v4331
        %v4610 = vunpack.c.l.b16 %v4332
        %v4611 = vunpack.c.l.b16 %v4333
        %v4612 = vunpack.c.h.b16 %v4333
        %v4613 = vunpack.c.l.b16 %v4334
        %v4614 = vunpack.c.l.b16 %v4335
        %v4615 = vunpack.c.h.b16 %v4335
        %v4616 = vunpack.c.l.b16 %v4336
        %v4617 = vunpack.c.l.b16 %v4337
        %v4618 = vunpack.c.h.b16 %v4337
        %v4619 = vunpack.c.l.b16 %v4338
        %v4620 = vunpack.c.l.b16 %v4339
        %v4621 = vunpack.c.h.b16 %v4339
        %v4622 = vunpack.c.l.b16 %v4340
        %v4623 = vunpack.c.l.b16 %v4341
        %v4624 = vunpack.c.h.b16 %v4341
        %v4625 = vunpack.c.l.b16 %v4342
        %v4626 = vunpack.c.l.b16 %v4343
        %v4627 = vunpack.c.h.b16 %v4343
        %v4628 = vunpack.c.l.b16 %v4344
        %v4629 = vunpack.c.l.b16 %v4345
        %v4630 = vunpack.c.h.b16 %v4345
        %v4631 = vunpack.c.l.b16 %v4346
        %v4632 = vunpack.c.l.b16 %v4347
        %v4633 = vunpack.c.h.b16 %v4347
        %v4634 = vunpack.c.l.b16 %v4348
        %v4635 = vunpack.c.l.b16 %v4349
        %v4636 = vunpack.c.h.b16 %v4349
        %v4637 = vunpack.c.l.b16 %v4350
        %v4638 = vunpack.c.l.b16 %v4351
        %v4639 = vunpack.c.h.b16 %v4351
        %v4640 = vunpack.c.l.b16 %v4352
        %v4641 = vunpack.c.l.b16 %v4353
        %v4642 = vunpack.c.h.b16 %v4353
        %v4643 = vunpack.c.l.b16 %v4354
        %v4644 = vunpack.c.l.b16 %v4355
        %v4645 = vunpack.c.h.b16 %v4355
        %v4646 = vunpack.c.l.b16 %v4356
        %v4647 = vunpack.c.l.b16 %v4357
        %v4648 = vunpack.c.h.b16 %v4357
        %v4649 = vunpack.c.l.b16 %v4358
        %v4650 = vunpack.c.l.b16 %v4359
        %v4651 = vunpack.c.h.b16 %v4359
        %v4652 = vunpack.c.l.b16 %v4360
        %v4653 = vunpack.c.l.b16 %v4361
        %v4654 = vunpack.c.h.b16 %v4361
        %v4655 = vunpack.c.l.b16 %v4362
        %v4656 = vunpack.c.l.b16 %v4363
        %v4657 = vunpack.c.h.b16 %v4363
        %v4658 = vunpack.c.l.b16 %v4364
        %v4659 = vunpack.c.l.b16 %v4365
        %v4660 = vunpack.c.h.b16 %v4365
        %v4661 = vunpack.c.l.b16 %v4366
        %v4662 = vunpack.c.l.b16 %v4367
        %v4663 = vunpack.c.h.b16 %v4367
        %v4664 = vunpack.c.l.b16 %v4368
        %v4665 = vunpack.c.l.b16 %v4369
        %v4666 = vunpack.c.h.b16 %v4369
        %v4667 = vunpack.c.l.b16 %v4370
        %v4668 = vunpack.c.l.b16 %v4371
        %v4669 = vunpack.c.h.b16 %v4371
        %v4670 = vunpack.c.l.b16 %v4372
        %v4671 = vunpack.c.l.b16 %v4373
        %v4672 = vunpack.c.h.b16 %v4373
        %v4673 = vunpack.c.l.b16 %v4374
        %v4674 = vunpack.c.l.b16 %v4375
        %v4675 = vunpack.c.h.b16 %v4375
        %v4676 = vunpack.c.l.b16 %v4376
        %v4677 = vunpack.c.l.b16 %v4377
        %v4678 = vunpack.c.h.b16 %v4377
        %v4679 = vunpack.c.l.b16 %v4378
        %v4680 = vunpack.c.l.b16 %v4379
        %v4681 = vunpack.c.h.b16 %v4379
        %v4682 = vunpack.c.l.b16 %v4380
        %v4683 = vunpack.c.l.b16 %v4381
        %v4684 = vunpack.c.h.b16 %v4381
        %v4685 = vunpack.c.l.b16 %v4382
        %v4686 = vunpack.c.l.b16 %v4383
        %v4687 = vunpack.c.h.b16 %v4383
        %v4688 = vunpack.c.l.b16 %v4384
        %v4689 = vunpack.c.l.b16 %v4385
        %v4690 = vunpack.c.h.b16 %v4385
        %v4691 = vunpack.c.l.b16 %v4386
        %v4692 = vunpack.c.l.b16 %v4387
        %v4693 = vunpack.c.h.b16 %v4387
        %v4694 = vunpack.c.l.b16 %v4388
        %v4695 = vunpack.c.l.b16 %v4389
        %v4696 = vunpack.c.h.b16 %v4389
        %v4697 = vunpack.c.l.b16 %v4390
        %v4698 = vunpack.c.l.b16 %v4391
        %v4699 = vunpack.c.h.b16 %v4391
        %v4700 = vunpack.c.l.b16 %v4392
        %v4701 = vunpack.c.l.b16 %v4393
        %v4702 = vunpack.c.h.b16 %v4393
        %v4703 = vunpack.c.l.b16 %v4394
        %v4704 = vunpack.c.l.b16 %v4395
        %v4705 = vunpack.c.h.b16 %v4395
        %v4706 = vunpack.c.l.b16 %v4396
        %v4707 = vunpack.c.l.b16 %v4397
        %v4708 = vunpack.c.h.b16 %v4397
        %v4709 = vunpack.c.l.b16 %v4398
        %v4710 = vunpack.c.l.b16 %v4399
        %v4711 = vunpack.c.h.b16 %v4399
        %v4712 = vunpack.c.l.b16 %v4400
        %v4713 = vunpack.c.l.b16 %v4401
        %v4714 = vunpack.c.h.b16 %v4401
        %v4715 = vunpack.c.l.b16 %v4402
        %v4716 = vunpack.c.l.b16 %v4403
        %v4717 = vunpack.c.h.b16 %v4403
        %v4718 = vunpack.c.l.b16 %v4404
        %v4719 = vunpack.c.l.b16 %v4405
        %v4720 = vunpack.c.h.b16 %v4405
        %v4721 = vunpack.c.l.b16 %v4406
        %v4722 = vunpack.c.l.b16 %v4407
        %v4723 = vunpack.c.h.b16 %v4407
        %v4724 = vunpack.c.l.b16 %v4408
        %v4725 = vunpack.c.l.b16 %v4409
        %v4726 = vunpack.c.h.b16 %v4409
        %v4727 = vunpack.c.l.b16 %v4410
        %v4728 = vunpack.c.l.b16 %v4411
        %v4729 = vunpack.c.h.b16 %v4411
        %v4730 = vunpack.c.l.b16 %v4412
        %v4731 = vunpack.c.l.b16 %v4413
        %v4732 = vunpack.c.h.b16 %v4413
        %v4733 = vunpack.c.l.b16 %v4414
        %v4734 = vunpack.c.l.b16 %v4415
        %v4735 = vunpack.c.h.b16 %v4415
        %v4736 = vunpack.c.l.b16 %v4416
        %v4737 = vunpack.c.l.b16 %v4417
        %v4738 = vunpack.c.h.b16 %v4417
        %v4739 = vunpack.c.l.b16 %v4418
        %v4740 = vunpack.c.l.b16 %v4419
        %v4741 = vunpack.c.h.b16 %v4419
        %v4742 = vunpack.c.l.b16 %v4420
        %v4743 = vunpack.c.l.b16 %v4421
        %v4744 = vunpack.c.h.b16 %v4421
        %v4745 = vunpack.c.l.b16 %v4422
        %v4746 = vunpack.c.l.b16 %v4423
        %v4747 = vunpack.c.h.b16 %v4423
        %v4748 = vunpack.c.l.b16 %v4424
        %v4749 = vunpack.c.l.b16 %v4425
        %v4750 = vunpack.c.h.b16 %v4425
        %v4751 = vunpack.c.l.b16 %v4426
        %v4752 = vunpack.c.l.b16 %v4427
        %v4753 = vunpack.c.h.b16 %v4427
        %v4754 = vunpack.c.l.b16 %v4428
        %v4755 = vunpack.c.l.b16 %v4429
        %v4756 = vunpack.c.h.b16 %v4429
        %v4757 = vunpack.c.l.b16 %v4430
        %v4758 = vunpack.c.l.b16 %v4431
        %v4759 = vunpack.c.h.b16 %v4431
        %v4760 = vunpack.c.l.b16 %v4432
        %v4761 = vunpack.c.l.b16 %v4433
        %v4762 = vunpack.c.h.b16 %v4433
        %v4763 = vunpack.c.l.b16 %v4434
        %v4764 = vunpack.c.l.b16 %v4435
        %v4765 = vunpack.c.h.b16 %v4435
        %v4766 = vunpack.c.l.b16 %v4436
        %v4767 = vunpack.c.l.b16 %v4437
        %v4768 = vunpack.c.h.b16 %v4437
        %v4769 = vunpack.c.l.b16 %v4438
        %v4770 = vunpack.c.l.b16 %v4439
        %v4771 = vunpack.c.h.b16 %v4439
        %v4772 = vunpack.c.l.b16 %v4440
        %v4773 = vpack.c.b16 %v4584, %v4581
        %v4774 = vpack.c.b16 %v4585, %v4582
        %v4775 = vpack.c.b16 %v4586, %v4583
        %v4776 = vpack.c.b16 %v4590, %v4587
        %v4777 = vpack.c.b16 %v4591, %v4588
        %v4778 = vpack.c.b16 %v4592, %v4589
        %v4779 = vpack.c.b16 %v4596, %v4593
        %v4780 = vpack.c.b16 %v4597, %v4594
        %v4781 = vpack.c.b16 %v4598, %v4595
        %v4782 = vpack.c.b16 %v4602, %v4599
        %v4783 = vpack.c.b16 %v4603, %v4600
        %v4784 = vpack.c.b16 %v4604, %v4601
        %v4785 = vpack.c.b16 %v4608, %v4605
        %v4786 = vpack.c.b16 %v4609, %v4606
        %v4787 = vpack.c.b16 %v4610, %v4607
        %v4788 = vpack.c.b16 %v4614, %v4611
        %v4789 = vpack.c.b16 %v4615, %v4612
        %v4790 = vpack.c.b16 %v4616, %v4613
        %v4791 = vpack.c.b16 %v4620, %v4617
        %v4792 = vpack.c.b16 %v4621, %v4618
        %v4793 = vpack.c.b16 %v4622, %v4619
        %v4794 = vpack.c.b16 %v4626, %v4623
        %v4795 = vpack.c.b16 %v4627, %v4624
        %v4796 = vpack.c.b16 %v4628, %v4625
        %v4797 = vpack.c.b16 %v4632, %v4629
        %v4798 = vpack.c.b16 %v4633, %v4630
        %v4799 = vpack.c.b16 %v4634, %v4631
        %v4800 = vpack.c.b16 %v4638, %v4635
        %v4801 = vpack.c.b16 %v4639, %v4636
        %v4802 = vpack.c.b16 %v4640, %v4637
        %v4803 = vpack.c.b16 %v4644, %v4641
        %v4804 = vpack.c.b16 %v4645, %v4642
        %v4805 = vpack.c.b16 %v4646, %v4643
        %v4806 = vpack.c.b16 %v4650, %v4647
        %v4807 = vpack.c.b16 %v4651, %v4648
        %v4808 = vpack.c.b16 %v4652, %v4649
        %v4809 = vpack.c.b16 %v4656, %v4653
        %v4810 = vpack.c.b16 %v4657, %v4654
        %v4811 = vpack.c.b16 %v4658, %v4655
        %v4812 = vpack.c.b16 %v4662, %v4659
        %v4813 = vpack.c.b16 %v4663, %v4660
        %v4814 = vpack.c.b16 %v4664, %v4661
        %v4815 = vpack.c.b16 %v4668, %v4665
        %v4816 = vpack.c.b16 %v4669, %v4666
        %v4817 = vpack.c.b16 %v4670, %v4667
        %v4818 = vpack.c.b16 %v4674, %v4671
        %v4819 = vpack.c.b16 %v4675, %v4672
        %v4820 = vpack.c.b16 %v4676, %v4673
        %v4821 = vpack.c.b16 %v4680, %v4677
        %v4822 = vpack.c.b16 %v4681, %v4678
        %v4823 = vpack.c.b16 %v4682, %v4679
        %v4824 = vpack.c.b16 %v4686, %v4683
        %v4825 = vpack.c.b16 %v4687, %v4684
        %v4826 = vpack.c.b16 %v4688, %v4685
        %v4827 = vpack.c.b16 %v4692, %v4689
        %v4828 = vpack.c.b16 %v4693, %v4690
        %v4829 = vpack.c.b16 %v4694, %v4691
        %v4830 = vpack.c.b16 %v4698, %v4695
        %v4831 = vpack.c.b16 %v4699, %v4696
        %v4832 = vpack.c.b16 %v4700, %v4697
        %v4833 = vpack.c.b16 %v4704, %v4701
        %v4834 = vpack.c.b16 %v4705, %v4702
        %v4835 = vpack.c.b16 %v4706, %v4703
        %v4836 = vpack.c.b16 %v4710, %v4707
        %v4837 = vpack.c.b16 %v4711, %v4708
        %v4838 = vpack.c.b16 %v4712, %v4709
        %v4839 = vpack.c.b16 %v4716, %v4713
        %v4840 = vpack.c.b16 %v4717, %v4714
        %v4841 = vpack.c.b16 %v4718, %v4715
        %v4842 = vpack.c.b16 %v4722, %v4719
        %v4843 = vpack.c.b16 %v4723, %v4720
        %v4844 = vpack.c.b16 %v4724, %v4721
        %v4845 = vpack.c.b16 %v4728, %v4725
        %v4846 = vpack.c.b16 %v4729, %v4726
        %v4847 = vpack.c.b16 %v4730, %v4727
        %v4848 = vpack.c.b16 %v4734, %v4731
        %v4849 = vpack.c.b16 %v4735, %v4732
        %v4850 = vpack.c.b16 %v4736, %v4733
        %v4851 = vpack.c.b16 %v4740, %v4737
        %v4852 = vpack.c.b16 %v4741, %v4738
        %v4853 = vpack.c.b16 %v4742, %v4739
        %v4854 = vpack.c.b16 %v4746, %v4743
        %v4855 = vpack.c.b16 %v4747, %v4744
        %v4856 = vpack.c.b16 %v4748, %v4745
        %v4857 = vpack.c.b16 %v4752, %v4749
        %v4858 = vpack.c.b16 %v4753, %v4750
        %v4859 = vpack.c.b16 %v4754, %v4751
        %v4860 = vpack.c.b16 %v4758, %v4755
        %v4861 = vpack.c.b16 %v4759, %v4756
        %v4862 = vpack.c.b16 %v4760, %v4757
        %v4863 = vpack.c.b16 %v4764, %v4761
        %v4864 = vpack.c.b16 %v4765, %v4762
        %v4865 = vpack.c.b16 %v4766, %v4763
        %v4866 = vpack.c.b16 %v4770, %v4767
        %v4867 = vpack.c.b16 %v4771, %v4768
        %v4868 = vpack.c.b16 %v4772, %v4769
        %4965 = vmatpush.bf16.msra.mxu0 %v4794
        %4966 = vmatpush.bf16.msra.mxu0 %v4791
        %4967 = vmatpush.bf16.msra.mxu0 %v4788
        %4968 = vmatpush.bf16.msra.mxu0 %v4785
        %4969 = vmatpush.bf16.msra.mxu0 %v4782
        %4970 = vmatpush.bf16.msra.mxu0 %v4779
        %4971 = vmatpush.bf16.msra.mxu0 %v4776
        %4972 = vmatpush.bf16.msra.mxu0 %v4773
        %4973 = vmatmul.bf16.gmra.mxu0 %v4445
        %v4974 = vpop.f32.mrf.mxu0
        %v4975 = vadd.f32 0.0, %v4974
        %v4976 = vpop.f32.mrf.mxu0
        %4977 = vdwg.mxu0
        %4978 = vmatpush.bf16.msra.mxu0 %v4818
        %4979 = vmatpush.bf16.msra.mxu0 %v4815
        %4980 = vmatpush.bf16.msra.mxu0 %v4812
        %4981 = vmatpush.bf16.msra.mxu0 %v4809
        %4982 = vmatpush.bf16.msra.mxu0 %v4806
        %4983 = vmatpush.bf16.msra.mxu0 %v4803
        %4984 = vmatpush.bf16.msra.mxu0 %v4800
        %4985 = vmatpush.bf16.msra.mxu0 %v4797
        %4986 = vmatmul.bf16.gmra.mxu0 %v4446
        %v4987 = vpop.f32.mrf.mxu0
        %v4988 = vadd.f32 %v4975, %v4987
        %v4989 = vpop.f32.mrf.mxu0
        %4990 = vdwg.mxu0
        %4991 = vmatpush.bf16.msra.mxu0 %v4842
        %4992 = vmatpush.bf16.msra.mxu0 %v4839
        %4993 = vmatpush.bf16.msra.mxu0 %v4836
        %4994 = vmatpush.bf16.msra.mxu0 %v4833
        %4995 = vmatpush.bf16.msra.mxu0 %v4830
        %4996 = vmatpush.bf16.msra.mxu0 %v4827
        %4997 = vmatpush.bf16.msra.mxu0 %v4824
        %4998 = vmatpush.bf16.msra.mxu0 %v4821
        %4999 = vmatmul.bf16.gmra.mxu0 %v4447
        %v5000 = vpop.f32.mrf.mxu0
        %v5001 = vadd.f32 %v4988, %v5000
        %v5002 = vpop.f32.mrf.mxu0
        %5003 = vdwg.mxu0
        %5004 = vmatpush.bf16.msra.mxu0 %v4866
        %5005 = vmatpush.bf16.msra.mxu0 %v4863
        %5006 = vmatpush.bf16.msra.mxu0 %v4860
        %5007 = vmatpush.bf16.msra.mxu0 %v4857
        %5008 = vmatpush.bf16.msra.mxu0 %v4854
        %5009 = vmatpush.bf16.msra.mxu0 %v4851
        %5010 = vmatpush.bf16.msra.mxu0 %v4848
        %5011 = vmatpush.bf16.msra.mxu0 %v4845
        %5012 = vmatmul.bf16.gmra.mxu0 %v4448
        %v5013 = vpop.f32.mrf.mxu0
        %v5014 = vadd.f32 %v5001, %v5013
        %v5015 = vpop.f32.mrf.mxu0
        %5016 = vdwg.mxu0
        %5017 = vmatpush.bf16.msra.mxu0 %v4795
        %5018 = vmatpush.bf16.msra.mxu0 %v4792
        %5019 = vmatpush.bf16.msra.mxu0 %v4789
        %5020 = vmatpush.bf16.msra.mxu0 %v4786
        %5021 = vmatpush.bf16.msra.mxu0 %v4783
        %5022 = vmatpush.bf16.msra.mxu0 %v4780
        %5023 = vmatpush.bf16.msra.mxu0 %v4777
        %5024 = vmatpush.bf16.msra.mxu0 %v4774
        %5025 = vmatmul.bf16.gmra.mxu0 %v4445
        %v5026 = vpop.f32.mrf.mxu0
        %v5027 = vadd.f32 0.0, %v5026
        %v5028 = vpop.f32.mrf.mxu0
        %5029 = vdwg.mxu0
        %5030 = vmatpush.bf16.msra.mxu0 %v4819
        %5031 = vmatpush.bf16.msra.mxu0 %v4816
        %5032 = vmatpush.bf16.msra.mxu0 %v4813
        %5033 = vmatpush.bf16.msra.mxu0 %v4810
        %5034 = vmatpush.bf16.msra.mxu0 %v4807
        %5035 = vmatpush.bf16.msra.mxu0 %v4804
        %5036 = vmatpush.bf16.msra.mxu0 %v4801
        %5037 = vmatpush.bf16.msra.mxu0 %v4798
        %5038 = vmatmul.bf16.gmra.mxu0 %v4446
        %v5039 = vpop.f32.mrf.mxu0
        %v5040 = vadd.f32 %v5027, %v5039
        %v5041 = vpop.f32.mrf.mxu0
        %5042 = vdwg.mxu0
        %5043 = vmatpush.bf16.msra.mxu0 %v4843
        %5044 = vmatpush.bf16.msra.mxu0 %v4840
        %5045 = vmatpush.bf16.msra.mxu0 %v4837
        %5046 = vmatpush.bf16.msra.mxu0 %v4834
        %5047 = vmatpush.bf16.msra.mxu0 %v4831
        %5048 = vmatpush.bf16.msra.mxu0 %v4828
        %5049 = vmatpush.bf16.msra.mxu0 %v4825
        %5050 = vmatpush.bf16.msra.mxu0 %v4822
        %5051 = vmatmul.bf16.gmra.mxu0 %v4447
        %v5052 = vpop.f32.mrf.mxu0
        %v5053 = vadd.f32 %v5040, %v5052
        %v5054 = vpop.f32.mrf.mxu0
        %5055 = vdwg.mxu0
        %5056 = vmatpush.bf16.msra.mxu0 %v4867
        %5057 = vmatpush.bf16.msra.mxu0 %v4864
        %5058 = vmatpush.bf16.msra.mxu0 %v4861
        %5059 = vmatpush.bf16.msra.mxu0 %v4858
        %5060 = vmatpush.bf16.msra.mxu0 %v4855
        %5061 = vmatpush.bf16.msra.mxu0 %v4852
        %5062 = vmatpush.bf16.msra.mxu0 %v4849
        %5063 = vmatpush.bf16.msra.mxu0 %v4846
        %5064 = vmatmul.bf16.gmra.mxu0 %v4448
        %v5065 = vpop.f32.mrf.mxu0
        %v5066 = vadd.f32 %v5053, %v5065
        %v5067 = vpop.f32.mrf.mxu0
        %5068 = vdwg.mxu0
        %5069 = vmatpush.bf16.msra.mxu0 %v4796
        %5070 = vmatpush.bf16.msra.mxu0 %v4793
        %5071 = vmatpush.bf16.msra.mxu0 %v4790
        %5072 = vmatpush.bf16.msra.mxu0 %v4787
        %5073 = vmatpush.bf16.msra.mxu0 %v4784
        %5074 = vmatpush.bf16.msra.mxu0 %v4781
        %5075 = vmatpush.bf16.msra.mxu0 %v4778
        %5076 = vmatpush.bf16.msra.mxu0 %v4775
        %5077 = vmatmul.bf16.gmra.mxu0 %v4445
        %v5078 = vpop.f32.mrf.mxu0
        %v5079 = vadd.f32 0.0, %v5078
        %v5080 = vpop.f32.mrf.mxu0
        %5081 = vdwg.mxu0
        %5082 = vmatpush.bf16.msra.mxu0 %v4820
        %5083 = vmatpush.bf16.msra.mxu0 %v4817
        %5084 = vmatpush.bf16.msra.mxu0 %v4814
        %5085 = vmatpush.bf16.msra.mxu0 %v4811
        %5086 = vmatpush.bf16.msra.mxu0 %v4808
        %5087 = vmatpush.bf16.msra.mxu0 %v4805
        %5088 = vmatpush.bf16.msra.mxu0 %v4802
        %5089 = vmatpush.bf16.msra.mxu0 %v4799
        %5090 = vmatmul.bf16.gmra.mxu0 %v4446
        %v5091 = vpop.f32.mrf.mxu0
        %v5092 = vadd.f32 %v5079, %v5091
        %v5093 = vpop.f32.mrf.mxu0
        %5094 = vdwg.mxu0
        %5095 = vmatpush.bf16.msra.mxu0 %v4844
        %5096 = vmatpush.bf16.msra.mxu0 %v4841
        %5097 = vmatpush.bf16.msra.mxu0 %v4838
        %5098 = vmatpush.bf16.msra.mxu0 %v4835
        %5099 = vmatpush.bf16.msra.mxu0 %v4832
        %5100 = vmatpush.bf16.msra.mxu0 %v4829
        %5101 = vmatpush.bf16.msra.mxu0 %v4826
        %5102 = vmatpush.bf16.msra.mxu0 %v4823
        %5103 = vmatmul.bf16.gmra.mxu0 %v4447
        %v5104 = vpop.f32.mrf.mxu0
        %v5105 = vadd.f32 %v5092, %v5104
        %v5106 = vpop.f32.mrf.mxu0
        %5107 = vdwg.mxu0
        %5108 = vmatpush.bf16.msra.mxu0 %v4868
        %5109 = vmatpush.bf16.msra.mxu0 %v4865
        %5110 = vmatpush.bf16.msra.mxu0 %v4862
        %5111 = vmatpush.bf16.msra.mxu0 %v4859
        %5112 = vmatpush.bf16.msra.mxu0 %v4856
        %5113 = vmatpush.bf16.msra.mxu0 %v4853
        %5114 = vmatpush.bf16.msra.mxu0 %v4850
        %5115 = vmatpush.bf16.msra.mxu0 %v4847
        %5116 = vmatmul.bf16.gmra.mxu0 %v4448
        %v5117 = vpop.f32.mrf.mxu0
        %v5118 = vadd.f32 %v5105, %v5117
        %v5119 = vpop.f32.mrf.mxu0
        %5120 = vdwg.mxu0
        %v5121 = vadd.f32 %v4206, %v5014
        %v5122 = vadd.f32 %v4258, %v5066
        %v5123 = vadd.f32 %v4310, %v5118
        %v5124 = vld [vmem:[#allocation16] sm:$0x7]
        %v5126 = vperm.slane %v5124, 0
        %v5127 = vperm.slane %v5124, 1
        %v5128 = vperm.slane %v5124, 2
        %v5132 = vadd.f32 %v5121, %v5126
        %v5133 = vadd.f32 %v5122, %v5127
        %v5134 = vadd.f32 %v5123, %v5128
        %v5135 = vtanh.pop %v5132
        %v5136 = vtanh.pop %v5133
        %v5137 = vtanh.pop %v5134
        %5138 = vst [vmem:[%s750] sm:$0xff] %v5135
        %5139 = vst [vmem:[%s750 + $0x8] sm:$0xff] %v5136
        %5140 = vst [vmem:[%s750 + $0x10] sm:$0xff] %v5137
        %p5141 = scmp.lt.s32.totalorder %s34, 1
        %s5142 = scalar_select %p5141, %s34, 1
        %s5143 = smul.addr %s5142, 3
        %s5144 = smul.addr %s5143, 8
        %s5145 = scalar_lea.vmem %s17, %s5144
        // Predicated region
        $region129: #{hvae_decoder_forward.1} parent=87 // pred_check
          %p5146 = pneg %p424
        $region130: #{hvae_decoder_forward.1} parent=87 // pred_check_branch
          %5148 = sbr.rel (%p5146) target = $region132
        $region131: #{hvae_decoder_forward.1} parent=87 // pred_region
          _
        $region132: #{hvae_decoder_forward.1} parent=87 // pred_fallthru
          _
      $region88: #{hvae_decoder_forward.1} parent=5 // pred_fallthru
        _
      %p5149 = scmp.le.s32.totalorder 2, %s29
      // Predicated region
      $region133: #{hvae_decoder_forward.1} parent=5 // pred_check
        %p5150 = pneg %p5149
      $region134: #{hvae_decoder_forward.1} parent=5 // pred_check_branch
        %5152 = sbr.rel (%p5150) target = $region136
      $region135: #{hvae_decoder_forward.1} parent=5 // pred_region
        %s5153 = ssub.s32 %s29, 2
        // Predicated region
        $region137: #{hvae_decoder_forward.1} parent=135 // pred_check
          %p5154 = pneg %p430
        $region138: #{hvae_decoder_forward.1} parent=135 // pred_check_branch
          %5156 = sbr.rel (%p5154) target = $region140
        $region139: #{hvae_decoder_forward.1} parent=135 // pred_region
          %p5157 = scmp.lt.s32.totalorder %s35, 1
          %s5158 = scalar_select %p5157, %s35, 1
          %s5159 = smul.addr %s5158, 3
          %s5160 = smul.addr %s5159, 8
          %s5161 = scalar_lea.vmem %s17, %s5160
        $region140: #{hvae_decoder_forward.1} parent=135 // pred_fallthru
          _
      $region136: #{hvae_decoder_forward.1} parent=5 // pred_fallthru
        _
    $region6: #{hvae_decoder_forward.1} parent=1 // loop_footer
      %s33 = sadd.s32 1, %s29
    $region7: #{hvae_decoder_forward.1} parent=1 // loop_footer_branch
      %28 = sbr.rel target = $region3
    $region8: #{hvae_decoder_forward.1} parent=1 // loop_exit
      _
    %5162 = vsyncpa [#allocation3], 1
    %s5163 = scalar_lea.sflag [#allocation3], 1
    %5164 = vsyncpa %s5163, 1
    %5165 = vsyncpa [#allocation5], 1
    %5166 = vsyncpa [#allocation8], 1
    %5167 = vsyncpa [#allocation11], 1
    %5168 = vsyncpa [#allocation14], 1
    %5169 = vsyncpa [#allocation17], 1

</llo_original>
